<compile_context>
chip_gen: v7x
topology: tpu7x:2x2x1
jax: 0.10.0
libtpu: 0.0.40
codegen_flags: <defaults>
</compile_context>

<pallas_src>
import jax
import jax.numpy as jnp
from jax.experimental import pallas as pl
from jax.experimental.pallas import tpu as pltpu

OBS = 24                         # observation dim
ACT = 8                          # action dim
H1, H2, H3, H4 = 300, 400, 500, 400
TB = 256                         # batch tile (MXU M dim on v6e/v7x)


def _valuenet_kernel(xa_ref,
                     w1_ref, b1_ref,
                     w2_ref, b2_ref,
                     w3_ref, b3_ref,
                     w4_ref, b4_ref,
                     wo_ref, bo_ref,
                     out_ref):
    # bf16 MXU operands, f32 accumulation; bias + ReLU in f32 on the VPU.
    h = jnp.dot(xa_ref[...], w1_ref[...],
                preferred_element_type=jnp.float32) + b1_ref[...]
    h = jnp.maximum(h, 0.0)

    h = jnp.dot(h.astype(jnp.bfloat16), w2_ref[...],
                preferred_element_type=jnp.float32) + b2_ref[...]
    h = jnp.maximum(h, 0.0)

    h = jnp.dot(h.astype(jnp.bfloat16), w3_ref[...],
                preferred_element_type=jnp.float32) + b3_ref[...]
    h = jnp.maximum(h, 0.0)

    h = jnp.dot(h.astype(jnp.bfloat16), w4_ref[...],
                preferred_element_type=jnp.float32) + b4_ref[...]
    h = jnp.maximum(h, 0.0)

    out_ref[...] = (jnp.dot(h.astype(jnp.bfloat16), wo_ref[...],
                            preferred_element_type=jnp.float32)
                    + bo_ref[...]).astype(out_ref.dtype)


def value_net_forward(x, a, kernel_params, *, tb=TB):
    """x: [B, OBS] f32, a: [B, ACT] f32 -> [B, 1] f32."""
    (w1, b1, w2, b2, w3, b3, w4, b4, wo, bo) = kernel_params
    B = x.shape[0]

    # Fuse fc1 inputs outside the kernel; cast matmul operand to bf16.
    xa = jnp.concatenate([x, a], axis=-1).astype(jnp.bfloat16)

    grid = pl.cdiv(B, tb)
    b_pad = grid * tb
    if b_pad != B:
        xa = jnp.pad(xa, ((0, b_pad - B), (0, 0)))

    def full_spec(arr):
        # whole parameter resident in VMEM, constant across grid steps
        return pl.BlockSpec(arr.shape, lambda i: (0, 0))

    grid_spec = pltpu.PrefetchScalarGridSpec(
        num_scalar_prefetch=0,
        grid=(grid,),
        in_specs=[
            pl.BlockSpec((tb, OBS + ACT), lambda i: (i, 0)),   # xa tile
            full_spec(w1), full_spec(b1),
            full_spec(w2), full_spec(b2),
            full_spec(w3), full_spec(b3),
            full_spec(w4), full_spec(b4),
            full_spec(wo), full_spec(bo),
        ],
        out_specs=pl.BlockSpec((tb, 1), lambda i: (i, 0)),
    )

    out = pl.pallas_call(
        _valuenet_kernel,
        out_shape=jax.ShapeDtypeStruct((b_pad, 1), jnp.float32),
        grid_spec=grid_spec,
        compiler_params=pltpu.CompilerParams(
            dimension_semantics=("parallel",)),   # v7x: shard batch over 2 TCs
    )(xa, w1, b1, w2, b2, w3, b3, w4, b4, wo, bo)

    return out[:B]


def init_params_f32(key):
    """Mimics nn.Linear init: U(-1/sqrt(fan_in), 1/sqrt(fan_in)).
    Weights stored [in, out]; biases [1, out]; all float32."""
    dims = [(OBS + ACT, H1), (H1, H2), (H2, H3), (H3, H4), (H4, 1)]
    keys = jax.random.split(key, 2 * len(dims))
    params = []
    for idx, (fin, fout) in enumerate(dims):
        bound = 1.0 / jnp.sqrt(jnp.float32(fin))
        w = jax.random.uniform(keys[2 * idx], (fin, fout), jnp.float32,
                               minval=-bound, maxval=bound)
        b = jax.random.uniform(keys[2 * idx + 1], (1, fout), jnp.float32,
                               minval=-bound, maxval=bound)
        params += [w, b]
    return tuple(params)


def prepare_kernel_params(params_f32):
    """Cast weights to bf16 for the MXU; keep biases in f32."""
    out = []
    for i, p in enumerate(params_f32):
        out.append(p.astype(jnp.bfloat16) if i % 2 == 0 else p)
    return tuple(out)


def reference_forward(x, a, params_f32):
    """Pure-JAX reference mirroring the kernel's bf16-operand / f32-accum math."""
    (w1, b1, w2, b2, w3, b3, w4, b4, wo, bo) = params_f32

    def lin(h, w, b):
        return jnp.dot(h.astype(jnp.bfloat16), w.astype(jnp.bfloat16),
                       preferred_element_type=jnp.float32) + b

    xa = jnp.concatenate([x, a], axis=-1)
    h = jnp.maximum(lin(xa, w1, b1), 0.0)
    h = jnp.maximum(lin(h, w2, b2), 0.0)
    h = jnp.maximum(lin(h, w3, b3), 0.0)
    h = jnp.maximum(lin(h, w4, b4), 0.0)
    return lin(h, wo, bo)


if __name__ == "__main__":
    key = jax.random.PRNGKey(0)
    kx, ka, kp = jax.random.split(key, 3)

    B = 8   # small test batch; wrapper zero-pads up to the 256-row tile
    x = jax.random.normal(kx, (B, OBS), jnp.float32)
    a = jax.random.normal(ka, (B, ACT), jnp.float32)

    params_f32 = init_params_f32(kp)
    kernel_params = prepare_kernel_params(params_f32)

    out = value_net_forward(x, a, kernel_params)
    out = jax.block_until_ready(out)

    ref = reference_forward(x, a, params_f32)
    assert out.shape == (B, 1), out.shape
    assert jnp.allclose(out, ref, atol=2e-3, rtol=2e-3), (out, ref)

    print("KERNEL_OK")
</pallas_src>

<mosaic_0001>
module attributes {stable_mosaic.version = 11 : i64} {
  func.func @_valuenet_kernel(%arg0: i32, %arg1: memref<256x32xbf16, #tpu.memory_space<vmem>>, %arg2: memref<32x300xbf16, #tpu.memory_space<vmem>>, %arg3: memref<1x300xf32, #tpu.memory_space<vmem>>, %arg4: memref<300x400xbf16, #tpu.memory_space<vmem>>, %arg5: memref<1x400xf32, #tpu.memory_space<vmem>>, %arg6: memref<400x500xbf16, #tpu.memory_space<vmem>>, %arg7: memref<1x500xf32, #tpu.memory_space<vmem>>, %arg8: memref<500x400xbf16, #tpu.memory_space<vmem>>, %arg9: memref<1x400xf32, #tpu.memory_space<vmem>>, %arg10: memref<400x1xbf16, #tpu.memory_space<vmem>>, %arg11: memref<1x1xf32, #tpu.memory_space<vmem>>, %arg12: memref<256x1xf32, #tpu.memory_space<vmem>>) attributes {dimension_semantics = [#tpu.dimension_semantics<parallel>], iteration_bounds = array<i64: 1>, scalar_prefetch = 0 : i64, scratch_operands = 0 : i64, tpu.core_type = #tpu.core_type<tc>, window_params = [{transform_indices = @transform_0, window_bounds = array<i64: 256, 32>}, {pipeline_mode = #tpu.pipeline_mode<synchronous>, transform_indices = @transform_1, window_bounds = array<i64: 32, 300>}, {pipeline_mode = #tpu.pipeline_mode<synchronous>, transform_indices = @transform_2, window_bounds = array<i64: 1, 300>}, {pipeline_mode = #tpu.pipeline_mode<synchronous>, transform_indices = @transform_3, window_bounds = array<i64: 300, 400>}, {pipeline_mode = #tpu.pipeline_mode<synchronous>, transform_indices = @transform_4, window_bounds = array<i64: 1, 400>}, {pipeline_mode = #tpu.pipeline_mode<synchronous>, transform_indices = @transform_5, window_bounds = array<i64: 400, 500>}, {pipeline_mode = #tpu.pipeline_mode<synchronous>, transform_indices = @transform_6, window_bounds = array<i64: 1, 500>}, {pipeline_mode = #tpu.pipeline_mode<synchronous>, transform_indices = @transform_7, window_bounds = array<i64: 500, 400>}, {pipeline_mode = #tpu.pipeline_mode<synchronous>, transform_indices = @transform_8, window_bounds = array<i64: 1, 400>}, {pipeline_mode = #tpu.pipeline_mode<synchronous>, transform_indices = @transform_9, window_bounds = array<i64: 400, 1>}, {pipeline_mode = #tpu.pipeline_mode<synchronous>, transform_indices = @transform_10, window_bounds = array<i64: 1, 1>}, {transform_indices = @transform_11, window_bounds = array<i64: 256, 1>}]} {
    %c0 = arith.constant 0 : index
    %c0_0 = arith.constant 0 : index
    %0 = vector.load %arg1[%c0, %c0_0] : memref<256x32xbf16, #tpu.memory_space<vmem>>, vector<256x32xbf16>
    %c0_1 = arith.constant 0 : index
    %c0_2 = arith.constant 0 : index
    %1 = vector.load %arg2[%c0_1, %c0_2] : memref<32x300xbf16, #tpu.memory_space<vmem>>, vector<32x300xbf16>
    %cst = arith.constant dense<0.000000e+00> : vector<256x300xf32>
    %2 = tpu.matmul %0, %1, %cst {dimension_numbers = #tpu.dot_dimension_numbers<[1], [0], [0], [1], [0, 0, 1, 1], [], []>} : vector<256x32xbf16>, vector<32x300xbf16>, vector<256x300xf32> -> vector<256x300xf32>
    %c0_3 = arith.constant 0 : index
    %c0_4 = arith.constant 0 : index
    %3 = vector.load %arg3[%c0_3, %c0_4] : memref<1x300xf32, #tpu.memory_space<vmem>>, vector<1x300xf32>
    %4 = vector.broadcast %3 : vector<1x300xf32> to vector<256x300xf32>
    %5 = arith.addf %2, %4 : vector<256x300xf32>
    %cst_5 = arith.constant 0.000000e+00 : f32
    %6 = vector.broadcast %cst_5 : f32 to vector<256x300xf32>
    %7 = arith.maximumf %5, %6 : vector<256x300xf32>
    %8 = arith.truncf %7 : vector<256x300xf32> to vector<256x300xbf16>
    %c0_6 = arith.constant 0 : index
    %c0_7 = arith.constant 0 : index
    %9 = vector.load %arg4[%c0_6, %c0_7] : memref<300x400xbf16, #tpu.memory_space<vmem>>, vector<300x400xbf16>
    %cst_8 = arith.constant dense<0.000000e+00> : vector<256x400xf32>
    %10 = tpu.matmul %8, %9, %cst_8 {dimension_numbers = #tpu.dot_dimension_numbers<[1], [0], [0], [1], [0, 0, 1, 1], [], []>} : vector<256x300xbf16>, vector<300x400xbf16>, vector<256x400xf32> -> vector<256x400xf32>
    %c0_9 = arith.constant 0 : index
    %c0_10 = arith.constant 0 : index
    %11 = vector.load %arg5[%c0_9, %c0_10] : memref<1x400xf32, #tpu.memory_space<vmem>>, vector<1x400xf32>
    %12 = vector.broadcast %11 : vector<1x400xf32> to vector<256x400xf32>
    %13 = arith.addf %10, %12 : vector<256x400xf32>
    %cst_11 = arith.constant 0.000000e+00 : f32
    %14 = vector.broadcast %cst_11 : f32 to vector<256x400xf32>
    %15 = arith.maximumf %13, %14 : vector<256x400xf32>
    %16 = arith.truncf %15 : vector<256x400xf32> to vector<256x400xbf16>
    %c0_12 = arith.constant 0 : index
    %c0_13 = arith.constant 0 : index
    %17 = vector.load %arg6[%c0_12, %c0_13] : memref<400x500xbf16, #tpu.memory_space<vmem>>, vector<400x500xbf16>
    %cst_14 = arith.constant dense<0.000000e+00> : vector<256x500xf32>
    %18 = tpu.matmul %16, %17, %cst_14 {dimension_numbers = #tpu.dot_dimension_numbers<[1], [0], [0], [1], [0, 0, 1, 1], [], []>} : vector<256x400xbf16>, vector<400x500xbf16>, vector<256x500xf32> -> vector<256x500xf32>
    %c0_15 = arith.constant 0 : index
    %c0_16 = arith.constant 0 : index
    %19 = vector.load %arg7[%c0_15, %c0_16] : memref<1x500xf32, #tpu.memory_space<vmem>>, vector<1x500xf32>
    %20 = vector.broadcast %19 : vector<1x500xf32> to vector<256x500xf32>
    %21 = arith.addf %18, %20 : vector<256x500xf32>
    %cst_17 = arith.constant 0.000000e+00 : f32
    %22 = vector.broadcast %cst_17 : f32 to vector<256x500xf32>
    %23 = arith.maximumf %21, %22 : vector<256x500xf32>
    %24 = arith.truncf %23 : vector<256x500xf32> to vector<256x500xbf16>
    %c0_18 = arith.constant 0 : index
    %c0_19 = arith.constant 0 : index
    %25 = vector.load %arg8[%c0_18, %c0_19] : memref<500x400xbf16, #tpu.memory_space<vmem>>, vector<500x400xbf16>
    %cst_20 = arith.constant dense<0.000000e+00> : vector<256x400xf32>
    %26 = tpu.matmul %24, %25, %cst_20 {dimension_numbers = #tpu.dot_dimension_numbers<[1], [0], [0], [1], [0, 0, 1, 1], [], []>} : vector<256x500xbf16>, vector<500x400xbf16>, vector<256x400xf32> -> vector<256x400xf32>
    %c0_21 = arith.constant 0 : index
    %c0_22 = arith.constant 0 : index
    %27 = vector.load %arg9[%c0_21, %c0_22] : memref<1x400xf32, #tpu.memory_space<vmem>>, vector<1x400xf32>
    %28 = vector.broadcast %27 : vector<1x400xf32> to vector<256x400xf32>
    %29 = arith.addf %26, %28 : vector<256x400xf32>
    %cst_23 = arith.constant 0.000000e+00 : f32
    %30 = vector.broadcast %cst_23 : f32 to vector<256x400xf32>
    %31 = arith.maximumf %29, %30 : vector<256x400xf32>
    %32 = arith.truncf %31 : vector<256x400xf32> to vector<256x400xbf16>
    %c0_24 = arith.constant 0 : index
    %c0_25 = arith.constant 0 : index
    %33 = vector.load %arg10[%c0_24, %c0_25] : memref<400x1xbf16, #tpu.memory_space<vmem>>, vector<400x1xbf16>
    %cst_26 = arith.constant dense<0.000000e+00> : vector<256x1xf32>
    %34 = tpu.matmul %32, %33, %cst_26 {dimension_numbers = #tpu.dot_dimension_numbers<[1], [0], [0], [1], [0, 0, 1, 1], [], []>} : vector<256x400xbf16>, vector<400x1xbf16>, vector<256x1xf32> -> vector<256x1xf32>
    %c0_27 = arith.constant 0 : index
    %c0_28 = arith.constant 0 : index
    %35 = vector.load %arg11[%c0_27, %c0_28] : memref<1x1xf32, #tpu.memory_space<vmem>>, vector<1x1xf32>
    %36 = vector.broadcast %35 : vector<1x1xf32> to vector<256x1xf32>
    %37 = arith.addf %34, %36 : vector<256x1xf32>
    %c0_29 = arith.constant 0 : index
    %c0_30 = arith.constant 0 : index
    %38 = vector.load %arg12[%c0_29, %c0_30] : memref<256x1xf32, #tpu.memory_space<vmem>>, vector<256x1xf32>
    tpu.vector_store %arg12[%c0_29, %c0_30], %37 {strides = array<i32>} : memref<256x1xf32, #tpu.memory_space<vmem>>, vector<256x1xf32>,
    return
  }
  func.func @transform_0(%arg0: i32) -> (i32, i32) {
    %c0_i32 = arith.constant 0 : i32
    %c0_i32_0 = arith.constant 0 : i32
    return %arg0, %c0_i32 : i32, i32
  }
  func.func @transform_1(%arg0: i32) -> (i32, i32) {
    %c0_i32 = arith.constant 0 : i32
    %c0_i32_0 = arith.constant 0 : i32
    %c0_i32_1 = arith.constant 0 : i32
    return %c0_i32, %c0_i32_0 : i32, i32
  }
  func.func @transform_2(%arg0: i32) -> (i32, i32) {
    %c0_i32 = arith.constant 0 : i32
    %c0_i32_0 = arith.constant 0 : i32
    %c0_i32_1 = arith.constant 0 : i32
    return %c0_i32, %c0_i32_0 : i32, i32
  }
  func.func @transform_3(%arg0: i32) -> (i32, i32) {
    %c0_i32 = arith.constant 0 : i32
    %c0_i32_0 = arith.constant 0 : i32
    %c0_i32_1 = arith.constant 0 : i32
    return %c0_i32, %c0_i32_0 : i32, i32
  }
  func.func @transform_4(%arg0: i32) -> (i32, i32) {
    %c0_i32 = arith.constant 0 : i32
    %c0_i32_0 = arith.constant 0 : i32
    %c0_i32_1 = arith.constant 0 : i32
    return %c0_i32, %c0_i32_0 : i32, i32
  }
  func.func @transform_5(%arg0: i32) -> (i32, i32) {
    %c0_i32 = arith.constant 0 : i32
    %c0_i32_0 = arith.constant 0 : i32
    %c0_i32_1 = arith.constant 0 : i32
    return %c0_i32, %c0_i32_0 : i32, i32
  }
  func.func @transform_6(%arg0: i32) -> (i32, i32) {
    %c0_i32 = arith.constant 0 : i32
    %c0_i32_0 = arith.constant 0 : i32
    %c0_i32_1 = arith.constant 0 : i32
    return %c0_i32, %c0_i32_0 : i32, i32
  }
  func.func @transform_7(%arg0: i32) -> (i32, i32) {
    %c0_i32 = arith.constant 0 : i32
    %c0_i32_0 = arith.constant 0 : i32
    %c0_i32_1 = arith.constant 0 : i32
    return %c0_i32, %c0_i32_0 : i32, i32
  }
  func.func @transform_8(%arg0: i32) -> (i32, i32) {
    %c0_i32 = arith.constant 0 : i32
    %c0_i32_0 = arith.constant 0 : i32
    %c0_i32_1 = arith.constant 0 : i32
    return %c0_i32, %c0_i32_0 : i32, i32
  }
  func.func @transform_9(%arg0: i32) -> (i32, i32) {
    %c0_i32 = arith.constant 0 : i32
    %c0_i32_0 = arith.constant 0 : i32
    %c0_i32_1 = arith.constant 0 : i32
    return %c0_i32, %c0_i32_0 : i32, i32
  }
  func.func @transform_10(%arg0: i32) -> (i32, i32) {
    %c0_i32 = arith.constant 0 : i32
    %c0_i32_0 = arith.constant 0 : i32
    %c0_i32_1 = arith.constant 0 : i32
    return %c0_i32, %c0_i32_0 : i32, i32
  }
  func.func @transform_11(%arg0: i32) -> (i32, i32) {
    %c0_i32 = arith.constant 0 : i32
    %c0_i32_0 = arith.constant 0 : i32
    return %arg0, %c0_i32 : i32, i32
  }
}

</mosaic_0001>

<llo_original>
// kernel: tpu_custom_call.1
$region0: #{tpu_custom_call.1}
  #allocation0 [shape = 'u32[]', space=smem, size = 0x4, offset = 0x4, fixed_abs, tag = 'smem constant byte address 0x4 - core index']
  #allocation1 [shape = 'u32[144,128]{1,0:T(1,128)}', space=vmem, size = 0x12000, scoped, tag = 'internal scratch']
  #allocation2 [shape = 'f32[1,1]{1,0:T(1,128)S(1)}', space=vmem, size = 0x200, scoped, tag = 'scoped memory for tpu_custom_call.1']
  %s0 = inlined_call_operand.vmem [shape: bf16[256,32], index: 0, kind: input, shape index: {}]
  %s1 = inlined_call_operand.vmem [shape: bf16[32,300], index: 1, kind: input, shape index: {}]
  %s2 = inlined_call_operand.vmem [shape: f32[1,300], index: 2, kind: input, shape index: {}]
  %s3 = inlined_call_operand.vmem [shape: bf16[300,400], index: 3, kind: input, shape index: {}]
  %s4 = inlined_call_operand.vmem [shape: f32[1,400], index: 4, kind: input, shape index: {}]
  %s5 = inlined_call_operand.vmem [shape: bf16[400,500], index: 5, kind: input, shape index: {}]
  %s6 = inlined_call_operand.vmem [shape: f32[1,500], index: 6, kind: input, shape index: {}]
  %s7 = inlined_call_operand.vmem [shape: bf16[500,400], index: 7, kind: input, shape index: {}]
  %s8 = inlined_call_operand.vmem [shape: f32[1,400], index: 8, kind: input, shape index: {}]
  %s9 = inlined_call_operand.vmem [shape: bf16[400,1], index: 9, kind: input, shape index: {}]
  %s10 = inlined_call_operand.<no memory space> [shape: f32[1,1], index: 10, kind: input, shape index: {}]
  %s11 = inlined_call_operand.vmem [shape: f32[256,1], index: 11, kind: output, shape index: {}]
  %s12 = sld [smem:[#allocation0]]
  $region54: #{tpu_custom_call.1} parent=0
    _
  %s14 = ssub.s32 1, %s12
  %s15 = scalar_select 0, %s14, %s12
  %v16 = vstv %s10
  %17 = vst [vmem:[#allocation2] sm:$0x1] %v16
  // Predicated region
  $region2: #{tpu_custom_call.1} parent=0 // pred_check
    _
  $region3: #{tpu_custom_call.1} parent=0 // pred_check_branch
    %19 = sbr.rel (0) target = $region5
  $region4: #{tpu_custom_call.1} parent=0 // pred_region
    _
  $region5: #{tpu_custom_call.1} parent=0 // pred_fallthru
    _
  // Predicated region
  $region6: #{tpu_custom_call.1} parent=0 // pred_check
    _
  $region7: #{tpu_custom_call.1} parent=0 // pred_check_branch
    %21 = sbr.rel (0) target = $region9
  $region8: #{tpu_custom_call.1} parent=0 // pred_region
    _
  $region9: #{tpu_custom_call.1} parent=0 // pred_fallthru
    _
  // Predicated region
  $region10: #{tpu_custom_call.1} parent=0 // pred_check
    _
  $region11: #{tpu_custom_call.1} parent=0 // pred_check_branch
    %23 = sbr.rel (0) target = $region13
  $region12: #{tpu_custom_call.1} parent=0 // pred_region
    _
  $region13: #{tpu_custom_call.1} parent=0 // pred_fallthru
    _
  // Predicated region
  $region14: #{tpu_custom_call.1} parent=0 // pred_check
    _
  $region15: #{tpu_custom_call.1} parent=0 // pred_check_branch
    %25 = sbr.rel (0) target = $region17
  $region16: #{tpu_custom_call.1} parent=0 // pred_region
    _
  $region17: #{tpu_custom_call.1} parent=0 // pred_fallthru
    _
  // Predicated region
  $region18: #{tpu_custom_call.1} parent=0 // pred_check
    _
  $region19: #{tpu_custom_call.1} parent=0 // pred_check_branch
    %27 = sbr.rel (0) target = $region21
  $region20: #{tpu_custom_call.1} parent=0 // pred_region
    _
  $region21: #{tpu_custom_call.1} parent=0 // pred_fallthru
    _
  // Predicated region
  $region22: #{tpu_custom_call.1} parent=0 // pred_check
    _
  $region23: #{tpu_custom_call.1} parent=0 // pred_check_branch
    %29 = sbr.rel (0) target = $region25
  $region24: #{tpu_custom_call.1} parent=0 // pred_region
    _
  $region25: #{tpu_custom_call.1} parent=0 // pred_fallthru
    _
  // Predicated region
  $region26: #{tpu_custom_call.1} parent=0 // pred_check
    _
  $region27: #{tpu_custom_call.1} parent=0 // pred_check_branch
    %31 = sbr.rel (0) target = $region29
  $region28: #{tpu_custom_call.1} parent=0 // pred_region
    _
  $region29: #{tpu_custom_call.1} parent=0 // pred_fallthru
    _
  // Predicated region
  $region30: #{tpu_custom_call.1} parent=0 // pred_check
    _
  $region31: #{tpu_custom_call.1} parent=0 // pred_check_branch
    %33 = sbr.rel (0) target = $region33
  $region32: #{tpu_custom_call.1} parent=0 // pred_region
    _
  $region33: #{tpu_custom_call.1} parent=0 // pred_fallthru
    _
  // Predicated region
  $region34: #{tpu_custom_call.1} parent=0 // pred_check
    _
  $region35: #{tpu_custom_call.1} parent=0 // pred_check_branch
    %35 = sbr.rel (0) target = $region37
  $region36: #{tpu_custom_call.1} parent=0 // pred_region
    _
  $region37: #{tpu_custom_call.1} parent=0 // pred_fallthru
    _
  // Predicated region
  $region38: #{tpu_custom_call.1} parent=0 // pred_check
    _
  $region39: #{tpu_custom_call.1} parent=0 // pred_check_branch
    %37 = sbr.rel (0) target = $region41
  $region40: #{tpu_custom_call.1} parent=0 // pred_region
    _
  $region41: #{tpu_custom_call.1} parent=0 // pred_fallthru
    _
  // Predicated region
  $region42: #{tpu_custom_call.1} parent=0 // pred_check
    _
  $region43: #{tpu_custom_call.1} parent=0 // pred_check_branch
    %39 = sbr.rel (0) target = $region45
  $region44: #{tpu_custom_call.1} parent=0 // pred_region
    _
  $region45: #{tpu_custom_call.1} parent=0 // pred_fallthru
    _
  %v41 = vld [vmem:[%s0] sm:$0xf]
  %v42 = vld [vmem:[%s0 + $0x4] sm:$0xf]
  %v43 = vld [vmem:[%s0 + $0x8] sm:$0xf]
  %v44 = vld [vmem:[%s0 + $0xc] sm:$0xf]
  %v45 = vld [vmem:[%s0 + $0x10] sm:$0xf]
  %v46 = vld [vmem:[%s0 + $0x14] sm:$0xf]
  %v47 = vld [vmem:[%s0 + $0x18] sm:$0xf]
  %v48 = vld [vmem:[%s0 + $0x1c] sm:$0xf]
  %v49 = vld [vmem:[%s0 + $0x20] sm:$0xf]
  %v50 = vld [vmem:[%s0 + $0x24] sm:$0xf]
  %v51 = vld [vmem:[%s0 + $0x28] sm:$0xf]
  %v52 = vld [vmem:[%s0 + $0x2c] sm:$0xf]
  %v53 = vld [vmem:[%s0 + $0x30] sm:$0xf]
  %v54 = vld [vmem:[%s0 + $0x34] sm:$0xf]
  %v55 = vld [vmem:[%s0 + $0x38] sm:$0xf]
  %v56 = vld [vmem:[%s0 + $0x3c] sm:$0xf]
  %v57 = vld [vmem:[%s0 + $0x40] sm:$0xf]
  %v58 = vld [vmem:[%s0 + $0x44] sm:$0xf]
  %v59 = vld [vmem:[%s0 + $0x48] sm:$0xf]
  %v60 = vld [vmem:[%s0 + $0x4c] sm:$0xf]
  %v61 = vld [vmem:[%s0 + $0x50] sm:$0xf]
  %v62 = vld [vmem:[%s0 + $0x54] sm:$0xf]
  %v63 = vld [vmem:[%s0 + $0x58] sm:$0xf]
  %v64 = vld [vmem:[%s0 + $0x5c] sm:$0xf]
  %v65 = vld [vmem:[%s0 + $0x60] sm:$0xf]
  %v66 = vld [vmem:[%s0 + $0x64] sm:$0xf]
  %v67 = vld [vmem:[%s0 + $0x68] sm:$0xf]
  %v68 = vld [vmem:[%s0 + $0x6c] sm:$0xf]
  %v69 = vld [vmem:[%s0 + $0x70] sm:$0xf]
  %v70 = vld [vmem:[%s0 + $0x74] sm:$0xf]
  %v71 = vld [vmem:[%s0 + $0x78] sm:$0xf]
  %v72 = vld [vmem:[%s0 + $0x7c] sm:$0xf]
  %v73 = vld [vmem:[%s1] sm:$0xff]
  %v74 = vld [vmem:[%s1 + $0x8] sm:$0xf]
  %v75 = vld [vmem:[%s1 + $0xc] sm:$0xff]
  %v76 = vld [vmem:[%s1 + $0x14] sm:$0xf]
  %v77 = vld [vmem:[%s1 + $0x18] sm:$0xff]
  %v78 = vld [vmem:[%s1 + $0x20] sm:$0xf]
  %v79 = vld [vmem:[%s1 + $0x24] sm:$0xff]
  %v80 = vld [vmem:[%s1 + $0x2c] sm:$0xf]
  %v81 = vld [vmem:[%s2] sm:$0x7]
  %v83 = vlaneseq
  %v84 = vshrl.u32 %v83, 7
  %v85 = vsub.s32 0, %v84
  %v86 = vrot.slane %v81, %v85
  %v87 = vlaneseq
  %v88 = vshrl.u32 %v87, 7
  %v89 = vsub.s32 1, %v88
  %v90 = vrot.slane %v81, %v89
  %v91 = vlaneseq
  %v92 = vshrl.u32 %v91, 7
  %v93 = vsub.s32 2, %v92
  %v94 = vrot.slane %v81, %v93
  %v130 = vunpack.c.l.b16 %v41
  %v131 = vunpack.c.l.b16 %v42
  %v132 = vunpack.c.l.b16 %v43
  %v133 = vunpack.c.l.b16 %v44
  %v134 = vunpack.c.l.b16 %v45
  %v135 = vunpack.c.l.b16 %v46
  %v136 = vunpack.c.l.b16 %v47
  %v137 = vunpack.c.l.b16 %v48
  %v138 = vunpack.c.l.b16 %v49
  %v139 = vunpack.c.l.b16 %v50
  %v140 = vunpack.c.l.b16 %v51
  %v141 = vunpack.c.l.b16 %v52
  %v142 = vunpack.c.l.b16 %v53
  %v143 = vunpack.c.l.b16 %v54
  %v144 = vunpack.c.l.b16 %v55
  %v145 = vunpack.c.l.b16 %v56
  %v146 = vunpack.c.l.b16 %v57
  %v147 = vunpack.c.l.b16 %v58
  %v148 = vunpack.c.l.b16 %v59
  %v149 = vunpack.c.l.b16 %v60
  %v150 = vunpack.c.l.b16 %v61
  %v151 = vunpack.c.l.b16 %v62
  %v152 = vunpack.c.l.b16 %v63
  %v153 = vunpack.c.l.b16 %v64
  %v154 = vunpack.c.l.b16 %v65
  %v155 = vunpack.c.l.b16 %v66
  %v156 = vunpack.c.l.b16 %v67
  %v157 = vunpack.c.l.b16 %v68
  %v158 = vunpack.c.l.b16 %v69
  %v159 = vunpack.c.l.b16 %v70
  %v160 = vunpack.c.l.b16 %v71
  %v161 = vunpack.c.l.b16 %v72
  %v162 = vpack.c.b16 %v131, %v130
  %v163 = vpack.c.b16 %v133, %v132
  %v164 = vpack.c.b16 %v135, %v134
  %v165 = vpack.c.b16 %v137, %v136
  %v166 = vpack.c.b16 %v139, %v138
  %v167 = vpack.c.b16 %v141, %v140
  %v168 = vpack.c.b16 %v143, %v142
  %v169 = vpack.c.b16 %v145, %v144
  %v170 = vpack.c.b16 %v147, %v146
  %v171 = vpack.c.b16 %v149, %v148
  %v172 = vpack.c.b16 %v151, %v150
  %v173 = vpack.c.b16 %v153, %v152
  %v174 = vpack.c.b16 %v155, %v154
  %v175 = vpack.c.b16 %v157, %v156
  %v176 = vpack.c.b16 %v159, %v158
  %v177 = vpack.c.b16 %v161, %v160
  %v186 = vunpack.c.l.b16 %v73
  %v187 = vunpack.c.h.b16 %v73
  %v188 = vunpack.c.l.b16 %v74
  %v189 = vunpack.c.l.b16 %v75
  %v190 = vunpack.c.h.b16 %v75
  %v191 = vunpack.c.l.b16 %v76
  %v192 = vunpack.c.l.b16 %v77
  %v193 = vunpack.c.h.b16 %v77
  %v194 = vunpack.c.l.b16 %v78
  %v195 = vunpack.c.l.b16 %v79
  %v196 = vunpack.c.h.b16 %v79
  %v197 = vunpack.c.l.b16 %v80
  %v198 = vpack.c.b16 %v189, %v186
  %v199 = vpack.c.b16 %v190, %v187
  %v200 = vpack.c.b16 %v191, %v188
  %v201 = vpack.c.b16 %v195, %v192
  %v202 = vpack.c.b16 %v196, %v193
  %v203 = vpack.c.b16 %v197, %v194
  %vm210 = vcmask 261120
  %v212 = vsel %vm210, %v162, 0
  %v215 = vsel %vm210, %v163, 0
  %v218 = vsel %vm210, %v164, 0
  %v221 = vsel %vm210, %v165, 0
  %v224 = vsel %vm210, %v166, 0
  %v227 = vsel %vm210, %v167, 0
  %v230 = vsel %vm210, %v168, 0
  %v233 = vsel %vm210, %v169, 0
  %v236 = vsel %vm210, %v170, 0
  %v239 = vsel %vm210, %v171, 0
  %v242 = vsel %vm210, %v172, 0
  %v245 = vsel %vm210, %v173, 0
  %v248 = vsel %vm210, %v174, 0
  %v251 = vsel %vm210, %v175, 0
  %v254 = vsel %vm210, %v176, 0
  %v257 = vsel %vm210, %v177, 0
  %259 = vmatprep.subr.bf16.mxu0 %v199
  %260 = vmatpush1.bf16.msra.mxu0 %v198
  %261 = vmatprep.subr.bf16.mxu0 %v202
  %262 = vmatpush1.bf16.msra.mxu0 %v201
  %263 = vmatprep.subr.bf16.mxu0 0
  %264 = vmatpush1.bf16.msra.mxu0 0
  %265 = vmatprep.subr.bf16.mxu0 0
  %266 = vmatpush1.bf16.msra.mxu0 0
  %267 = vmatprep.subr.bf16.mxu0 0
  %268 = vmatpush1.bf16.msra.mxu0 0
  %269 = vmatprep.subr.bf16.mxu0 0
  %270 = vmatpush1.bf16.msra.mxu0 0
  %271 = vmatprep.subr.bf16.mxu0 0
  %272 = vmatpush1.bf16.msra.mxu0 0
  %273 = vmatprep.subr.bf16.mxu0 0
  %274 = vmatpush1.bf16.msra.mxu0 0
  %275 = vmatprep.subr.bf16.mxu0 0
  %276 = vmatpush1.bf16.msra.mxu0 0
  %277 = vmatprep.subr.bf16.mxu0 0
  %278 = vmatpush1.bf16.msra.mxu0 0
  %279 = vmatprep.subr.bf16.mxu0 0
  %280 = vmatpush1.bf16.msra.mxu0 0
  %281 = vmatprep.subr.bf16.mxu0 0
  %282 = vmatpush1.bf16.msra.mxu0 0
  %283 = vmatprep.subr.bf16.mxu0 0
  %284 = vmatpush1.bf16.msra.mxu0 0
  %285 = vmatprep.subr.bf16.mxu0 0
  %286 = vmatpush1.bf16.msra.mxu0 0
  %287 = vmatprep.subr.bf16.mxu0 0
  %288 = vmatpush1.bf16.msra.mxu0 0
  %289 = vmatprep.subr.bf16.mxu0 0
  %290 = vmatpush1.bf16.msra.mxu0 0
  %291 = vmatprep.mubr.bf16.mxu0 0
  %292 = vmatmul.mubr.bf16.gmra.mrb[0].mxu0 %v212
  %v293 = vpop.f32.mrb[0].mxu0
  %v294 = vadd.f32 %v86, %v293
  %v295 = vpop.f32.mrb[0].mxu0
  %v296 = vadd.f32 %v90, %v295
  %v297 = vpop.f32.mrb[0].mxu0
  %v298 = vadd.f32 %v86, %v297
  %v299 = vpop.f32.mrb[0].mxu0
  %v300 = vadd.f32 %v90, %v299
  %301 = vmatprep.mubr.bf16.mxu0 0
  %302 = vmatmul.mubr.bf16.gmra.mrb[0].mxu0 %v215
  %v303 = vpop.f32.mrb[0].mxu0
  %v304 = vadd.f32 %v86, %v303
  %v305 = vpop.f32.mrb[0].mxu0
  %v306 = vadd.f32 %v90, %v305
  %v307 = vpop.f32.mrb[0].mxu0
  %v308 = vadd.f32 %v86, %v307
  %v309 = vpop.f32.mrb[0].mxu0
  %v310 = vadd.f32 %v90, %v309
  %311 = vmatprep.mubr.bf16.mxu0 0
  %312 = vmatmul.mubr.bf16.gmra.mrb[0].mxu0 %v218
  %v313 = vpop.f32.mrb[0].mxu0
  %v314 = vadd.f32 %v86, %v313
  %v315 = vpop.f32.mrb[0].mxu0
  %v316 = vadd.f32 %v90, %v315
  %v317 = vpop.f32.mrb[0].mxu0
  %v318 = vadd.f32 %v86, %v317
  %v319 = vpop.f32.mrb[0].mxu0
  %v320 = vadd.f32 %v90, %v319
  %321 = vmatprep.mubr.bf16.mxu0 0
  %322 = vmatmul.mubr.bf16.gmra.mrb[0].mxu0 %v221
  %v323 = vpop.f32.mrb[0].mxu0
  %v324 = vadd.f32 %v86, %v323
  %v325 = vpop.f32.mrb[0].mxu0
  %v326 = vadd.f32 %v90, %v325
  %v327 = vpop.f32.mrb[0].mxu0
  %v328 = vadd.f32 %v86, %v327
  %v329 = vpop.f32.mrb[0].mxu0
  %v330 = vadd.f32 %v90, %v329
  %331 = vmatprep.mubr.bf16.mxu0 0
  %332 = vmatmul.mubr.bf16.gmra.mrb[0].mxu0 %v224
  %v333 = vpop.f32.mrb[0].mxu0
  %v334 = vadd.f32 %v86, %v333
  %v335 = vpop.f32.mrb[0].mxu0
  %v336 = vadd.f32 %v90, %v335
  %v337 = vpop.f32.mrb[0].mxu0
  %v338 = vadd.f32 %v86, %v337
  %v339 = vpop.f32.mrb[0].mxu0
  %v340 = vadd.f32 %v90, %v339
  %341 = vmatprep.mubr.bf16.mxu0 0
  %342 = vmatmul.mubr.bf16.gmra.mrb[0].mxu0 %v227
  %v343 = vpop.f32.mrb[0].mxu0
  %v344 = vadd.f32 %v86, %v343
  %v345 = vpop.f32.mrb[0].mxu0
  %v346 = vadd.f32 %v90, %v345
  %v347 = vpop.f32.mrb[0].mxu0
  %v348 = vadd.f32 %v86, %v347
  %v349 = vpop.f32.mrb[0].mxu0
  %v350 = vadd.f32 %v90, %v349
  %351 = vmatprep.mubr.bf16.mxu0 0
  %352 = vmatmul.mubr.bf16.gmra.mrb[0].mxu0 %v230
  %v353 = vpop.f32.mrb[0].mxu0
  %v354 = vadd.f32 %v86, %v353
  %v355 = vpop.f32.mrb[0].mxu0
  %v356 = vadd.f32 %v90, %v355
  %v357 = vpop.f32.mrb[0].mxu0
  %v358 = vadd.f32 %v86, %v357
  %v359 = vpop.f32.mrb[0].mxu0
  %v360 = vadd.f32 %v90, %v359
  %361 = vmatprep.mubr.bf16.mxu0 0
  %362 = vmatmul.mubr.bf16.gmra.mrb[0].mxu0 %v233
  %v363 = vpop.f32.mrb[0].mxu0
  %v364 = vadd.f32 %v86, %v363
  %v365 = vpop.f32.mrb[0].mxu0
  %v366 = vadd.f32 %v90, %v365
  %v367 = vpop.f32.mrb[0].mxu0
  %v368 = vadd.f32 %v86, %v367
  %v369 = vpop.f32.mrb[0].mxu0
  %v370 = vadd.f32 %v90, %v369
  %371 = vmatprep.mubr.bf16.mxu0 0
  %372 = vmatmul.mubr.bf16.gmra.mrb[0].mxu0 %v236
  %v373 = vpop.f32.mrb[0].mxu0
  %v374 = vadd.f32 %v86, %v373
  %v375 = vpop.f32.mrb[0].mxu0
  %v376 = vadd.f32 %v90, %v375
  %v377 = vpop.f32.mrb[0].mxu0
  %v378 = vadd.f32 %v86, %v377
  %v379 = vpop.f32.mrb[0].mxu0
  %v380 = vadd.f32 %v90, %v379
  %381 = vmatprep.mubr.bf16.mxu0 0
  %382 = vmatmul.mubr.bf16.gmra.mrb[0].mxu0 %v239
  %v383 = vpop.f32.mrb[0].mxu0
  %v384 = vadd.f32 %v86, %v383
  %v385 = vpop.f32.mrb[0].mxu0
  %v386 = vadd.f32 %v90, %v385
  %v387 = vpop.f32.mrb[0].mxu0
  %v388 = vadd.f32 %v86, %v387
  %v389 = vpop.f32.mrb[0].mxu0
  %v390 = vadd.f32 %v90, %v389
  %391 = vmatprep.mubr.bf16.mxu0 0
  %392 = vmatmul.mubr.bf16.gmra.mrb[0].mxu0 %v242
  %v393 = vpop.f32.mrb[0].mxu0
  %v394 = vadd.f32 %v86, %v393
  %v395 = vpop.f32.mrb[0].mxu0
  %v396 = vadd.f32 %v90, %v395
  %v397 = vpop.f32.mrb[0].mxu0
  %v398 = vadd.f32 %v86, %v397
  %v399 = vpop.f32.mrb[0].mxu0
  %v400 = vadd.f32 %v90, %v399
  %401 = vmatprep.mubr.bf16.mxu0 0
  %402 = vmatmul.mubr.bf16.gmra.mrb[0].mxu0 %v245
  %v403 = vpop.f32.mrb[0].mxu0
  %v404 = vadd.f32 %v86, %v403
  %v405 = vpop.f32.mrb[0].mxu0
  %v406 = vadd.f32 %v90, %v405
  %v407 = vpop.f32.mrb[0].mxu0
  %v408 = vadd.f32 %v86, %v407
  %v409 = vpop.f32.mrb[0].mxu0
  %v410 = vadd.f32 %v90, %v409
  %411 = vmatprep.mubr.bf16.mxu0 0
  %412 = vmatmul.mubr.bf16.gmra.mrb[0].mxu0 %v248
  %v413 = vpop.f32.mrb[0].mxu0
  %v414 = vadd.f32 %v86, %v413
  %v415 = vpop.f32.mrb[0].mxu0
  %v416 = vadd.f32 %v90, %v415
  %v417 = vpop.f32.mrb[0].mxu0
  %v418 = vadd.f32 %v86, %v417
  %v419 = vpop.f32.mrb[0].mxu0
  %v420 = vadd.f32 %v90, %v419
  %421 = vmatprep.mubr.bf16.mxu0 0
  %422 = vmatmul.mubr.bf16.gmra.mrb[0].mxu0 %v251
  %v423 = vpop.f32.mrb[0].mxu0
  %v424 = vadd.f32 %v86, %v423
  %v425 = vpop.f32.mrb[0].mxu0
  %v426 = vadd.f32 %v90, %v425
  %v427 = vpop.f32.mrb[0].mxu0
  %v428 = vadd.f32 %v86, %v427
  %v429 = vpop.f32.mrb[0].mxu0
  %v430 = vadd.f32 %v90, %v429
  %431 = vmatprep.mubr.bf16.mxu0 0
  %432 = vmatmul.mubr.bf16.gmra.mrb[0].mxu0 %v254
  %v433 = vpop.f32.mrb[0].mxu0
  %v434 = vadd.f32 %v86, %v433
  %v435 = vpop.f32.mrb[0].mxu0
  %v436 = vadd.f32 %v90, %v435
  %v437 = vpop.f32.mrb[0].mxu0
  %v438 = vadd.f32 %v86, %v437
  %v439 = vpop.f32.mrb[0].mxu0
  %v440 = vadd.f32 %v90, %v439
  %441 = vmatprep.mubr.bf16.mxu0 0
  %442 = vmatmul.mubr.bf16.gmra.mrb[0].mxu0 %v257
  %v443 = vpop.f32.mrb[0].mxu0
  %v444 = vadd.f32 %v86, %v443
  %v445 = vpop.f32.mrb[0].mxu0
  %v446 = vadd.f32 %v90, %v445
  %v447 = vpop.f32.mrb[0].mxu0
  %v448 = vadd.f32 %v86, %v447
  %v449 = vpop.f32.mrb[0].mxu0
  %v450 = vadd.f32 %v90, %v449
  %451 = vdwg.mxu0
  %452 = vmatprep.subr.bf16.mxu0 0
  %453 = vmatpush1.bf16.msra.mxu0 %v200
  %454 = vmatprep.subr.bf16.mxu0 0
  %455 = vmatpush1.bf16.msra.mxu0 %v203
  %456 = vmatprep.subr.bf16.mxu0 0
  %457 = vmatpush1.bf16.msra.mxu0 0
  %458 = vmatprep.subr.bf16.mxu0 0
  %459 = vmatpush1.bf16.msra.mxu0 0
  %460 = vmatprep.subr.bf16.mxu0 0
  %461 = vmatpush1.bf16.msra.mxu0 0
  %462 = vmatprep.subr.bf16.mxu0 0
  %463 = vmatpush1.bf16.msra.mxu0 0
  %464 = vmatprep.subr.bf16.mxu0 0
  %465 = vmatpush1.bf16.msra.mxu0 0
  %466 = vmatprep.subr.bf16.mxu0 0
  %467 = vmatpush1.bf16.msra.mxu0 0
  %468 = vmatprep.subr.bf16.mxu0 0
  %469 = vmatpush1.bf16.msra.mxu0 0
  %470 = vmatprep.subr.bf16.mxu0 0
  %471 = vmatpush1.bf16.msra.mxu0 0
  %472 = vmatprep.subr.bf16.mxu0 0
  %473 = vmatpush1.bf16.msra.mxu0 0
  %474 = vmatprep.subr.bf16.mxu0 0
  %475 = vmatpush1.bf16.msra.mxu0 0
  %476 = vmatprep.subr.bf16.mxu0 0
  %477 = vmatpush1.bf16.msra.mxu0 0
  %478 = vmatprep.subr.bf16.mxu0 0
  %479 = vmatpush1.bf16.msra.mxu0 0
  %480 = vmatprep.subr.bf16.mxu0 0
  %481 = vmatpush1.bf16.msra.mxu0 0
  %482 = vmatprep.subr.bf16.mxu0 0
  %483 = vmatpush1.bf16.msra.mxu0 0
  %484 = vmatprep.mubr.bf16.mxu0 0
  %485 = vmatmul.mubr.bf16.gmra.mrb[0].mxu0 %v212
  %v486 = vpop.f32.mrb[0].mxu0
  %v487 = vadd.f32 %v94, %v486
  %v488 = vpop.f32.mrb[0].mxu0
  %v489 = vpop.f32.mrb[0].mxu0
  %v490 = vadd.f32 %v94, %v489
  %v491 = vpop.f32.mrb[0].mxu0
  %492 = vmatprep.mubr.bf16.mxu0 0
  %493 = vmatmul.mubr.bf16.gmra.mrb[0].mxu0 %v215
  %v494 = vpop.f32.mrb[0].mxu0
  %v495 = vadd.f32 %v94, %v494
  %v496 = vpop.f32.mrb[0].mxu0
  %v497 = vpop.f32.mrb[0].mxu0
  %v498 = vadd.f32 %v94, %v497
  %v499 = vpop.f32.mrb[0].mxu0
  %500 = vmatprep.mubr.bf16.mxu0 0
  %501 = vmatmul.mubr.bf16.gmra.mrb[0].mxu0 %v218
  %v502 = vpop.f32.mrb[0].mxu0
  %v503 = vadd.f32 %v94, %v502
  %v504 = vpop.f32.mrb[0].mxu0
  %v505 = vpop.f32.mrb[0].mxu0
  %v506 = vadd.f32 %v94, %v505
  %v507 = vpop.f32.mrb[0].mxu0
  %508 = vmatprep.mubr.bf16.mxu0 0
  %509 = vmatmul.mubr.bf16.gmra.mrb[0].mxu0 %v221
  %v510 = vpop.f32.mrb[0].mxu0
  %v511 = vadd.f32 %v94, %v510
  %v512 = vpop.f32.mrb[0].mxu0
  %v513 = vpop.f32.mrb[0].mxu0
  %v514 = vadd.f32 %v94, %v513
  %v515 = vpop.f32.mrb[0].mxu0
  %516 = vmatprep.mubr.bf16.mxu0 0
  %517 = vmatmul.mubr.bf16.gmra.mrb[0].mxu0 %v224
  %v518 = vpop.f32.mrb[0].mxu0
  %v519 = vadd.f32 %v94, %v518
  %v520 = vpop.f32.mrb[0].mxu0
  %v521 = vpop.f32.mrb[0].mxu0
  %v522 = vadd.f32 %v94, %v521
  %v523 = vpop.f32.mrb[0].mxu0
  %524 = vmatprep.mubr.bf16.mxu0 0
  %525 = vmatmul.mubr.bf16.gmra.mrb[0].mxu0 %v227
  %v526 = vpop.f32.mrb[0].mxu0
  %v527 = vadd.f32 %v94, %v526
  %v528 = vpop.f32.mrb[0].mxu0
  %v529 = vpop.f32.mrb[0].mxu0
  %v530 = vadd.f32 %v94, %v529
  %v531 = vpop.f32.mrb[0].mxu0
  %532 = vmatprep.mubr.bf16.mxu0 0
  %533 = vmatmul.mubr.bf16.gmra.mrb[0].mxu0 %v230
  %v534 = vpop.f32.mrb[0].mxu0
  %v535 = vadd.f32 %v94, %v534
  %v536 = vpop.f32.mrb[0].mxu0
  %v537 = vpop.f32.mrb[0].mxu0
  %v538 = vadd.f32 %v94, %v537
  %v539 = vpop.f32.mrb[0].mxu0
  %540 = vmatprep.mubr.bf16.mxu0 0
  %541 = vmatmul.mubr.bf16.gmra.mrb[0].mxu0 %v233
  %v542 = vpop.f32.mrb[0].mxu0
  %v543 = vadd.f32 %v94, %v542
  %v544 = vpop.f32.mrb[0].mxu0
  %v545 = vpop.f32.mrb[0].mxu0
  %v546 = vadd.f32 %v94, %v545
  %v547 = vpop.f32.mrb[0].mxu0
  %548 = vmatprep.mubr.bf16.mxu0 0
  %549 = vmatmul.mubr.bf16.gmra.mrb[0].mxu0 %v236
  %v550 = vpop.f32.mrb[0].mxu0
  %v551 = vadd.f32 %v94, %v550
  %v552 = vpop.f32.mrb[0].mxu0
  %v553 = vpop.f32.mrb[0].mxu0
  %v554 = vadd.f32 %v94, %v553
  %v555 = vpop.f32.mrb[0].mxu0
  %556 = vmatprep.mubr.bf16.mxu0 0
  %557 = vmatmul.mubr.bf16.gmra.mrb[0].mxu0 %v239
  %v558 = vpop.f32.mrb[0].mxu0
  %v559 = vadd.f32 %v94, %v558
  %v560 = vpop.f32.mrb[0].mxu0
  %v561 = vpop.f32.mrb[0].mxu0
  %v562 = vadd.f32 %v94, %v561
  %v563 = vpop.f32.mrb[0].mxu0
  %564 = vmatprep.mubr.bf16.mxu0 0
  %565 = vmatmul.mubr.bf16.gmra.mrb[0].mxu0 %v242
  %v566 = vpop.f32.mrb[0].mxu0
  %v567 = vadd.f32 %v94, %v566
  %v568 = vpop.f32.mrb[0].mxu0
  %v569 = vpop.f32.mrb[0].mxu0
  %v570 = vadd.f32 %v94, %v569
  %v571 = vpop.f32.mrb[0].mxu0
  %572 = vmatprep.mubr.bf16.mxu0 0
  %573 = vmatmul.mubr.bf16.gmra.mrb[0].mxu0 %v245
  %v574 = vpop.f32.mrb[0].mxu0
  %v575 = vadd.f32 %v94, %v574
  %v576 = vpop.f32.mrb[0].mxu0
  %v577 = vpop.f32.mrb[0].mxu0
  %v578 = vadd.f32 %v94, %v577
  %v579 = vpop.f32.mrb[0].mxu0
  %580 = vmatprep.mubr.bf16.mxu0 0
  %581 = vmatmul.mubr.bf16.gmra.mrb[0].mxu0 %v248
  %v582 = vpop.f32.mrb[0].mxu0
  %v583 = vadd.f32 %v94, %v582
  %v584 = vpop.f32.mrb[0].mxu0
  %v585 = vpop.f32.mrb[0].mxu0
  %v586 = vadd.f32 %v94, %v585
  %v587 = vpop.f32.mrb[0].mxu0
  %588 = vmatprep.mubr.bf16.mxu0 0
  %589 = vmatmul.mubr.bf16.gmra.mrb[0].mxu0 %v251
  %v590 = vpop.f32.mrb[0].mxu0
  %v591 = vadd.f32 %v94, %v590
  %v592 = vpop.f32.mrb[0].mxu0
  %v593 = vpop.f32.mrb[0].mxu0
  %v594 = vadd.f32 %v94, %v593
  %v595 = vpop.f32.mrb[0].mxu0
  %596 = vmatprep.mubr.bf16.mxu0 0
  %597 = vmatmul.mubr.bf16.gmra.mrb[0].mxu0 %v254
  %v598 = vpop.f32.mrb[0].mxu0
  %v599 = vadd.f32 %v94, %v598
  %v600 = vpop.f32.mrb[0].mxu0
  %v601 = vpop.f32.mrb[0].mxu0
  %v602 = vadd.f32 %v94, %v601
  %v603 = vpop.f32.mrb[0].mxu0
  %604 = vmatprep.mubr.bf16.mxu0 0
  %605 = vmatmul.mubr.bf16.gmra.mrb[0].mxu0 %v257
  %v606 = vpop.f32.mrb[0].mxu0
  %v607 = vadd.f32 %v94, %v606
  %v608 = vpop.f32.mrb[0].mxu0
  %v609 = vpop.f32.mrb[0].mxu0
  %v610 = vadd.f32 %v94, %v609
  %v611 = vpop.f32.mrb[0].mxu0
  %612 = vdwg.mxu0
  %v613 = vmax.f32 %v294, 0.0
  %v614 = vmax.f32 %v296, 0.0
  %v615 = vmax.f32 %v487, 0.0
  %v616 = vmax.f32 %v298, 0.0
  %v617 = vmax.f32 %v300, 0.0
  %v618 = vmax.f32 %v490, 0.0
  %v619 = vmax.f32 %v304, 0.0
  %v620 = vmax.f32 %v306, 0.0
  %v621 = vmax.f32 %v495, 0.0
  %v622 = vmax.f32 %v308, 0.0
  %v623 = vmax.f32 %v310, 0.0
  %v624 = vmax.f32 %v498, 0.0
  %v625 = vmax.f32 %v314, 0.0
  %v626 = vmax.f32 %v316, 0.0
  %v627 = vmax.f32 %v503, 0.0
  %v628 = vmax.f32 %v318, 0.0
  %v629 = vmax.f32 %v320, 0.0
  %v630 = vmax.f32 %v506, 0.0
  %v631 = vmax.f32 %v324, 0.0
  %v632 = vmax.f32 %v326, 0.0
  %v633 = vmax.f32 %v511, 0.0
  %v634 = vmax.f32 %v328, 0.0
  %v635 = vmax.f32 %v330, 0.0
  %v636 = vmax.f32 %v514, 0.0
  %v637 = vmax.f32 %v334, 0.0
  %v638 = vmax.f32 %v336, 0.0
  %v639 = vmax.f32 %v519, 0.0
  %v640 = vmax.f32 %v338, 0.0
  %v641 = vmax.f32 %v340, 0.0
  %v642 = vmax.f32 %v522, 0.0
  %v643 = vmax.f32 %v344, 0.0
  %v644 = vmax.f32 %v346, 0.0
  %v645 = vmax.f32 %v527, 0.0
  %v646 = vmax.f32 %v348, 0.0
  %v647 = vmax.f32 %v350, 0.0
  %v648 = vmax.f32 %v530, 0.0
  %v649 = vmax.f32 %v354, 0.0
  %v650 = vmax.f32 %v356, 0.0
  %v651 = vmax.f32 %v535, 0.0
  %v652 = vmax.f32 %v358, 0.0
  %v653 = vmax.f32 %v360, 0.0
  %v654 = vmax.f32 %v538, 0.0
  %v655 = vmax.f32 %v364, 0.0
  %v656 = vmax.f32 %v366, 0.0
  %v657 = vmax.f32 %v543, 0.0
  %v658 = vmax.f32 %v368, 0.0
  %v659 = vmax.f32 %v370, 0.0
  %v660 = vmax.f32 %v546, 0.0
  %v661 = vmax.f32 %v374, 0.0
  %v662 = vmax.f32 %v376, 0.0
  %v663 = vmax.f32 %v551, 0.0
  %v664 = vmax.f32 %v378, 0.0
  %v665 = vmax.f32 %v380, 0.0
  %v666 = vmax.f32 %v554, 0.0
  %v667 = vmax.f32 %v384, 0.0
  %v668 = vmax.f32 %v386, 0.0
  %v669 = vmax.f32 %v559, 0.0
  %v670 = vmax.f32 %v388, 0.0
  %v671 = vmax.f32 %v390, 0.0
  %v672 = vmax.f32 %v562, 0.0
  %v673 = vmax.f32 %v394, 0.0
  %v674 = vmax.f32 %v396, 0.0
  %v675 = vmax.f32 %v567, 0.0
  %v676 = vmax.f32 %v398, 0.0
  %v677 = vmax.f32 %v400, 0.0
  %v678 = vmax.f32 %v570, 0.0
  %v679 = vmax.f32 %v404, 0.0
  %v680 = vmax.f32 %v406, 0.0
  %v681 = vmax.f32 %v575, 0.0
  %v682 = vmax.f32 %v408, 0.0
  %v683 = vmax.f32 %v410, 0.0
  %v684 = vmax.f32 %v578, 0.0
  %v685 = vmax.f32 %v414, 0.0
  %v686 = vmax.f32 %v416, 0.0
  %v687 = vmax.f32 %v583, 0.0
  %v688 = vmax.f32 %v418, 0.0
  %v689 = vmax.f32 %v420, 0.0
  %v690 = vmax.f32 %v586, 0.0
  %v691 = vmax.f32 %v424, 0.0
  %v692 = vmax.f32 %v426, 0.0
  %v693 = vmax.f32 %v591, 0.0
  %v694 = vmax.f32 %v428, 0.0
  %v695 = vmax.f32 %v430, 0.0
  %v696 = vmax.f32 %v594, 0.0
  %v697 = vmax.f32 %v434, 0.0
  %v698 = vmax.f32 %v436, 0.0
  %v699 = vmax.f32 %v599, 0.0
  %v700 = vmax.f32 %v438, 0.0
  %v701 = vmax.f32 %v440, 0.0
  %v702 = vmax.f32 %v602, 0.0
  %v703 = vmax.f32 %v444, 0.0
  %v704 = vmax.f32 %v446, 0.0
  %v705 = vmax.f32 %v607, 0.0
  %v706 = vmax.f32 %v448, 0.0
  %v707 = vmax.f32 %v450, 0.0
  %v708 = vmax.f32 %v610, 0.0
  %v709 = vpack.c.bf16 %v616, %v613
  %v710 = vpack.c.bf16 %v617, %v614
  %v711 = vpack.c.bf16 %v618, %v615
  %v712 = vpack.c.bf16 %v622, %v619
  %v713 = vpack.c.bf16 %v623, %v620
  %v714 = vpack.c.bf16 %v624, %v621
  %v715 = vpack.c.bf16 %v628, %v625
  %v716 = vpack.c.bf16 %v629, %v626
  %v717 = vpack.c.bf16 %v630, %v627
  %v718 = vpack.c.bf16 %v634, %v631
  %v719 = vpack.c.bf16 %v635, %v632
  %v720 = vpack.c.bf16 %v636, %v633
  %v721 = vpack.c.bf16 %v640, %v637
  %v722 = vpack.c.bf16 %v641, %v638
  %v723 = vpack.c.bf16 %v642, %v639
  %v724 = vpack.c.bf16 %v646, %v643
  %v725 = vpack.c.bf16 %v647, %v644
  %v726 = vpack.c.bf16 %v648, %v645
  %v727 = vpack.c.bf16 %v652, %v649
  %v728 = vpack.c.bf16 %v653, %v650
  %v729 = vpack.c.bf16 %v654, %v651
  %v730 = vpack.c.bf16 %v658, %v655
  %v731 = vpack.c.bf16 %v659, %v656
  %v732 = vpack.c.bf16 %v660, %v657
  %v733 = vpack.c.bf16 %v664, %v661
  %v734 = vpack.c.bf16 %v665, %v662
  %v735 = vpack.c.bf16 %v666, %v663
  %v736 = vpack.c.bf16 %v670, %v667
  %v737 = vpack.c.bf16 %v671, %v668
  %v738 = vpack.c.bf16 %v672, %v669
  %v739 = vpack.c.bf16 %v676, %v673
  %v740 = vpack.c.bf16 %v677, %v674
  %v741 = vpack.c.bf16 %v678, %v675
  %v742 = vpack.c.bf16 %v682, %v679
  %v743 = vpack.c.bf16 %v683, %v680
  %v744 = vpack.c.bf16 %v684, %v681
  %v745 = vpack.c.bf16 %v688, %v685
  %v746 = vpack.c.bf16 %v689, %v686
  %v747 = vpack.c.bf16 %v690, %v687
  %v748 = vpack.c.bf16 %v694, %v691
  %v749 = vpack.c.bf16 %v695, %v692
  %v750 = vpack.c.bf16 %v696, %v693
  %v751 = vpack.c.bf16 %v700, %v697
  %v752 = vpack.c.bf16 %v701, %v698
  %v753 = vpack.c.bf16 %v702, %v699
  %v754 = vpack.c.bf16 %v706, %v703
  %v755 = vpack.c.bf16 %v707, %v704
  %v756 = vpack.c.bf16 %v708, %v705
  %v757 = vld [vmem:[%s3] sm:$0xff]
  %v758 = vld [vmem:[%s3 + $0x8] sm:$0xff]
  %v759 = vld [vmem:[%s3 + $0x10] sm:$0xff]
  %v760 = vld [vmem:[%s3 + $0x18] sm:$0xff]
  %v761 = vld [vmem:[%s3 + $0x20] sm:$0xff]
  %v762 = vld [vmem:[%s3 + $0x28] sm:$0xff]
  %v763 = vld [vmem:[%s3 + $0x30] sm:$0xff]
  %v764 = vld [vmem:[%s3 + $0x38] sm:$0xff]
  %v765 = vld [vmem:[%s3 + $0x40] sm:$0xff]
  %v766 = vld [vmem:[%s3 + $0x48] sm:$0xff]
  %v767 = vld [vmem:[%s3 + $0x50] sm:$0xff]
  %v768 = vld [vmem:[%s3 + $0x58] sm:$0xff]
  %v769 = vld [vmem:[%s3 + $0x60] sm:$0xff]
  %v770 = vld [vmem:[%s3 + $0x68] sm:$0xff]
  %v771 = vld [vmem:[%s3 + $0x70] sm:$0xff]
  %v772 = vld [vmem:[%s3 + $0x78] sm:$0xff]
  %v773 = vld [vmem:[%s3 + $0x80] sm:$0xff]
  %v774 = vld [vmem:[%s3 + $0x88] sm:$0xff]
  %v775 = vld [vmem:[%s3 + $0x90] sm:$0xff]
  %v776 = vld [vmem:[%s3 + $0x98] sm:$0xff]
  %v777 = vld [vmem:[%s3 + $0xa0] sm:$0xff]
  %v778 = vld [vmem:[%s3 + $0xa8] sm:$0xff]
  %v779 = vld [vmem:[%s3 + $0xb0] sm:$0xff]
  %v780 = vld [vmem:[%s3 + $0xb8] sm:$0xff]
  %v781 = vld [vmem:[%s3 + $0xc0] sm:$0xff]
  %v782 = vld [vmem:[%s3 + $0xc8] sm:$0xff]
  %v783 = vld [vmem:[%s3 + $0xd0] sm:$0xff]
  %v784 = vld [vmem:[%s3 + $0xd8] sm:$0xff]
  %v785 = vld [vmem:[%s3 + $0xe0] sm:$0xff]
  %v786 = vld [vmem:[%s3 + $0xe8] sm:$0xff]
  %v787 = vld [vmem:[%s3 + $0xf0] sm:$0xff]
  %v788 = vld [vmem:[%s3 + $0xf8] sm:$0xff]
  %v789 = vld [vmem:[%s3 + $0x100] sm:$0xff]
  %v790 = vld [vmem:[%s3 + $0x108] sm:$0xff]
  %v791 = vld [vmem:[%s3 + $0x110] sm:$0xff]
  %v792 = vld [vmem:[%s3 + $0x118] sm:$0xff]
  %v793 = vld [vmem:[%s3 + $0x120] sm:$0xff]
  %v794 = vld [vmem:[%s3 + $0x128] sm:$0xff]
  %v795 = vld [vmem:[%s3 + $0x130] sm:$0xff]
  %v796 = vld [vmem:[%s3 + $0x138] sm:$0xff]
  %v797 = vld [vmem:[%s3 + $0x140] sm:$0xff]
  %v798 = vld [vmem:[%s3 + $0x148] sm:$0xff]
  %v799 = vld [vmem:[%s3 + $0x150] sm:$0xff]
  %v800 = vld [vmem:[%s3 + $0x158] sm:$0xff]
  %v801 = vld [vmem:[%s3 + $0x160] sm:$0xff]
  %v802 = vld [vmem:[%s3 + $0x168] sm:$0xff]
  %v803 = vld [vmem:[%s3 + $0x170] sm:$0xff]
  %v804 = vld [vmem:[%s3 + $0x178] sm:$0xff]
  %v805 = vld [vmem:[%s3 + $0x180] sm:$0xff]
  %v806 = vld [vmem:[%s3 + $0x188] sm:$0xff]
  %v807 = vld [vmem:[%s3 + $0x190] sm:$0xff]
  %v808 = vld [vmem:[%s3 + $0x198] sm:$0xff]
  %v809 = vld [vmem:[%s3 + $0x1a0] sm:$0xff]
  %v810 = vld [vmem:[%s3 + $0x1a8] sm:$0xff]
  %v811 = vld [vmem:[%s3 + $0x1b0] sm:$0xff]
  %v812 = vld [vmem:[%s3 + $0x1b8] sm:$0xff]
  %v813 = vld [vmem:[%s3 + $0x1c0] sm:$0xff]
  %v814 = vld [vmem:[%s3 + $0x1c8] sm:$0xff]
  %v815 = vld [vmem:[%s3 + $0x1d0] sm:$0xff]
  %v816 = vld [vmem:[%s3 + $0x1d8] sm:$0xff]
  %v817 = vld [vmem:[%s3 + $0x1e0] sm:$0xff]
  %v818 = vld [vmem:[%s3 + $0x1e8] sm:$0xff]
  %v819 = vld [vmem:[%s3 + $0x1f0] sm:$0xff]
  %v820 = vld [vmem:[%s3 + $0x1f8] sm:$0xff]
  %v821 = vld [vmem:[%s3 + $0x200] sm:$0xff]
  %v822 = vld [vmem:[%s3 + $0x208] sm:$0xff]
  %v823 = vld [vmem:[%s3 + $0x210] sm:$0xff]
  %v824 = vld [vmem:[%s3 + $0x218] sm:$0xff]
  %v825 = vld [vmem:[%s3 + $0x220] sm:$0xff]
  %v826 = vld [vmem:[%s3 + $0x228] sm:$0xff]
  %v827 = vld [vmem:[%s3 + $0x230] sm:$0xff]
  %v828 = vld [vmem:[%s3 + $0x238] sm:$0xff]
  %v829 = vld [vmem:[%s3 + $0x240] sm:$0xff]
  %v830 = vld [vmem:[%s3 + $0x248] sm:$0xff]
  %v831 = vld [vmem:[%s3 + $0x250] sm:$0x33]
  %v832 = vld [vmem:[%s3 + $0x258] sm:$0x33]
  %v833 = vld [vmem:[%s4] sm:$0xf]
  %v835 = vlaneseq
  %v836 = vshrl.u32 %v835, 7
  %v837 = vsub.s32 0, %v836
  %v838 = vrot.slane %v833, %v837
  %v839 = vlaneseq
  %v840 = vshrl.u32 %v839, 7
  %v841 = vsub.s32 1, %v840
  %v842 = vrot.slane %v833, %v841
  %v843 = vlaneseq
  %v844 = vshrl.u32 %v843, 7
  %v845 = vsub.s32 2, %v844
  %v846 = vrot.slane %v833, %v845
  %v847 = vlaneseq
  %v848 = vshrl.u32 %v847, 7
  %v849 = vsub.s32 3, %v848
  %v850 = vrot.slane %v833, %v849
  %v931 = vunpack.c.l.b16 %v757
  %v932 = vunpack.c.h.b16 %v757
  %v933 = vunpack.c.l.b16 %v758
  %v934 = vunpack.c.h.b16 %v758
  %v935 = vunpack.c.l.b16 %v759
  %v936 = vunpack.c.h.b16 %v759
  %v937 = vunpack.c.l.b16 %v760
  %v938 = vunpack.c.h.b16 %v760
  %v939 = vunpack.c.l.b16 %v761
  %v940 = vunpack.c.h.b16 %v761
  %v941 = vunpack.c.l.b16 %v762
  %v942 = vunpack.c.h.b16 %v762
  %v943 = vunpack.c.l.b16 %v763
  %v944 = vunpack.c.h.b16 %v763
  %v945 = vunpack.c.l.b16 %v764
  %v946 = vunpack.c.h.b16 %v764
  %v947 = vunpack.c.l.b16 %v765
  %v948 = vunpack.c.h.b16 %v765
  %v949 = vunpack.c.l.b16 %v766
  %v950 = vunpack.c.h.b16 %v766
  %v951 = vunpack.c.l.b16 %v767
  %v952 = vunpack.c.h.b16 %v767
  %v953 = vunpack.c.l.b16 %v768
  %v954 = vunpack.c.h.b16 %v768
  %v955 = vunpack.c.l.b16 %v769
  %v956 = vunpack.c.h.b16 %v769
  %v957 = vunpack.c.l.b16 %v770
  %v958 = vunpack.c.h.b16 %v770
  %v959 = vunpack.c.l.b16 %v771
  %v960 = vunpack.c.h.b16 %v771
  %v961 = vunpack.c.l.b16 %v772
  %v962 = vunpack.c.h.b16 %v772
  %v963 = vunpack.c.l.b16 %v773
  %v964 = vunpack.c.h.b16 %v773
  %v965 = vunpack.c.l.b16 %v774
  %v966 = vunpack.c.h.b16 %v774
  %v967 = vunpack.c.l.b16 %v775
  %v968 = vunpack.c.h.b16 %v775
  %v969 = vunpack.c.l.b16 %v776
  %v970 = vunpack.c.h.b16 %v776
  %v971 = vunpack.c.l.b16 %v777
  %v972 = vunpack.c.h.b16 %v777
  %v973 = vunpack.c.l.b16 %v778
  %v974 = vunpack.c.h.b16 %v778
  %v975 = vunpack.c.l.b16 %v779
  %v976 = vunpack.c.h.b16 %v779
  %v977 = vunpack.c.l.b16 %v780
  %v978 = vunpack.c.h.b16 %v780
  %v979 = vunpack.c.l.b16 %v781
  %v980 = vunpack.c.h.b16 %v781
  %v981 = vunpack.c.l.b16 %v782
  %v982 = vunpack.c.h.b16 %v782
  %v983 = vunpack.c.l.b16 %v783
  %v984 = vunpack.c.h.b16 %v783
  %v985 = vunpack.c.l.b16 %v784
  %v986 = vunpack.c.h.b16 %v784
  %v987 = vunpack.c.l.b16 %v785
  %v988 = vunpack.c.h.b16 %v785
  %v989 = vunpack.c.l.b16 %v786
  %v990 = vunpack.c.h.b16 %v786
  %v991 = vunpack.c.l.b16 %v787
  %v992 = vunpack.c.h.b16 %v787
  %v993 = vunpack.c.l.b16 %v788
  %v994 = vunpack.c.h.b16 %v788
  %v995 = vunpack.c.l.b16 %v789
  %v996 = vunpack.c.h.b16 %v789
  %v997 = vunpack.c.l.b16 %v790
  %v998 = vunpack.c.h.b16 %v790
  %v999 = vunpack.c.l.b16 %v791
  %v1000 = vunpack.c.h.b16 %v791
  %v1001 = vunpack.c.l.b16 %v792
  %v1002 = vunpack.c.h.b16 %v792
  %v1003 = vunpack.c.l.b16 %v793
  %v1004 = vunpack.c.h.b16 %v793
  %v1005 = vunpack.c.l.b16 %v794
  %v1006 = vunpack.c.h.b16 %v794
  %v1007 = vunpack.c.l.b16 %v795
  %v1008 = vunpack.c.h.b16 %v795
  %v1009 = vunpack.c.l.b16 %v796
  %v1010 = vunpack.c.h.b16 %v796
  %v1011 = vunpack.c.l.b16 %v797
  %v1012 = vunpack.c.h.b16 %v797
  %v1013 = vunpack.c.l.b16 %v798
  %v1014 = vunpack.c.h.b16 %v798
  %v1015 = vunpack.c.l.b16 %v799
  %v1016 = vunpack.c.h.b16 %v799
  %v1017 = vunpack.c.l.b16 %v800
  %v1018 = vunpack.c.h.b16 %v800
  %v1019 = vunpack.c.l.b16 %v801
  %v1020 = vunpack.c.h.b16 %v801
  %v1021 = vunpack.c.l.b16 %v802
  %v1022 = vunpack.c.h.b16 %v802
  %v1023 = vunpack.c.l.b16 %v803
  %v1024 = vunpack.c.h.b16 %v803
  %v1025 = vunpack.c.l.b16 %v804
  %v1026 = vunpack.c.h.b16 %v804
  %v1027 = vunpack.c.l.b16 %v805
  %v1028 = vunpack.c.h.b16 %v805
  %v1029 = vunpack.c.l.b16 %v806
  %v1030 = vunpack.c.h.b16 %v806
  %v1031 = vunpack.c.l.b16 %v807
  %v1032 = vunpack.c.h.b16 %v807
  %v1033 = vunpack.c.l.b16 %v808
  %v1034 = vunpack.c.h.b16 %v808
  %v1035 = vunpack.c.l.b16 %v809
  %v1036 = vunpack.c.h.b16 %v809
  %v1037 = vunpack.c.l.b16 %v810
  %v1038 = vunpack.c.h.b16 %v810
  %v1039 = vunpack.c.l.b16 %v811
  %v1040 = vunpack.c.h.b16 %v811
  %v1041 = vunpack.c.l.b16 %v812
  %v1042 = vunpack.c.h.b16 %v812
  %v1043 = vunpack.c.l.b16 %v813
  %v1044 = vunpack.c.h.b16 %v813
  %v1045 = vunpack.c.l.b16 %v814
  %v1046 = vunpack.c.h.b16 %v814
  %v1047 = vunpack.c.l.b16 %v815
  %v1048 = vunpack.c.h.b16 %v815
  %v1049 = vunpack.c.l.b16 %v816
  %v1050 = vunpack.c.h.b16 %v816
  %v1051 = vunpack.c.l.b16 %v817
  %v1052 = vunpack.c.h.b16 %v817
  %v1053 = vunpack.c.l.b16 %v818
  %v1054 = vunpack.c.h.b16 %v818
  %v1055 = vunpack.c.l.b16 %v819
  %v1056 = vunpack.c.h.b16 %v819
  %v1057 = vunpack.c.l.b16 %v820
  %v1058 = vunpack.c.h.b16 %v820
  %v1059 = vunpack.c.l.b16 %v821
  %v1060 = vunpack.c.h.b16 %v821
  %v1061 = vunpack.c.l.b16 %v822
  %v1062 = vunpack.c.h.b16 %v822
  %v1063 = vunpack.c.l.b16 %v823
  %v1064 = vunpack.c.h.b16 %v823
  %v1065 = vunpack.c.l.b16 %v824
  %v1066 = vunpack.c.h.b16 %v824
  %v1067 = vunpack.c.l.b16 %v825
  %v1068 = vunpack.c.h.b16 %v825
  %v1069 = vunpack.c.l.b16 %v826
  %v1070 = vunpack.c.h.b16 %v826
  %v1071 = vunpack.c.l.b16 %v827
  %v1072 = vunpack.c.h.b16 %v827
  %v1073 = vunpack.c.l.b16 %v828
  %v1074 = vunpack.c.h.b16 %v828
  %v1075 = vunpack.c.l.b16 %v829
  %v1076 = vunpack.c.h.b16 %v829
  %v1077 = vunpack.c.l.b16 %v830
  %v1078 = vunpack.c.h.b16 %v830
  %v1079 = vunpack.c.l.b16 %v831
  %v1080 = vunpack.c.h.b16 %v831
  %v1081 = vunpack.c.l.b16 %v832
  %v1082 = vunpack.c.h.b16 %v832
  %v1083 = vpack.c.b16 %v935, %v931
  %v1084 = vpack.c.b16 %v936, %v932
  %v1085 = vpack.c.b16 %v937, %v933
  %v1086 = vpack.c.b16 %v938, %v934
  %v1087 = vpack.c.b16 %v943, %v939
  %v1088 = vpack.c.b16 %v944, %v940
  %v1089 = vpack.c.b16 %v945, %v941
  %v1090 = vpack.c.b16 %v946, %v942
  %v1091 = vpack.c.b16 %v951, %v947
  %v1092 = vpack.c.b16 %v952, %v948
  %v1093 = vpack.c.b16 %v953, %v949
  %v1094 = vpack.c.b16 %v954, %v950
  %v1095 = vpack.c.b16 %v959, %v955
  %v1096 = vpack.c.b16 %v960, %v956
  %v1097 = vpack.c.b16 %v961, %v957
  %v1098 = vpack.c.b16 %v962, %v958
  %v1099 = vpack.c.b16 %v967, %v963
  %v1100 = vpack.c.b16 %v968, %v964
  %v1101 = vpack.c.b16 %v969, %v965
  %v1102 = vpack.c.b16 %v970, %v966
  %v1103 = vpack.c.b16 %v975, %v971
  %v1104 = vpack.c.b16 %v976, %v972
  %v1105 = vpack.c.b16 %v977, %v973
  %v1106 = vpack.c.b16 %v978, %v974
  %v1107 = vpack.c.b16 %v983, %v979
  %v1108 = vpack.c.b16 %v984, %v980
  %v1109 = vpack.c.b16 %v985, %v981
  %v1110 = vpack.c.b16 %v986, %v982
  %v1111 = vpack.c.b16 %v991, %v987
  %v1112 = vpack.c.b16 %v992, %v988
  %v1113 = vpack.c.b16 %v993, %v989
  %v1114 = vpack.c.b16 %v994, %v990
  %v1115 = vpack.c.b16 %v999, %v995
  %v1116 = vpack.c.b16 %v1000, %v996
  %v1117 = vpack.c.b16 %v1001, %v997
  %v1118 = vpack.c.b16 %v1002, %v998
  %v1119 = vpack.c.b16 %v1007, %v1003
  %v1120 = vpack.c.b16 %v1008, %v1004
  %v1121 = vpack.c.b16 %v1009, %v1005
  %v1122 = vpack.c.b16 %v1010, %v1006
  %v1123 = vpack.c.b16 %v1015, %v1011
  %v1124 = vpack.c.b16 %v1016, %v1012
  %v1125 = vpack.c.b16 %v1017, %v1013
  %v1126 = vpack.c.b16 %v1018, %v1014
  %v1127 = vpack.c.b16 %v1023, %v1019
  %v1128 = vpack.c.b16 %v1024, %v1020
  %v1129 = vpack.c.b16 %v1025, %v1021
  %v1130 = vpack.c.b16 %v1026, %v1022
  %v1131 = vpack.c.b16 %v1031, %v1027
  %v1132 = vpack.c.b16 %v1032, %v1028
  %v1133 = vpack.c.b16 %v1033, %v1029
  %v1134 = vpack.c.b16 %v1034, %v1030
  %v1135 = vpack.c.b16 %v1039, %v1035
  %v1136 = vpack.c.b16 %v1040, %v1036
  %v1137 = vpack.c.b16 %v1041, %v1037
  %v1138 = vpack.c.b16 %v1042, %v1038
  %v1139 = vpack.c.b16 %v1047, %v1043
  %v1140 = vpack.c.b16 %v1048, %v1044
  %v1141 = vpack.c.b16 %v1049, %v1045
  %v1142 = vpack.c.b16 %v1050, %v1046
  %v1143 = vpack.c.b16 %v1055, %v1051
  %v1144 = vpack.c.b16 %v1056, %v1052
  %v1145 = vpack.c.b16 %v1057, %v1053
  %v1146 = vpack.c.b16 %v1058, %v1054
  %v1147 = vpack.c.b16 %v1063, %v1059
  %v1148 = vpack.c.b16 %v1064, %v1060
  %v1149 = vpack.c.b16 %v1065, %v1061
  %v1150 = vpack.c.b16 %v1066, %v1062
  %v1151 = vpack.c.b16 %v1071, %v1067
  %v1152 = vpack.c.b16 %v1072, %v1068
  %v1153 = vpack.c.b16 %v1073, %v1069
  %v1154 = vpack.c.b16 %v1074, %v1070
  %v1155 = vpack.c.b16 %v1079, %v1075
  %v1156 = vpack.c.b16 %v1080, %v1076
  %v1157 = vpack.c.b16 %v1081, %v1077
  %v1158 = vpack.c.b16 %v1082, %v1078
  %vm1231 = vcmask 359424
  %v1233 = vsel %vm1231, %v711, 0
  %v1236 = vsel %vm1231, %v714, 0
  %v1239 = vsel %vm1231, %v717, 0
  %v1242 = vsel %vm1231, %v720, 0
  %v1245 = vsel %vm1231, %v723, 0
  %v1248 = vsel %vm1231, %v726, 0
  %v1251 = vsel %vm1231, %v729, 0
  %v1254 = vsel %vm1231, %v732, 0
  %v1257 = vsel %vm1231, %v735, 0
  %v1260 = vsel %vm1231, %v738, 0
  %v1263 = vsel %vm1231, %v741, 0
  %v1266 = vsel %vm1231, %v744, 0
  %v1269 = vsel %vm1231, %v747, 0
  %v1272 = vsel %vm1231, %v750, 0
  %v1275 = vsel %vm1231, %v753, 0
  %v1278 = vsel %vm1231, %v756, 0
  %vm1280 = vcmask 1045504
  %v1282 = vsel %vm1280, %v1155, 0
  %v1285 = vsel %vm1280, %v1156, 0
  %v1288 = vsel %vm1280, %v1157, 0
  %v1291 = vsel %vm1280, %v1158, 0
  %1293 = vmatprep.subr.bf16.mxu0 %v1084
  %1294 = vmatpush1.bf16.msra.mxu0 %v1083
  %1295 = vmatprep.subr.bf16.mxu0 %v1088
  %1296 = vmatpush1.bf16.msra.mxu0 %v1087
  %1297 = vmatprep.subr.bf16.mxu0 %v1092
  %1298 = vmatpush1.bf16.msra.mxu0 %v1091
  %1299 = vmatprep.subr.bf16.mxu0 %v1096
  %1300 = vmatpush1.bf16.msra.mxu0 %v1095
  %1301 = vmatprep.subr.bf16.mxu0 %v1100
  %1302 = vmatpush1.bf16.msra.mxu0 %v1099
  %1303 = vmatprep.subr.bf16.mxu0 %v1104
  %1304 = vmatpush1.bf16.msra.mxu0 %v1103
  %1305 = vmatprep.subr.bf16.mxu0 %v1108
  %1306 = vmatpush1.bf16.msra.mxu0 %v1107
  %1307 = vmatprep.subr.bf16.mxu0 %v1112
  %1308 = vmatpush1.bf16.msra.mxu0 %v1111
  %1309 = vmatprep.subr.bf16.mxu0 %v1116
  %1310 = vmatpush1.bf16.msra.mxu0 %v1115
  %1311 = vmatprep.subr.bf16.mxu0 %v1120
  %1312 = vmatpush1.bf16.msra.mxu0 %v1119
  %1313 = vmatprep.subr.bf16.mxu0 %v1124
  %1314 = vmatpush1.bf16.msra.mxu0 %v1123
  %1315 = vmatprep.subr.bf16.mxu0 %v1128
  %1316 = vmatpush1.bf16.msra.mxu0 %v1127
  %1317 = vmatprep.subr.bf16.mxu0 %v1132
  %1318 = vmatpush1.bf16.msra.mxu0 %v1131
  %1319 = vmatprep.subr.bf16.mxu0 %v1136
  %1320 = vmatpush1.bf16.msra.mxu0 %v1135
  %1321 = vmatprep.subr.bf16.mxu0 %v1140
  %1322 = vmatpush1.bf16.msra.mxu0 %v1139
  %1323 = vmatprep.subr.bf16.mxu0 %v1144
  %1324 = vmatpush1.bf16.msra.mxu0 %v1143
  %1325 = vmatprep.mubr.bf16.mxu0 %v710
  %1326 = vmatmul.mubr.bf16.gmra.mrb[0].mxu0 %v709
  %v1327 = vpop.f32.mrb[0].mxu0
  %v1328 = vadd.f32 %v838, %v1327
  %v1329 = vpop.f32.mrb[0].mxu0
  %v1330 = vadd.f32 %v842, %v1329
  %v1331 = vpop.f32.mrb[0].mxu0
  %v1332 = vadd.f32 %v838, %v1331
  %v1333 = vpop.f32.mrb[0].mxu0
  %v1334 = vadd.f32 %v842, %v1333
  %1335 = vmatprep.mubr.bf16.mxu0 %v713
  %1336 = vmatmul.mubr.bf16.gmra.mrb[0].mxu0 %v712
  %v1337 = vpop.f32.mrb[0].mxu0
  %v1338 = vadd.f32 %v838, %v1337
  %v1339 = vpop.f32.mrb[0].mxu0
  %v1340 = vadd.f32 %v842, %v1339
  %v1341 = vpop.f32.mrb[0].mxu0
  %v1342 = vadd.f32 %v838, %v1341
  %v1343 = vpop.f32.mrb[0].mxu0
  %v1344 = vadd.f32 %v842, %v1343
  %1345 = vmatprep.mubr.bf16.mxu0 %v716
  %1346 = vmatmul.mubr.bf16.gmra.mrb[0].mxu0 %v715
  %v1347 = vpop.f32.mrb[0].mxu0
  %v1348 = vadd.f32 %v838, %v1347
  %v1349 = vpop.f32.mrb[0].mxu0
  %v1350 = vadd.f32 %v842, %v1349
  %v1351 = vpop.f32.mrb[0].mxu0
  %v1352 = vadd.f32 %v838, %v1351
  %v1353 = vpop.f32.mrb[0].mxu0
  %v1354 = vadd.f32 %v842, %v1353
  %1355 = vmatprep.mubr.bf16.mxu0 %v719
  %1356 = vmatmul.mubr.bf16.gmra.mrb[0].mxu0 %v718
  %v1357 = vpop.f32.mrb[0].mxu0
  %v1358 = vadd.f32 %v838, %v1357
  %v1359 = vpop.f32.mrb[0].mxu0
  %v1360 = vadd.f32 %v842, %v1359
  %v1361 = vpop.f32.mrb[0].mxu0
  %v1362 = vadd.f32 %v838, %v1361
  %v1363 = vpop.f32.mrb[0].mxu0
  %v1364 = vadd.f32 %v842, %v1363
  %1365 = vmatprep.mubr.bf16.mxu0 %v722
  %1366 = vmatmul.mubr.bf16.gmra.mrb[0].mxu0 %v721
  %v1367 = vpop.f32.mrb[0].mxu0
  %v1368 = vadd.f32 %v838, %v1367
  %v1369 = vpop.f32.mrb[0].mxu0
  %v1370 = vadd.f32 %v842, %v1369
  %v1371 = vpop.f32.mrb[0].mxu0
  %v1372 = vadd.f32 %v838, %v1371
  %v1373 = vpop.f32.mrb[0].mxu0
  %v1374 = vadd.f32 %v842, %v1373
  %1375 = vmatprep.mubr.bf16.mxu0 %v725
  %1376 = vmatmul.mubr.bf16.gmra.mrb[0].mxu0 %v724
  %v1377 = vpop.f32.mrb[0].mxu0
  %v1378 = vadd.f32 %v838, %v1377
  %v1379 = vpop.f32.mrb[0].mxu0
  %v1380 = vadd.f32 %v842, %v1379
  %v1381 = vpop.f32.mrb[0].mxu0
  %v1382 = vadd.f32 %v838, %v1381
  %v1383 = vpop.f32.mrb[0].mxu0
  %v1384 = vadd.f32 %v842, %v1383
  %1385 = vmatprep.mubr.bf16.mxu0 %v728
  %1386 = vmatmul.mubr.bf16.gmra.mrb[0].mxu0 %v727
  %v1387 = vpop.f32.mrb[0].mxu0
  %v1388 = vadd.f32 %v838, %v1387
  %v1389 = vpop.f32.mrb[0].mxu0
  %v1390 = vadd.f32 %v842, %v1389
  %v1391 = vpop.f32.mrb[0].mxu0
  %v1392 = vadd.f32 %v838, %v1391
  %v1393 = vpop.f32.mrb[0].mxu0
  %v1394 = vadd.f32 %v842, %v1393
  %1395 = vmatprep.mubr.bf16.mxu0 %v731
  %1396 = vmatmul.mubr.bf16.gmra.mrb[0].mxu0 %v730
  %v1397 = vpop.f32.mrb[0].mxu0
  %v1398 = vadd.f32 %v838, %v1397
  %v1399 = vpop.f32.mrb[0].mxu0
  %v1400 = vadd.f32 %v842, %v1399
  %v1401 = vpop.f32.mrb[0].mxu0
  %v1402 = vadd.f32 %v838, %v1401
  %v1403 = vpop.f32.mrb[0].mxu0
  %v1404 = vadd.f32 %v842, %v1403
  %1405 = vmatprep.mubr.bf16.mxu0 %v734
  %1406 = vmatmul.mubr.bf16.gmra.mrb[0].mxu0 %v733
  %v1407 = vpop.f32.mrb[0].mxu0
  %v1408 = vadd.f32 %v838, %v1407
  %v1409 = vpop.f32.mrb[0].mxu0
  %v1410 = vadd.f32 %v842, %v1409
  %v1411 = vpop.f32.mrb[0].mxu0
  %v1412 = vadd.f32 %v838, %v1411
  %v1413 = vpop.f32.mrb[0].mxu0
  %v1414 = vadd.f32 %v842, %v1413
  %1415 = vmatprep.mubr.bf16.mxu0 %v737
  %1416 = vmatmul.mubr.bf16.gmra.mrb[0].mxu0 %v736
  %v1417 = vpop.f32.mrb[0].mxu0
  %v1418 = vadd.f32 %v838, %v1417
  %v1419 = vpop.f32.mrb[0].mxu0
  %v1420 = vadd.f32 %v842, %v1419
  %v1421 = vpop.f32.mrb[0].mxu0
  %v1422 = vadd.f32 %v838, %v1421
  %v1423 = vpop.f32.mrb[0].mxu0
  %v1424 = vadd.f32 %v842, %v1423
  %1425 = vmatprep.mubr.bf16.mxu0 %v740
  %1426 = vmatmul.mubr.bf16.gmra.mrb[0].mxu0 %v739
  %v1427 = vpop.f32.mrb[0].mxu0
  %v1428 = vadd.f32 %v838, %v1427
  %v1429 = vpop.f32.mrb[0].mxu0
  %v1430 = vadd.f32 %v842, %v1429
  %v1431 = vpop.f32.mrb[0].mxu0
  %v1432 = vadd.f32 %v838, %v1431
  %v1433 = vpop.f32.mrb[0].mxu0
  %v1434 = vadd.f32 %v842, %v1433
  %1435 = vmatprep.mubr.bf16.mxu0 %v743
  %1436 = vmatmul.mubr.bf16.gmra.mrb[0].mxu0 %v742
  %v1437 = vpop.f32.mrb[0].mxu0
  %v1438 = vadd.f32 %v838, %v1437
  %v1439 = vpop.f32.mrb[0].mxu0
  %v1440 = vadd.f32 %v842, %v1439
  %v1441 = vpop.f32.mrb[0].mxu0
  %v1442 = vadd.f32 %v838, %v1441
  %v1443 = vpop.f32.mrb[0].mxu0
  %v1444 = vadd.f32 %v842, %v1443
  %1445 = vmatprep.mubr.bf16.mxu0 %v746
  %1446 = vmatmul.mubr.bf16.gmra.mrb[0].mxu0 %v745
  %v1447 = vpop.f32.mrb[0].mxu0
  %v1448 = vadd.f32 %v838, %v1447
  %v1449 = vpop.f32.mrb[0].mxu0
  %v1450 = vadd.f32 %v842, %v1449
  %v1451 = vpop.f32.mrb[0].mxu0
  %v1452 = vadd.f32 %v838, %v1451
  %v1453 = vpop.f32.mrb[0].mxu0
  %v1454 = vadd.f32 %v842, %v1453
  %1455 = vmatprep.mubr.bf16.mxu0 %v749
  %1456 = vmatmul.mubr.bf16.gmra.mrb[0].mxu0 %v748
  %v1457 = vpop.f32.mrb[0].mxu0
  %v1458 = vadd.f32 %v838, %v1457
  %v1459 = vpop.f32.mrb[0].mxu0
  %v1460 = vadd.f32 %v842, %v1459
  %v1461 = vpop.f32.mrb[0].mxu0
  %v1462 = vadd.f32 %v838, %v1461
  %v1463 = vpop.f32.mrb[0].mxu0
  %v1464 = vadd.f32 %v842, %v1463
  %1465 = vmatprep.mubr.bf16.mxu0 %v752
  %1466 = vmatmul.mubr.bf16.gmra.mrb[0].mxu0 %v751
  %v1467 = vpop.f32.mrb[0].mxu0
  %v1468 = vadd.f32 %v838, %v1467
  %v1469 = vpop.f32.mrb[0].mxu0
  %v1470 = vadd.f32 %v842, %v1469
  %v1471 = vpop.f32.mrb[0].mxu0
  %v1472 = vadd.f32 %v838, %v1471
  %v1473 = vpop.f32.mrb[0].mxu0
  %v1474 = vadd.f32 %v842, %v1473
  %1475 = vmatprep.mubr.bf16.mxu0 %v755
  %1476 = vmatmul.mubr.bf16.gmra.mrb[0].mxu0 %v754
  %v1477 = vpop.f32.mrb[0].mxu0
  %v1478 = vadd.f32 %v838, %v1477
  %v1479 = vpop.f32.mrb[0].mxu0
  %v1480 = vadd.f32 %v842, %v1479
  %v1481 = vpop.f32.mrb[0].mxu0
  %v1482 = vadd.f32 %v838, %v1481
  %v1483 = vpop.f32.mrb[0].mxu0
  %v1484 = vadd.f32 %v842, %v1483
  %1485 = vdwg.mxu0
  %1486 = vmatprep.subr.bf16.mxu0 %v1148
  %1487 = vmatpush1.bf16.msra.mxu0 %v1147
  %1488 = vmatprep.subr.bf16.mxu0 %v1152
  %1489 = vmatpush1.bf16.msra.mxu0 %v1151
  %1490 = vmatprep.subr.bf16.mxu0 %v1285
  %1491 = vmatpush1.bf16.msra.mxu0 %v1282
  %1492 = vmatprep.subr.bf16.mxu0 0
  %1493 = vmatpush1.bf16.msra.mxu0 0
  %1494 = vmatprep.subr.bf16.mxu0 0
  %1495 = vmatpush1.bf16.msra.mxu0 0
  %1496 = vmatprep.subr.bf16.mxu0 0
  %1497 = vmatpush1.bf16.msra.mxu0 0
  %1498 = vmatprep.subr.bf16.mxu0 0
  %1499 = vmatpush1.bf16.msra.mxu0 0
  %1500 = vmatprep.subr.bf16.mxu0 0
  %1501 = vmatpush1.bf16.msra.mxu0 0
  %1502 = vmatprep.subr.bf16.mxu0 0
  %1503 = vmatpush1.bf16.msra.mxu0 0
  %1504 = vmatprep.subr.bf16.mxu0 0
  %1505 = vmatpush1.bf16.msra.mxu0 0
  %1506 = vmatprep.subr.bf16.mxu0 0
  %1507 = vmatpush1.bf16.msra.mxu0 0
  %1508 = vmatprep.subr.bf16.mxu0 0
  %1509 = vmatpush1.bf16.msra.mxu0 0
  %1510 = vmatprep.subr.bf16.mxu0 0
  %1511 = vmatpush1.bf16.msra.mxu0 0
  %1512 = vmatprep.subr.bf16.mxu0 0
  %1513 = vmatpush1.bf16.msra.mxu0 0
  %1514 = vmatprep.subr.bf16.mxu0 0
  %1515 = vmatpush1.bf16.msra.mxu0 0
  %1516 = vmatprep.subr.bf16.mxu0 0
  %1517 = vmatpush1.bf16.msra.mxu0 0
  %1518 = vmatprep.mubr.bf16.mxu0 0
  %1519 = vmatmul.mubr.bf16.gmra.mrb[0].mxu0 %v1233
  %v1520 = vpop.f32.mrb[0].mxu0
  %v1521 = vadd.f32 %v1328, %v1520
  %v1522 = vpop.f32.mrb[0].mxu0
  %v1523 = vadd.f32 %v1330, %v1522
  %v1524 = vpop.f32.mrb[0].mxu0
  %v1525 = vadd.f32 %v1332, %v1524
  %v1526 = vpop.f32.mrb[0].mxu0
  %v1527 = vadd.f32 %v1334, %v1526
  %1528 = vmatprep.mubr.bf16.mxu0 0
  %1529 = vmatmul.mubr.bf16.gmra.mrb[0].mxu0 %v1236
  %v1530 = vpop.f32.mrb[0].mxu0
  %v1531 = vadd.f32 %v1338, %v1530
  %v1532 = vpop.f32.mrb[0].mxu0
  %v1533 = vadd.f32 %v1340, %v1532
  %v1534 = vpop.f32.mrb[0].mxu0
  %v1535 = vadd.f32 %v1342, %v1534
  %v1536 = vpop.f32.mrb[0].mxu0
  %v1537 = vadd.f32 %v1344, %v1536
  %1538 = vmatprep.mubr.bf16.mxu0 0
  %1539 = vmatmul.mubr.bf16.gmra.mrb[0].mxu0 %v1239
  %v1540 = vpop.f32.mrb[0].mxu0
  %v1541 = vadd.f32 %v1348, %v1540
  %v1542 = vpop.f32.mrb[0].mxu0
  %v1543 = vadd.f32 %v1350, %v1542
  %v1544 = vpop.f32.mrb[0].mxu0
  %v1545 = vadd.f32 %v1352, %v1544
  %v1546 = vpop.f32.mrb[0].mxu0
  %v1547 = vadd.f32 %v1354, %v1546
  %1548 = vmatprep.mubr.bf16.mxu0 0
  %1549 = vmatmul.mubr.bf16.gmra.mrb[0].mxu0 %v1242
  %v1550 = vpop.f32.mrb[0].mxu0
  %v1551 = vadd.f32 %v1358, %v1550
  %v1552 = vpop.f32.mrb[0].mxu0
  %v1553 = vadd.f32 %v1360, %v1552
  %v1554 = vpop.f32.mrb[0].mxu0
  %v1555 = vadd.f32 %v1362, %v1554
  %v1556 = vpop.f32.mrb[0].mxu0
  %v1557 = vadd.f32 %v1364, %v1556
  %1558 = vmatprep.mubr.bf16.mxu0 0
  %1559 = vmatmul.mubr.bf16.gmra.mrb[0].mxu0 %v1245
  %v1560 = vpop.f32.mrb[0].mxu0
  %v1561 = vadd.f32 %v1368, %v1560
  %v1562 = vpop.f32.mrb[0].mxu0
  %v1563 = vadd.f32 %v1370, %v1562
  %v1564 = vpop.f32.mrb[0].mxu0
  %v1565 = vadd.f32 %v1372, %v1564
  %v1566 = vpop.f32.mrb[0].mxu0
  %v1567 = vadd.f32 %v1374, %v1566
  %1568 = vmatprep.mubr.bf16.mxu0 0
  %1569 = vmatmul.mubr.bf16.gmra.mrb[0].mxu0 %v1248
  %v1570 = vpop.f32.mrb[0].mxu0
  %v1571 = vadd.f32 %v1378, %v1570
  %v1572 = vpop.f32.mrb[0].mxu0
  %v1573 = vadd.f32 %v1380, %v1572
  %v1574 = vpop.f32.mrb[0].mxu0
  %v1575 = vadd.f32 %v1382, %v1574
  %v1576 = vpop.f32.mrb[0].mxu0
  %v1577 = vadd.f32 %v1384, %v1576
  %1578 = vmatprep.mubr.bf16.mxu0 0
  %1579 = vmatmul.mubr.bf16.gmra.mrb[0].mxu0 %v1251
  %v1580 = vpop.f32.mrb[0].mxu0
  %v1581 = vadd.f32 %v1388, %v1580
  %v1582 = vpop.f32.mrb[0].mxu0
  %v1583 = vadd.f32 %v1390, %v1582
  %v1584 = vpop.f32.mrb[0].mxu0
  %v1585 = vadd.f32 %v1392, %v1584
  %v1586 = vpop.f32.mrb[0].mxu0
  %v1587 = vadd.f32 %v1394, %v1586
  %1588 = vmatprep.mubr.bf16.mxu0 0
  %1589 = vmatmul.mubr.bf16.gmra.mrb[0].mxu0 %v1254
  %v1590 = vpop.f32.mrb[0].mxu0
  %v1591 = vadd.f32 %v1398, %v1590
  %v1592 = vpop.f32.mrb[0].mxu0
  %v1593 = vadd.f32 %v1400, %v1592
  %v1594 = vpop.f32.mrb[0].mxu0
  %v1595 = vadd.f32 %v1402, %v1594
  %v1596 = vpop.f32.mrb[0].mxu0
  %v1597 = vadd.f32 %v1404, %v1596
  %1598 = vmatprep.mubr.bf16.mxu0 0
  %1599 = vmatmul.mubr.bf16.gmra.mrb[0].mxu0 %v1257
  %v1600 = vpop.f32.mrb[0].mxu0
  %v1601 = vadd.f32 %v1408, %v1600
  %v1602 = vpop.f32.mrb[0].mxu0
  %v1603 = vadd.f32 %v1410, %v1602
  %v1604 = vpop.f32.mrb[0].mxu0
  %v1605 = vadd.f32 %v1412, %v1604
  %v1606 = vpop.f32.mrb[0].mxu0
  %v1607 = vadd.f32 %v1414, %v1606
  %1608 = vmatprep.mubr.bf16.mxu0 0
  %1609 = vmatmul.mubr.bf16.gmra.mrb[0].mxu0 %v1260
  %v1610 = vpop.f32.mrb[0].mxu0
  %v1611 = vadd.f32 %v1418, %v1610
  %v1612 = vpop.f32.mrb[0].mxu0
  %v1613 = vadd.f32 %v1420, %v1612
  %v1614 = vpop.f32.mrb[0].mxu0
  %v1615 = vadd.f32 %v1422, %v1614
  %v1616 = vpop.f32.mrb[0].mxu0
  %v1617 = vadd.f32 %v1424, %v1616
  %1618 = vmatprep.mubr.bf16.mxu0 0
  %1619 = vmatmul.mubr.bf16.gmra.mrb[0].mxu0 %v1263
  %v1620 = vpop.f32.mrb[0].mxu0
  %v1621 = vadd.f32 %v1428, %v1620
  %v1622 = vpop.f32.mrb[0].mxu0
  %v1623 = vadd.f32 %v1430, %v1622
  %v1624 = vpop.f32.mrb[0].mxu0
  %v1625 = vadd.f32 %v1432, %v1624
  %v1626 = vpop.f32.mrb[0].mxu0
  %v1627 = vadd.f32 %v1434, %v1626
  %1628 = vmatprep.mubr.bf16.mxu0 0
  %1629 = vmatmul.mubr.bf16.gmra.mrb[0].mxu0 %v1266
  %v1630 = vpop.f32.mrb[0].mxu0
  %v1631 = vadd.f32 %v1438, %v1630
  %v1632 = vpop.f32.mrb[0].mxu0
  %v1633 = vadd.f32 %v1440, %v1632
  %v1634 = vpop.f32.mrb[0].mxu0
  %v1635 = vadd.f32 %v1442, %v1634
  %v1636 = vpop.f32.mrb[0].mxu0
  %v1637 = vadd.f32 %v1444, %v1636
  %1638 = vmatprep.mubr.bf16.mxu0 0
  %1639 = vmatmul.mubr.bf16.gmra.mrb[0].mxu0 %v1269
  %v1640 = vpop.f32.mrb[0].mxu0
  %v1641 = vadd.f32 %v1448, %v1640
  %v1642 = vpop.f32.mrb[0].mxu0
  %v1643 = vadd.f32 %v1450, %v1642
  %v1644 = vpop.f32.mrb[0].mxu0
  %v1645 = vadd.f32 %v1452, %v1644
  %v1646 = vpop.f32.mrb[0].mxu0
  %v1647 = vadd.f32 %v1454, %v1646
  %1648 = vmatprep.mubr.bf16.mxu0 0
  %1649 = vmatmul.mubr.bf16.gmra.mrb[0].mxu0 %v1272
  %v1650 = vpop.f32.mrb[0].mxu0
  %v1651 = vadd.f32 %v1458, %v1650
  %v1652 = vpop.f32.mrb[0].mxu0
  %v1653 = vadd.f32 %v1460, %v1652
  %v1654 = vpop.f32.mrb[0].mxu0
  %v1655 = vadd.f32 %v1462, %v1654
  %v1656 = vpop.f32.mrb[0].mxu0
  %v1657 = vadd.f32 %v1464, %v1656
  %1658 = vmatprep.mubr.bf16.mxu0 0
  %1659 = vmatmul.mubr.bf16.gmra.mrb[0].mxu0 %v1275
  %v1660 = vpop.f32.mrb[0].mxu0
  %v1661 = vadd.f32 %v1468, %v1660
  %v1662 = vpop.f32.mrb[0].mxu0
  %v1663 = vadd.f32 %v1470, %v1662
  %v1664 = vpop.f32.mrb[0].mxu0
  %v1665 = vadd.f32 %v1472, %v1664
  %v1666 = vpop.f32.mrb[0].mxu0
  %v1667 = vadd.f32 %v1474, %v1666
  %1668 = vmatprep.mubr.bf16.mxu0 0
  %1669 = vmatmul.mubr.bf16.gmra.mrb[0].mxu0 %v1278
  %v1670 = vpop.f32.mrb[0].mxu0
  %v1671 = vadd.f32 %v1478, %v1670
  %v1672 = vpop.f32.mrb[0].mxu0
  %v1673 = vadd.f32 %v1480, %v1672
  %v1674 = vpop.f32.mrb[0].mxu0
  %v1675 = vadd.f32 %v1482, %v1674
  %v1676 = vpop.f32.mrb[0].mxu0
  %v1677 = vadd.f32 %v1484, %v1676
  %1678 = vdwg.mxu0
  %1679 = vmatprep.subr.bf16.mxu0 %v1086
  %1680 = vmatpush1.bf16.msra.mxu0 %v1085
  %1681 = vmatprep.subr.bf16.mxu0 %v1090
  %1682 = vmatpush1.bf16.msra.mxu0 %v1089
  %1683 = vmatprep.subr.bf16.mxu0 %v1094
  %1684 = vmatpush1.bf16.msra.mxu0 %v1093
  %1685 = vmatprep.subr.bf16.mxu0 %v1098
  %1686 = vmatpush1.bf16.msra.mxu0 %v1097
  %1687 = vmatprep.subr.bf16.mxu0 %v1102
  %1688 = vmatpush1.bf16.msra.mxu0 %v1101
  %1689 = vmatprep.subr.bf16.mxu0 %v1106
  %1690 = vmatpush1.bf16.msra.mxu0 %v1105
  %1691 = vmatprep.subr.bf16.mxu0 %v1110
  %1692 = vmatpush1.bf16.msra.mxu0 %v1109
  %1693 = vmatprep.subr.bf16.mxu0 %v1114
  %1694 = vmatpush1.bf16.msra.mxu0 %v1113
  %1695 = vmatprep.subr.bf16.mxu0 %v1118
  %1696 = vmatpush1.bf16.msra.mxu0 %v1117
  %1697 = vmatprep.subr.bf16.mxu0 %v1122
  %1698 = vmatpush1.bf16.msra.mxu0 %v1121
  %1699 = vmatprep.subr.bf16.mxu0 %v1126
  %1700 = vmatpush1.bf16.msra.mxu0 %v1125
  %1701 = vmatprep.subr.bf16.mxu0 %v1130
  %1702 = vmatpush1.bf16.msra.mxu0 %v1129
  %1703 = vmatprep.subr.bf16.mxu0 %v1134
  %1704 = vmatpush1.bf16.msra.mxu0 %v1133
  %1705 = vmatprep.subr.bf16.mxu0 %v1138
  %1706 = vmatpush1.bf16.msra.mxu0 %v1137
  %1707 = vmatprep.subr.bf16.mxu0 %v1142
  %1708 = vmatpush1.bf16.msra.mxu0 %v1141
  %1709 = vmatprep.subr.bf16.mxu0 %v1146
  %1710 = vmatpush1.bf16.msra.mxu0 %v1145
  %1711 = vmatprep.mubr.bf16.mxu0 %v710
  %1712 = vmatmul.mubr.bf16.gmra.mrb[0].mxu0 %v709
  %v1713 = vpop.f32.mrb[0].mxu0
  %v1714 = vadd.f32 %v846, %v1713
  %v1715 = vpop.f32.mrb[0].mxu0
  %v1716 = vadd.f32 %v850, %v1715
  %v1717 = vpop.f32.mrb[0].mxu0
  %v1718 = vadd.f32 %v846, %v1717
  %v1719 = vpop.f32.mrb[0].mxu0
  %v1720 = vadd.f32 %v850, %v1719
  %1721 = vmatprep.mubr.bf16.mxu0 %v713
  %1722 = vmatmul.mubr.bf16.gmra.mrb[0].mxu0 %v712
  %v1723 = vpop.f32.mrb[0].mxu0
  %v1724 = vadd.f32 %v846, %v1723
  %v1725 = vpop.f32.mrb[0].mxu0
  %v1726 = vadd.f32 %v850, %v1725
  %v1727 = vpop.f32.mrb[0].mxu0
  %v1728 = vadd.f32 %v846, %v1727
  %v1729 = vpop.f32.mrb[0].mxu0
  %v1730 = vadd.f32 %v850, %v1729
  %1731 = vmatprep.mubr.bf16.mxu0 %v716
  %1732 = vmatmul.mubr.bf16.gmra.mrb[0].mxu0 %v715
  %v1733 = vpop.f32.mrb[0].mxu0
  %v1734 = vadd.f32 %v846, %v1733
  %v1735 = vpop.f32.mrb[0].mxu0
  %v1736 = vadd.f32 %v850, %v1735
  %v1737 = vpop.f32.mrb[0].mxu0
  %v1738 = vadd.f32 %v846, %v1737
  %v1739 = vpop.f32.mrb[0].mxu0
  %v1740 = vadd.f32 %v850, %v1739
  %1741 = vmatprep.mubr.bf16.mxu0 %v719
  %1742 = vmatmul.mubr.bf16.gmra.mrb[0].mxu0 %v718
  %v1743 = vpop.f32.mrb[0].mxu0
  %v1744 = vadd.f32 %v846, %v1743
  %v1745 = vpop.f32.mrb[0].mxu0
  %v1746 = vadd.f32 %v850, %v1745
  %v1747 = vpop.f32.mrb[0].mxu0
  %v1748 = vadd.f32 %v846, %v1747
  %v1749 = vpop.f32.mrb[0].mxu0
  %v1750 = vadd.f32 %v850, %v1749
  %1751 = vmatprep.mubr.bf16.mxu0 %v722
  %1752 = vmatmul.mubr.bf16.gmra.mrb[0].mxu0 %v721
  %v1753 = vpop.f32.mrb[0].mxu0
  %v1754 = vadd.f32 %v846, %v1753
  %v1755 = vpop.f32.mrb[0].mxu0
  %v1756 = vadd.f32 %v850, %v1755
  %v1757 = vpop.f32.mrb[0].mxu0
  %v1758 = vadd.f32 %v846, %v1757
  %v1759 = vpop.f32.mrb[0].mxu0
  %v1760 = vadd.f32 %v850, %v1759
  %1761 = vmatprep.mubr.bf16.mxu0 %v725
  %1762 = vmatmul.mubr.bf16.gmra.mrb[0].mxu0 %v724
  %v1763 = vpop.f32.mrb[0].mxu0
  %v1764 = vadd.f32 %v846, %v1763
  %v1765 = vpop.f32.mrb[0].mxu0
  %v1766 = vadd.f32 %v850, %v1765
  %v1767 = vpop.f32.mrb[0].mxu0
  %v1768 = vadd.f32 %v846, %v1767
  %v1769 = vpop.f32.mrb[0].mxu0
  %v1770 = vadd.f32 %v850, %v1769
  %1771 = vmatprep.mubr.bf16.mxu0 %v728
  %1772 = vmatmul.mubr.bf16.gmra.mrb[0].mxu0 %v727
  %v1773 = vpop.f32.mrb[0].mxu0
  %v1774 = vadd.f32 %v846, %v1773
  %v1775 = vpop.f32.mrb[0].mxu0
  %v1776 = vadd.f32 %v850, %v1775
  %v1777 = vpop.f32.mrb[0].mxu0
  %v1778 = vadd.f32 %v846, %v1777
  %v1779 = vpop.f32.mrb[0].mxu0
  %v1780 = vadd.f32 %v850, %v1779
  %1781 = vmatprep.mubr.bf16.mxu0 %v731
  %1782 = vmatmul.mubr.bf16.gmra.mrb[0].mxu0 %v730
  %v1783 = vpop.f32.mrb[0].mxu0
  %v1784 = vadd.f32 %v846, %v1783
  %v1785 = vpop.f32.mrb[0].mxu0
  %v1786 = vadd.f32 %v850, %v1785
  %v1787 = vpop.f32.mrb[0].mxu0
  %v1788 = vadd.f32 %v846, %v1787
  %v1789 = vpop.f32.mrb[0].mxu0
  %v1790 = vadd.f32 %v850, %v1789
  %1791 = vmatprep.mubr.bf16.mxu0 %v734
  %1792 = vmatmul.mubr.bf16.gmra.mrb[0].mxu0 %v733
  %v1793 = vpop.f32.mrb[0].mxu0
  %v1794 = vadd.f32 %v846, %v1793
  %v1795 = vpop.f32.mrb[0].mxu0
  %v1796 = vadd.f32 %v850, %v1795
  %v1797 = vpop.f32.mrb[0].mxu0
  %v1798 = vadd.f32 %v846, %v1797
  %v1799 = vpop.f32.mrb[0].mxu0
  %v1800 = vadd.f32 %v850, %v1799
  %1801 = vmatprep.mubr.bf16.mxu0 %v737
  %1802 = vmatmul.mubr.bf16.gmra.mrb[0].mxu0 %v736
  %v1803 = vpop.f32.mrb[0].mxu0
  %v1804 = vadd.f32 %v846, %v1803
  %v1805 = vpop.f32.mrb[0].mxu0
  %v1806 = vadd.f32 %v850, %v1805
  %v1807 = vpop.f32.mrb[0].mxu0
  %v1808 = vadd.f32 %v846, %v1807
  %v1809 = vpop.f32.mrb[0].mxu0
  %v1810 = vadd.f32 %v850, %v1809
  %1811 = vmatprep.mubr.bf16.mxu0 %v740
  %1812 = vmatmul.mubr.bf16.gmra.mrb[0].mxu0 %v739
  %v1813 = vpop.f32.mrb[0].mxu0
  %v1814 = vadd.f32 %v846, %v1813
  %v1815 = vpop.f32.mrb[0].mxu0
  %v1816 = vadd.f32 %v850, %v1815
  %v1817 = vpop.f32.mrb[0].mxu0
  %v1818 = vadd.f32 %v846, %v1817
  %v1819 = vpop.f32.mrb[0].mxu0
  %v1820 = vadd.f32 %v850, %v1819
  %1821 = vmatprep.mubr.bf16.mxu0 %v743
  %1822 = vmatmul.mubr.bf16.gmra.mrb[0].mxu0 %v742
  %v1823 = vpop.f32.mrb[0].mxu0
  %v1824 = vadd.f32 %v846, %v1823
  %v1825 = vpop.f32.mrb[0].mxu0
  %v1826 = vadd.f32 %v850, %v1825
  %v1827 = vpop.f32.mrb[0].mxu0
  %v1828 = vadd.f32 %v846, %v1827
  %v1829 = vpop.f32.mrb[0].mxu0
  %v1830 = vadd.f32 %v850, %v1829
  %1831 = vmatprep.mubr.bf16.mxu0 %v746
  %1832 = vmatmul.mubr.bf16.gmra.mrb[0].mxu0 %v745
  %v1833 = vpop.f32.mrb[0].mxu0
  %v1834 = vadd.f32 %v846, %v1833
  %v1835 = vpop.f32.mrb[0].mxu0
  %v1836 = vadd.f32 %v850, %v1835
  %v1837 = vpop.f32.mrb[0].mxu0
  %v1838 = vadd.f32 %v846, %v1837
  %v1839 = vpop.f32.mrb[0].mxu0
  %v1840 = vadd.f32 %v850, %v1839
  %1841 = vmatprep.mubr.bf16.mxu0 %v749
  %1842 = vmatmul.mubr.bf16.gmra.mrb[0].mxu0 %v748
  %v1843 = vpop.f32.mrb[0].mxu0
  %v1844 = vadd.f32 %v846, %v1843
  %v1845 = vpop.f32.mrb[0].mxu0
  %v1846 = vadd.f32 %v850, %v1845
  %v1847 = vpop.f32.mrb[0].mxu0
  %v1848 = vadd.f32 %v846, %v1847
  %v1849 = vpop.f32.mrb[0].mxu0
  %v1850 = vadd.f32 %v850, %v1849
  %1851 = vmatprep.mubr.bf16.mxu0 %v752
  %1852 = vmatmul.mubr.bf16.gmra.mrb[0].mxu0 %v751
  %v1853 = vpop.f32.mrb[0].mxu0
  %v1854 = vadd.f32 %v846, %v1853
  %v1855 = vpop.f32.mrb[0].mxu0
  %v1856 = vadd.f32 %v850, %v1855
  %v1857 = vpop.f32.mrb[0].mxu0
  %v1858 = vadd.f32 %v846, %v1857
  %v1859 = vpop.f32.mrb[0].mxu0
  %v1860 = vadd.f32 %v850, %v1859
  %1861 = vmatprep.mubr.bf16.mxu0 %v755
  %1862 = vmatmul.mubr.bf16.gmra.mrb[0].mxu0 %v754
  %v1863 = vpop.f32.mrb[0].mxu0
  %v1864 = vadd.f32 %v846, %v1863
  %v1865 = vpop.f32.mrb[0].mxu0
  %v1866 = vadd.f32 %v850, %v1865
  %v1867 = vpop.f32.mrb[0].mxu0
  %v1868 = vadd.f32 %v846, %v1867
  %v1869 = vpop.f32.mrb[0].mxu0
  %v1870 = vadd.f32 %v850, %v1869
  %1871 = vdwg.mxu0
  %1872 = vmatprep.subr.bf16.mxu0 %v1150
  %1873 = vmatpush1.bf16.msra.mxu0 %v1149
  %1874 = vmatprep.subr.bf16.mxu0 %v1154
  %1875 = vmatpush1.bf16.msra.mxu0 %v1153
  %1876 = vmatprep.subr.bf16.mxu0 %v1291
  %1877 = vmatpush1.bf16.msra.mxu0 %v1288
  %1878 = vmatprep.subr.bf16.mxu0 0
  %1879 = vmatpush1.bf16.msra.mxu0 0
  %1880 = vmatprep.subr.bf16.mxu0 0
  %1881 = vmatpush1.bf16.msra.mxu0 0
  %1882 = vmatprep.subr.bf16.mxu0 0
  %1883 = vmatpush1.bf16.msra.mxu0 0
  %1884 = vmatprep.subr.bf16.mxu0 0
  %1885 = vmatpush1.bf16.msra.mxu0 0
  %1886 = vmatprep.subr.bf16.mxu0 0
  %1887 = vmatpush1.bf16.msra.mxu0 0
  %1888 = vmatprep.subr.bf16.mxu0 0
  %1889 = vmatpush1.bf16.msra.mxu0 0
  %1890 = vmatprep.subr.bf16.mxu0 0
  %1891 = vmatpush1.bf16.msra.mxu0 0
  %1892 = vmatprep.subr.bf16.mxu0 0
  %1893 = vmatpush1.bf16.msra.mxu0 0
  %1894 = vmatprep.subr.bf16.mxu0 0
  %1895 = vmatpush1.bf16.msra.mxu0 0
  %1896 = vmatprep.subr.bf16.mxu0 0
  %1897 = vmatpush1.bf16.msra.mxu0 0
  %1898 = vmatprep.subr.bf16.mxu0 0
  %1899 = vmatpush1.bf16.msra.mxu0 0
  %1900 = vmatprep.subr.bf16.mxu0 0
  %1901 = vmatpush1.bf16.msra.mxu0 0
  %1902 = vmatprep.subr.bf16.mxu0 0
  %1903 = vmatpush1.bf16.msra.mxu0 0
  %1904 = vmatprep.mubr.bf16.mxu0 0
  %1905 = vmatmul.mubr.bf16.gmra.mrb[0].mxu0 %v1233
  %v1906 = vpop.f32.mrb[0].mxu0
  %v1907 = vadd.f32 %v1714, %v1906
  %v1908 = vpop.f32.mrb[0].mxu0
  %v1909 = vadd.f32 %v1716, %v1908
  %v1910 = vpop.f32.mrb[0].mxu0
  %v1911 = vadd.f32 %v1718, %v1910
  %v1912 = vpop.f32.mrb[0].mxu0
  %v1913 = vadd.f32 %v1720, %v1912
  %1914 = vmatprep.mubr.bf16.mxu0 0
  %1915 = vmatmul.mubr.bf16.gmra.mrb[0].mxu0 %v1236
  %v1916 = vpop.f32.mrb[0].mxu0
  %v1917 = vadd.f32 %v1724, %v1916
  %v1918 = vpop.f32.mrb[0].mxu0
  %v1919 = vadd.f32 %v1726, %v1918
  %v1920 = vpop.f32.mrb[0].mxu0
  %v1921 = vadd.f32 %v1728, %v1920
  %v1922 = vpop.f32.mrb[0].mxu0
  %v1923 = vadd.f32 %v1730, %v1922
  %1924 = vmatprep.mubr.bf16.mxu0 0
  %1925 = vmatmul.mubr.bf16.gmra.mrb[0].mxu0 %v1239
  %v1926 = vpop.f32.mrb[0].mxu0
  %v1927 = vadd.f32 %v1734, %v1926
  %v1928 = vpop.f32.mrb[0].mxu0
  %v1929 = vadd.f32 %v1736, %v1928
  %v1930 = vpop.f32.mrb[0].mxu0
  %v1931 = vadd.f32 %v1738, %v1930
  %v1932 = vpop.f32.mrb[0].mxu0
  %v1933 = vadd.f32 %v1740, %v1932
  %1934 = vmatprep.mubr.bf16.mxu0 0
  %1935 = vmatmul.mubr.bf16.gmra.mrb[0].mxu0 %v1242
  %v1936 = vpop.f32.mrb[0].mxu0
  %v1937 = vadd.f32 %v1744, %v1936
  %v1938 = vpop.f32.mrb[0].mxu0
  %v1939 = vadd.f32 %v1746, %v1938
  %v1940 = vpop.f32.mrb[0].mxu0
  %v1941 = vadd.f32 %v1748, %v1940
  %v1942 = vpop.f32.mrb[0].mxu0
  %v1943 = vadd.f32 %v1750, %v1942
  %1944 = vmatprep.mubr.bf16.mxu0 0
  %1945 = vmatmul.mubr.bf16.gmra.mrb[0].mxu0 %v1245
  %v1946 = vpop.f32.mrb[0].mxu0
  %v1947 = vadd.f32 %v1754, %v1946
  %v1948 = vpop.f32.mrb[0].mxu0
  %v1949 = vadd.f32 %v1756, %v1948
  %v1950 = vpop.f32.mrb[0].mxu0
  %v1951 = vadd.f32 %v1758, %v1950
  %v1952 = vpop.f32.mrb[0].mxu0
  %v1953 = vadd.f32 %v1760, %v1952
  %1954 = vmatprep.mubr.bf16.mxu0 0
  %1955 = vmatmul.mubr.bf16.gmra.mrb[0].mxu0 %v1248
  %v1956 = vpop.f32.mrb[0].mxu0
  %v1957 = vadd.f32 %v1764, %v1956
  %v1958 = vpop.f32.mrb[0].mxu0
  %v1959 = vadd.f32 %v1766, %v1958
  %v1960 = vpop.f32.mrb[0].mxu0
  %v1961 = vadd.f32 %v1768, %v1960
  %v1962 = vpop.f32.mrb[0].mxu0
  %v1963 = vadd.f32 %v1770, %v1962
  %1964 = vmatprep.mubr.bf16.mxu0 0
  %1965 = vmatmul.mubr.bf16.gmra.mrb[0].mxu0 %v1251
  %v1966 = vpop.f32.mrb[0].mxu0
  %v1967 = vadd.f32 %v1774, %v1966
  %v1968 = vpop.f32.mrb[0].mxu0
  %v1969 = vadd.f32 %v1776, %v1968
  %v1970 = vpop.f32.mrb[0].mxu0
  %v1971 = vadd.f32 %v1778, %v1970
  %v1972 = vpop.f32.mrb[0].mxu0
  %v1973 = vadd.f32 %v1780, %v1972
  %1974 = vmatprep.mubr.bf16.mxu0 0
  %1975 = vmatmul.mubr.bf16.gmra.mrb[0].mxu0 %v1254
  %v1976 = vpop.f32.mrb[0].mxu0
  %v1977 = vadd.f32 %v1784, %v1976
  %v1978 = vpop.f32.mrb[0].mxu0
  %v1979 = vadd.f32 %v1786, %v1978
  %v1980 = vpop.f32.mrb[0].mxu0
  %v1981 = vadd.f32 %v1788, %v1980
  %v1982 = vpop.f32.mrb[0].mxu0
  %v1983 = vadd.f32 %v1790, %v1982
  %1984 = vmatprep.mubr.bf16.mxu0 0
  %1985 = vmatmul.mubr.bf16.gmra.mrb[0].mxu0 %v1257
  %v1986 = vpop.f32.mrb[0].mxu0
  %v1987 = vadd.f32 %v1794, %v1986
  %v1988 = vpop.f32.mrb[0].mxu0
  %v1989 = vadd.f32 %v1796, %v1988
  %v1990 = vpop.f32.mrb[0].mxu0
  %v1991 = vadd.f32 %v1798, %v1990
  %v1992 = vpop.f32.mrb[0].mxu0
  %v1993 = vadd.f32 %v1800, %v1992
  %1994 = vmatprep.mubr.bf16.mxu0 0
  %1995 = vmatmul.mubr.bf16.gmra.mrb[0].mxu0 %v1260
  %v1996 = vpop.f32.mrb[0].mxu0
  %v1997 = vadd.f32 %v1804, %v1996
  %v1998 = vpop.f32.mrb[0].mxu0
  %v1999 = vadd.f32 %v1806, %v1998
  %v2000 = vpop.f32.mrb[0].mxu0
  %v2001 = vadd.f32 %v1808, %v2000
  %v2002 = vpop.f32.mrb[0].mxu0
  %v2003 = vadd.f32 %v1810, %v2002
  %2004 = vmatprep.mubr.bf16.mxu0 0
  %2005 = vmatmul.mubr.bf16.gmra.mrb[0].mxu0 %v1263
  %v2006 = vpop.f32.mrb[0].mxu0
  %v2007 = vadd.f32 %v1814, %v2006
  %v2008 = vpop.f32.mrb[0].mxu0
  %v2009 = vadd.f32 %v1816, %v2008
  %v2010 = vpop.f32.mrb[0].mxu0
  %v2011 = vadd.f32 %v1818, %v2010
  %v2012 = vpop.f32.mrb[0].mxu0
  %v2013 = vadd.f32 %v1820, %v2012
  %2014 = vmatprep.mubr.bf16.mxu0 0
  %2015 = vmatmul.mubr.bf16.gmra.mrb[0].mxu0 %v1266
  %v2016 = vpop.f32.mrb[0].mxu0
  %v2017 = vadd.f32 %v1824, %v2016
  %v2018 = vpop.f32.mrb[0].mxu0
  %v2019 = vadd.f32 %v1826, %v2018
  %v2020 = vpop.f32.mrb[0].mxu0
  %v2021 = vadd.f32 %v1828, %v2020
  %v2022 = vpop.f32.mrb[0].mxu0
  %v2023 = vadd.f32 %v1830, %v2022
  %2024 = vmatprep.mubr.bf16.mxu0 0
  %2025 = vmatmul.mubr.bf16.gmra.mrb[0].mxu0 %v1269
  %v2026 = vpop.f32.mrb[0].mxu0
  %v2027 = vadd.f32 %v1834, %v2026
  %v2028 = vpop.f32.mrb[0].mxu0
  %v2029 = vadd.f32 %v1836, %v2028
  %v2030 = vpop.f32.mrb[0].mxu0
  %v2031 = vadd.f32 %v1838, %v2030
  %v2032 = vpop.f32.mrb[0].mxu0
  %v2033 = vadd.f32 %v1840, %v2032
  %2034 = vmatprep.mubr.bf16.mxu0 0
  %2035 = vmatmul.mubr.bf16.gmra.mrb[0].mxu0 %v1272
  %v2036 = vpop.f32.mrb[0].mxu0
  %v2037 = vadd.f32 %v1844, %v2036
  %v2038 = vpop.f32.mrb[0].mxu0
  %v2039 = vadd.f32 %v1846, %v2038
  %v2040 = vpop.f32.mrb[0].mxu0
  %v2041 = vadd.f32 %v1848, %v2040
  %v2042 = vpop.f32.mrb[0].mxu0
  %v2043 = vadd.f32 %v1850, %v2042
  %2044 = vmatprep.mubr.bf16.mxu0 0
  %2045 = vmatmul.mubr.bf16.gmra.mrb[0].mxu0 %v1275
  %v2046 = vpop.f32.mrb[0].mxu0
  %v2047 = vadd.f32 %v1854, %v2046
  %v2048 = vpop.f32.mrb[0].mxu0
  %v2049 = vadd.f32 %v1856, %v2048
  %v2050 = vpop.f32.mrb[0].mxu0
  %v2051 = vadd.f32 %v1858, %v2050
  %v2052 = vpop.f32.mrb[0].mxu0
  %v2053 = vadd.f32 %v1860, %v2052
  %2054 = vmatprep.mubr.bf16.mxu0 0
  %2055 = vmatmul.mubr.bf16.gmra.mrb[0].mxu0 %v1278
  %v2056 = vpop.f32.mrb[0].mxu0
  %v2057 = vadd.f32 %v1864, %v2056
  %v2058 = vpop.f32.mrb[0].mxu0
  %v2059 = vadd.f32 %v1866, %v2058
  %v2060 = vpop.f32.mrb[0].mxu0
  %v2061 = vadd.f32 %v1868, %v2060
  %v2062 = vpop.f32.mrb[0].mxu0
  %v2063 = vadd.f32 %v1870, %v2062
  %2064 = vdwg.mxu0
  %v2065 = vmax.f32 %v1521, 0.0
  %v2066 = vmax.f32 %v1523, 0.0
  %v2067 = vmax.f32 %v1907, 0.0
  %v2068 = vmax.f32 %v1909, 0.0
  %v2069 = vmax.f32 %v1525, 0.0
  %v2070 = vmax.f32 %v1527, 0.0
  %v2071 = vmax.f32 %v1911, 0.0
  %v2072 = vmax.f32 %v1913, 0.0
  %v2073 = vmax.f32 %v1531, 0.0
  %v2074 = vmax.f32 %v1533, 0.0
  %v2075 = vmax.f32 %v1917, 0.0
  %v2076 = vmax.f32 %v1919, 0.0
  %v2077 = vmax.f32 %v1535, 0.0
  %v2078 = vmax.f32 %v1537, 0.0
  %v2079 = vmax.f32 %v1921, 0.0
  %v2080 = vmax.f32 %v1923, 0.0
  %v2081 = vmax.f32 %v1541, 0.0
  %v2082 = vmax.f32 %v1543, 0.0
  %v2083 = vmax.f32 %v1927, 0.0
  %v2084 = vmax.f32 %v1929, 0.0
  %v2085 = vmax.f32 %v1545, 0.0
  %v2086 = vmax.f32 %v1547, 0.0
  %v2087 = vmax.f32 %v1931, 0.0
  %v2088 = vmax.f32 %v1933, 0.0
  %v2089 = vmax.f32 %v1551, 0.0
  %v2090 = vmax.f32 %v1553, 0.0
  %v2091 = vmax.f32 %v1937, 0.0
  %v2092 = vmax.f32 %v1939, 0.0
  %v2093 = vmax.f32 %v1555, 0.0
  %v2094 = vmax.f32 %v1557, 0.0
  %v2095 = vmax.f32 %v1941, 0.0
  %v2096 = vmax.f32 %v1943, 0.0
  %v2097 = vmax.f32 %v1561, 0.0
  %v2098 = vmax.f32 %v1563, 0.0
  %v2099 = vmax.f32 %v1947, 0.0
  %v2100 = vmax.f32 %v1949, 0.0
  %v2101 = vmax.f32 %v1565, 0.0
  %v2102 = vmax.f32 %v1567, 0.0
  %v2103 = vmax.f32 %v1951, 0.0
  %v2104 = vmax.f32 %v1953, 0.0
  %v2105 = vmax.f32 %v1571, 0.0
  %v2106 = vmax.f32 %v1573, 0.0
  %v2107 = vmax.f32 %v1957, 0.0
  %v2108 = vmax.f32 %v1959, 0.0
  %v2109 = vmax.f32 %v1575, 0.0
  %v2110 = vmax.f32 %v1577, 0.0
  %v2111 = vmax.f32 %v1961, 0.0
  %v2112 = vmax.f32 %v1963, 0.0
  %v2113 = vmax.f32 %v1581, 0.0
  %v2114 = vmax.f32 %v1583, 0.0
  %v2115 = vmax.f32 %v1967, 0.0
  %v2116 = vmax.f32 %v1969, 0.0
  %v2117 = vmax.f32 %v1585, 0.0
  %v2118 = vmax.f32 %v1587, 0.0
  %v2119 = vmax.f32 %v1971, 0.0
  %v2120 = vmax.f32 %v1973, 0.0
  %v2121 = vmax.f32 %v1591, 0.0
  %v2122 = vmax.f32 %v1593, 0.0
  %v2123 = vmax.f32 %v1977, 0.0
  %v2124 = vmax.f32 %v1979, 0.0
  %v2125 = vmax.f32 %v1595, 0.0
  %v2126 = vmax.f32 %v1597, 0.0
  %v2127 = vmax.f32 %v1981, 0.0
  %v2128 = vmax.f32 %v1983, 0.0
  %v2129 = vmax.f32 %v1601, 0.0
  %v2130 = vmax.f32 %v1603, 0.0
  %v2131 = vmax.f32 %v1987, 0.0
  %v2132 = vmax.f32 %v1989, 0.0
  %v2133 = vmax.f32 %v1605, 0.0
  %v2134 = vmax.f32 %v1607, 0.0
  %v2135 = vmax.f32 %v1991, 0.0
  %v2136 = vmax.f32 %v1993, 0.0
  %v2137 = vmax.f32 %v1611, 0.0
  %v2138 = vmax.f32 %v1613, 0.0
  %v2139 = vmax.f32 %v1997, 0.0
  %v2140 = vmax.f32 %v1999, 0.0
  %v2141 = vmax.f32 %v1615, 0.0
  %v2142 = vmax.f32 %v1617, 0.0
  %v2143 = vmax.f32 %v2001, 0.0
  %v2144 = vmax.f32 %v2003, 0.0
  %v2145 = vmax.f32 %v1621, 0.0
  %v2146 = vmax.f32 %v1623, 0.0
  %v2147 = vmax.f32 %v2007, 0.0
  %v2148 = vmax.f32 %v2009, 0.0
  %v2149 = vmax.f32 %v1625, 0.0
  %v2150 = vmax.f32 %v1627, 0.0
  %v2151 = vmax.f32 %v2011, 0.0
  %v2152 = vmax.f32 %v2013, 0.0
  %v2153 = vmax.f32 %v1631, 0.0
  %v2154 = vmax.f32 %v1633, 0.0
  %v2155 = vmax.f32 %v2017, 0.0
  %v2156 = vmax.f32 %v2019, 0.0
  %v2157 = vmax.f32 %v1635, 0.0
  %v2158 = vmax.f32 %v1637, 0.0
  %v2159 = vmax.f32 %v2021, 0.0
  %v2160 = vmax.f32 %v2023, 0.0
  %v2161 = vmax.f32 %v1641, 0.0
  %v2162 = vmax.f32 %v1643, 0.0
  %v2163 = vmax.f32 %v2027, 0.0
  %v2164 = vmax.f32 %v2029, 0.0
  %v2165 = vmax.f32 %v1645, 0.0
  %v2166 = vmax.f32 %v1647, 0.0
  %v2167 = vmax.f32 %v2031, 0.0
  %v2168 = vmax.f32 %v2033, 0.0
  %v2169 = vmax.f32 %v1651, 0.0
  %v2170 = vmax.f32 %v1653, 0.0
  %v2171 = vmax.f32 %v2037, 0.0
  %v2172 = vmax.f32 %v2039, 0.0
  %v2173 = vmax.f32 %v1655, 0.0
  %v2174 = vmax.f32 %v1657, 0.0
  %v2175 = vmax.f32 %v2041, 0.0
  %v2176 = vmax.f32 %v2043, 0.0
  %v2177 = vmax.f32 %v1661, 0.0
  %v2178 = vmax.f32 %v1663, 0.0
  %v2179 = vmax.f32 %v2047, 0.0
  %v2180 = vmax.f32 %v2049, 0.0
  %v2181 = vmax.f32 %v1665, 0.0
  %v2182 = vmax.f32 %v1667, 0.0
  %v2183 = vmax.f32 %v2051, 0.0
  %v2184 = vmax.f32 %v2053, 0.0
  %v2185 = vmax.f32 %v1671, 0.0
  %v2186 = vmax.f32 %v1673, 0.0
  %v2187 = vmax.f32 %v2057, 0.0
  %v2188 = vmax.f32 %v2059, 0.0
  %v2189 = vmax.f32 %v1675, 0.0
  %v2190 = vmax.f32 %v1677, 0.0
  %v2191 = vmax.f32 %v2061, 0.0
  %v2192 = vmax.f32 %v2063, 0.0
  %v2193 = vpack.c.bf16 %v2069, %v2065
  %v2194 = vpack.c.bf16 %v2070, %v2066
  %v2195 = vpack.c.bf16 %v2071, %v2067
  %v2196 = vpack.c.bf16 %v2072, %v2068
  %v2197 = vpack.c.bf16 %v2077, %v2073
  %v2198 = vpack.c.bf16 %v2078, %v2074
  %v2199 = vpack.c.bf16 %v2079, %v2075
  %v2200 = vpack.c.bf16 %v2080, %v2076
  %v2201 = vpack.c.bf16 %v2085, %v2081
  %v2202 = vpack.c.bf16 %v2086, %v2082
  %v2203 = vpack.c.bf16 %v2087, %v2083
  %v2204 = vpack.c.bf16 %v2088, %v2084
  %v2205 = vpack.c.bf16 %v2093, %v2089
  %v2206 = vpack.c.bf16 %v2094, %v2090
  %v2207 = vpack.c.bf16 %v2095, %v2091
  %v2208 = vpack.c.bf16 %v2096, %v2092
  %v2209 = vpack.c.bf16 %v2101, %v2097
  %v2210 = vpack.c.bf16 %v2102, %v2098
  %v2211 = vpack.c.bf16 %v2103, %v2099
  %v2212 = vpack.c.bf16 %v2104, %v2100
  %v2213 = vpack.c.bf16 %v2109, %v2105
  %v2214 = vpack.c.bf16 %v2110, %v2106
  %v2215 = vpack.c.bf16 %v2111, %v2107
  %v2216 = vpack.c.bf16 %v2112, %v2108
  %v2217 = vpack.c.bf16 %v2117, %v2113
  %v2218 = vpack.c.bf16 %v2118, %v2114
  %v2219 = vpack.c.bf16 %v2119, %v2115
  %v2220 = vpack.c.bf16 %v2120, %v2116
  %v2221 = vpack.c.bf16 %v2125, %v2121
  %v2222 = vpack.c.bf16 %v2126, %v2122
  %v2223 = vpack.c.bf16 %v2127, %v2123
  %v2224 = vpack.c.bf16 %v2128, %v2124
  %v2225 = vpack.c.bf16 %v2133, %v2129
  %v2226 = vpack.c.bf16 %v2134, %v2130
  %v2227 = vpack.c.bf16 %v2135, %v2131
  %v2228 = vpack.c.bf16 %v2136, %v2132
  %v2229 = vpack.c.bf16 %v2141, %v2137
  %v2230 = vpack.c.bf16 %v2142, %v2138
  %v2231 = vpack.c.bf16 %v2143, %v2139
  %v2232 = vpack.c.bf16 %v2144, %v2140
  %v2233 = vpack.c.bf16 %v2149, %v2145
  %v2234 = vpack.c.bf16 %v2150, %v2146
  %v2235 = vpack.c.bf16 %v2151, %v2147
  %v2236 = vpack.c.bf16 %v2152, %v2148
  %v2237 = vpack.c.bf16 %v2157, %v2153
  %v2238 = vpack.c.bf16 %v2158, %v2154
  %v2239 = vpack.c.bf16 %v2159, %v2155
  %v2240 = vpack.c.bf16 %v2160, %v2156
  %v2241 = vpack.c.bf16 %v2165, %v2161
  %v2242 = vpack.c.bf16 %v2166, %v2162
  %v2243 = vpack.c.bf16 %v2167, %v2163
  %v2244 = vpack.c.bf16 %v2168, %v2164
  %v2245 = vpack.c.bf16 %v2173, %v2169
  %v2246 = vpack.c.bf16 %v2174, %v2170
  %v2247 = vpack.c.bf16 %v2175, %v2171
  %v2248 = vpack.c.bf16 %v2176, %v2172
  %v2249 = vpack.c.bf16 %v2181, %v2177
  %v2250 = vpack.c.bf16 %v2182, %v2178
  %v2251 = vpack.c.bf16 %v2183, %v2179
  %v2252 = vpack.c.bf16 %v2184, %v2180
  %v2253 = vpack.c.bf16 %v2189, %v2185
  %v2254 = vpack.c.bf16 %v2190, %v2186
  %v2255 = vpack.c.bf16 %v2191, %v2187
  %v2256 = vpack.c.bf16 %v2192, %v2188
  %v2257 = vld [vmem:[%s5] sm:$0xff]
  %v2258 = vld [vmem:[%s5 + $0x8] sm:$0xff]
  %v2259 = vld [vmem:[%s5 + $0x10] sm:$0xff]
  %v2260 = vld [vmem:[%s5 + $0x18] sm:$0xff]
  %v2261 = vld [vmem:[%s5 + $0x20] sm:$0xff]
  %v2262 = vld [vmem:[%s5 + $0x28] sm:$0xff]
  %v2263 = vld [vmem:[%s5 + $0x30] sm:$0xff]
  %v2264 = vld [vmem:[%s5 + $0x38] sm:$0xff]
  %v2265 = vld [vmem:[%s5 + $0x40] sm:$0xff]
  %v2266 = vld [vmem:[%s5 + $0x48] sm:$0xff]
  %v2267 = vld [vmem:[%s5 + $0x50] sm:$0xff]
  %v2268 = vld [vmem:[%s5 + $0x58] sm:$0xff]
  %v2269 = vld [vmem:[%s5 + $0x60] sm:$0xff]
  %v2270 = vld [vmem:[%s5 + $0x68] sm:$0xff]
  %v2271 = vld [vmem:[%s5 + $0x70] sm:$0xff]
  %v2272 = vld [vmem:[%s5 + $0x78] sm:$0xff]
  %v2273 = vld [vmem:[%s5 + $0x80] sm:$0xff]
  %v2274 = vld [vmem:[%s5 + $0x88] sm:$0xff]
  %v2275 = vld [vmem:[%s5 + $0x90] sm:$0xff]
  %v2276 = vld [vmem:[%s5 + $0x98] sm:$0xff]
  %v2277 = vld [vmem:[%s5 + $0xa0] sm:$0xff]
  %v2278 = vld [vmem:[%s5 + $0xa8] sm:$0xff]
  %v2279 = vld [vmem:[%s5 + $0xb0] sm:$0xff]
  %v2280 = vld [vmem:[%s5 + $0xb8] sm:$0xff]
  %v2281 = vld [vmem:[%s5 + $0xc0] sm:$0xff]
  %v2282 = vld [vmem:[%s5 + $0xc8] sm:$0xff]
  %v2283 = vld [vmem:[%s5 + $0xd0] sm:$0xff]
  %v2284 = vld [vmem:[%s5 + $0xd8] sm:$0xff]
  %v2285 = vld [vmem:[%s5 + $0xe0] sm:$0xff]
  %v2286 = vld [vmem:[%s5 + $0xe8] sm:$0xff]
  %v2287 = vld [vmem:[%s5 + $0xf0] sm:$0xff]
  %v2288 = vld [vmem:[%s5 + $0xf8] sm:$0xff]
  %v2289 = vld [vmem:[%s5 + $0x100] sm:$0xff]
  %v2290 = vld [vmem:[%s5 + $0x108] sm:$0xff]
  %v2291 = vld [vmem:[%s5 + $0x110] sm:$0xff]
  %v2292 = vld [vmem:[%s5 + $0x118] sm:$0xff]
  %v2293 = vld [vmem:[%s5 + $0x120] sm:$0xff]
  %v2294 = vld [vmem:[%s5 + $0x128] sm:$0xff]
  %v2295 = vld [vmem:[%s5 + $0x130] sm:$0xff]
  %v2296 = vld [vmem:[%s5 + $0x138] sm:$0xff]
  %v2297 = vld [vmem:[%s5 + $0x140] sm:$0xff]
  %v2298 = vld [vmem:[%s5 + $0x148] sm:$0xff]
  %v2299 = vld [vmem:[%s5 + $0x150] sm:$0xff]
  %v2300 = vld [vmem:[%s5 + $0x158] sm:$0xff]
  %v2301 = vld [vmem:[%s5 + $0x160] sm:$0xff]
  %v2302 = vld [vmem:[%s5 + $0x168] sm:$0xff]
  %v2303 = vld [vmem:[%s5 + $0x170] sm:$0xff]
  %v2304 = vld [vmem:[%s5 + $0x178] sm:$0xff]
  %v2305 = vld [vmem:[%s5 + $0x180] sm:$0xff]
  %v2306 = vld [vmem:[%s5 + $0x188] sm:$0xff]
  %v2307 = vld [vmem:[%s5 + $0x190] sm:$0xff]
  %v2308 = vld [vmem:[%s5 + $0x198] sm:$0xff]
  %v2309 = vld [vmem:[%s5 + $0x1a0] sm:$0xff]
  %v2310 = vld [vmem:[%s5 + $0x1a8] sm:$0xff]
  %v2311 = vld [vmem:[%s5 + $0x1b0] sm:$0xff]
  %v2312 = vld [vmem:[%s5 + $0x1b8] sm:$0xff]
  %v2313 = vld [vmem:[%s5 + $0x1c0] sm:$0xff]
  %v2314 = vld [vmem:[%s5 + $0x1c8] sm:$0xff]
  %v2315 = vld [vmem:[%s5 + $0x1d0] sm:$0xff]
  %v2316 = vld [vmem:[%s5 + $0x1d8] sm:$0xff]
  %v2317 = vld [vmem:[%s5 + $0x1e0] sm:$0xff]
  %v2318 = vld [vmem:[%s5 + $0x1e8] sm:$0xff]
  %v2319 = vld [vmem:[%s5 + $0x1f0] sm:$0xff]
  %v2320 = vld [vmem:[%s5 + $0x1f8] sm:$0xff]
  %v2321 = vld [vmem:[%s5 + $0x200] sm:$0xff]
  %v2322 = vld [vmem:[%s5 + $0x208] sm:$0xff]
  %v2323 = vld [vmem:[%s5 + $0x210] sm:$0xff]
  %v2324 = vld [vmem:[%s5 + $0x218] sm:$0xff]
  %v2325 = vld [vmem:[%s5 + $0x220] sm:$0xff]
  %v2326 = vld [vmem:[%s5 + $0x228] sm:$0xff]
  %v2327 = vld [vmem:[%s5 + $0x230] sm:$0xff]
  %v2328 = vld [vmem:[%s5 + $0x238] sm:$0xff]
  %v2329 = vld [vmem:[%s5 + $0x240] sm:$0xff]
  %v2330 = vld [vmem:[%s5 + $0x248] sm:$0xff]
  %v2331 = vld [vmem:[%s5 + $0x250] sm:$0xff]
  %v2332 = vld [vmem:[%s5 + $0x258] sm:$0xff]
  %v2333 = vld [vmem:[%s5 + $0x260] sm:$0xff]
  %v2334 = vld [vmem:[%s5 + $0x268] sm:$0xff]
  %v2335 = vld [vmem:[%s5 + $0x270] sm:$0xff]
  %v2336 = vld [vmem:[%s5 + $0x278] sm:$0xff]
  %v2337 = vld [vmem:[%s5 + $0x280] sm:$0xff]
  %v2338 = vld [vmem:[%s5 + $0x288] sm:$0xff]
  %v2339 = vld [vmem:[%s5 + $0x290] sm:$0xff]
  %v2340 = vld [vmem:[%s5 + $0x298] sm:$0xff]
  %v2341 = vld [vmem:[%s5 + $0x2a0] sm:$0xff]
  %v2342 = vld [vmem:[%s5 + $0x2a8] sm:$0xff]
  %v2343 = vld [vmem:[%s5 + $0x2b0] sm:$0xff]
  %v2344 = vld [vmem:[%s5 + $0x2b8] sm:$0xff]
  %v2345 = vld [vmem:[%s5 + $0x2c0] sm:$0xff]
  %v2346 = vld [vmem:[%s5 + $0x2c8] sm:$0xff]
  %v2347 = vld [vmem:[%s5 + $0x2d0] sm:$0xff]
  %v2348 = vld [vmem:[%s5 + $0x2d8] sm:$0xff]
  %v2349 = vld [vmem:[%s5 + $0x2e0] sm:$0xff]
  %v2350 = vld [vmem:[%s5 + $0x2e8] sm:$0xff]
  %v2351 = vld [vmem:[%s5 + $0x2f0] sm:$0xff]
  %v2352 = vld [vmem:[%s5 + $0x2f8] sm:$0xff]
  %v2353 = vld [vmem:[%s5 + $0x300] sm:$0xff]
  %v2354 = vld [vmem:[%s5 + $0x308] sm:$0xff]
  %v2355 = vld [vmem:[%s5 + $0x310] sm:$0xff]
  %v2356 = vld [vmem:[%s5 + $0x318] sm:$0xff]
  %v2357 = vld [vmem:[%s6] sm:$0xf]
  %v2359 = vlaneseq
  %v2360 = vshrl.u32 %v2359, 7
  %v2361 = vsub.s32 0, %v2360
  %v2362 = vrot.slane %v2357, %v2361
  %v2363 = vlaneseq
  %v2364 = vshrl.u32 %v2363, 7
  %v2365 = vsub.s32 1, %v2364
  %v2366 = vrot.slane %v2357, %v2365
  %v2367 = vlaneseq
  %v2368 = vshrl.u32 %v2367, 7
  %v2369 = vsub.s32 2, %v2368
  %v2370 = vrot.slane %v2357, %v2369
  %v2371 = vlaneseq
  %v2372 = vshrl.u32 %v2371, 7
  %v2373 = vsub.s32 3, %v2372
  %v2374 = vrot.slane %v2357, %v2373
  %v2479 = vunpack.c.l.b16 %v2257
  %v2480 = vunpack.c.h.b16 %v2257
  %v2481 = vunpack.c.l.b16 %v2258
  %v2482 = vunpack.c.h.b16 %v2258
  %v2483 = vunpack.c.l.b16 %v2259
  %v2484 = vunpack.c.h.b16 %v2259
  %v2485 = vunpack.c.l.b16 %v2260
  %v2486 = vunpack.c.h.b16 %v2260
  %v2487 = vunpack.c.l.b16 %v2261
  %v2488 = vunpack.c.h.b16 %v2261
  %v2489 = vunpack.c.l.b16 %v2262
  %v2490 = vunpack.c.h.b16 %v2262
  %v2491 = vunpack.c.l.b16 %v2263
  %v2492 = vunpack.c.h.b16 %v2263
  %v2493 = vunpack.c.l.b16 %v2264
  %v2494 = vunpack.c.h.b16 %v2264
  %v2495 = vunpack.c.l.b16 %v2265
  %v2496 = vunpack.c.h.b16 %v2265
  %v2497 = vunpack.c.l.b16 %v2266
  %v2498 = vunpack.c.h.b16 %v2266
  %v2499 = vunpack.c.l.b16 %v2267
  %v2500 = vunpack.c.h.b16 %v2267
  %v2501 = vunpack.c.l.b16 %v2268
  %v2502 = vunpack.c.h.b16 %v2268
  %v2503 = vunpack.c.l.b16 %v2269
  %v2504 = vunpack.c.h.b16 %v2269
  %v2505 = vunpack.c.l.b16 %v2270
  %v2506 = vunpack.c.h.b16 %v2270
  %v2507 = vunpack.c.l.b16 %v2271
  %v2508 = vunpack.c.h.b16 %v2271
  %v2509 = vunpack.c.l.b16 %v2272
  %v2510 = vunpack.c.h.b16 %v2272
  %v2511 = vunpack.c.l.b16 %v2273
  %v2512 = vunpack.c.h.b16 %v2273
  %v2513 = vunpack.c.l.b16 %v2274
  %v2514 = vunpack.c.h.b16 %v2274
  %v2515 = vunpack.c.l.b16 %v2275
  %v2516 = vunpack.c.h.b16 %v2275
  %v2517 = vunpack.c.l.b16 %v2276
  %v2518 = vunpack.c.h.b16 %v2276
  %v2519 = vunpack.c.l.b16 %v2277
  %v2520 = vunpack.c.h.b16 %v2277
  %v2521 = vunpack.c.l.b16 %v2278
  %v2522 = vunpack.c.h.b16 %v2278
  %v2523 = vunpack.c.l.b16 %v2279
  %v2524 = vunpack.c.h.b16 %v2279
  %v2525 = vunpack.c.l.b16 %v2280
  %v2526 = vunpack.c.h.b16 %v2280
  %v2527 = vunpack.c.l.b16 %v2281
  %v2528 = vunpack.c.h.b16 %v2281
  %v2529 = vunpack.c.l.b16 %v2282
  %v2530 = vunpack.c.h.b16 %v2282
  %v2531 = vunpack.c.l.b16 %v2283
  %v2532 = vunpack.c.h.b16 %v2283
  %v2533 = vunpack.c.l.b16 %v2284
  %v2534 = vunpack.c.h.b16 %v2284
  %v2535 = vunpack.c.l.b16 %v2285
  %v2536 = vunpack.c.h.b16 %v2285
  %v2537 = vunpack.c.l.b16 %v2286
  %v2538 = vunpack.c.h.b16 %v2286
  %v2539 = vunpack.c.l.b16 %v2287
  %v2540 = vunpack.c.h.b16 %v2287
  %v2541 = vunpack.c.l.b16 %v2288
  %v2542 = vunpack.c.h.b16 %v2288
  %v2543 = vunpack.c.l.b16 %v2289
  %v2544 = vunpack.c.h.b16 %v2289
  %v2545 = vunpack.c.l.b16 %v2290
  %v2546 = vunpack.c.h.b16 %v2290
  %v2547 = vunpack.c.l.b16 %v2291
  %v2548 = vunpack.c.h.b16 %v2291
  %v2549 = vunpack.c.l.b16 %v2292
  %v2550 = vunpack.c.h.b16 %v2292
  %v2551 = vunpack.c.l.b16 %v2293
  %v2552 = vunpack.c.h.b16 %v2293
  %v2553 = vunpack.c.l.b16 %v2294
  %v2554 = vunpack.c.h.b16 %v2294
  %v2555 = vunpack.c.l.b16 %v2295
  %v2556 = vunpack.c.h.b16 %v2295
  %v2557 = vunpack.c.l.b16 %v2296
  %v2558 = vunpack.c.h.b16 %v2296
  %v2559 = vunpack.c.l.b16 %v2297
  %v2560 = vunpack.c.h.b16 %v2297
  %v2561 = vunpack.c.l.b16 %v2298
  %v2562 = vunpack.c.h.b16 %v2298
  %v2563 = vunpack.c.l.b16 %v2299
  %v2564 = vunpack.c.h.b16 %v2299
  %v2565 = vunpack.c.l.b16 %v2300
  %v2566 = vunpack.c.h.b16 %v2300
  %v2567 = vunpack.c.l.b16 %v2301
  %v2568 = vunpack.c.h.b16 %v2301
  %v2569 = vunpack.c.l.b16 %v2302
  %v2570 = vunpack.c.h.b16 %v2302
  %v2571 = vunpack.c.l.b16 %v2303
  %v2572 = vunpack.c.h.b16 %v2303
  %v2573 = vunpack.c.l.b16 %v2304
  %v2574 = vunpack.c.h.b16 %v2304
  %v2575 = vunpack.c.l.b16 %v2305
  %v2576 = vunpack.c.h.b16 %v2305
  %v2577 = vunpack.c.l.b16 %v2306
  %v2578 = vunpack.c.h.b16 %v2306
  %v2579 = vunpack.c.l.b16 %v2307
  %v2580 = vunpack.c.h.b16 %v2307
  %v2581 = vunpack.c.l.b16 %v2308
  %v2582 = vunpack.c.h.b16 %v2308
  %v2583 = vunpack.c.l.b16 %v2309
  %v2584 = vunpack.c.h.b16 %v2309
  %v2585 = vunpack.c.l.b16 %v2310
  %v2586 = vunpack.c.h.b16 %v2310
  %v2587 = vunpack.c.l.b16 %v2311
  %v2588 = vunpack.c.h.b16 %v2311
  %v2589 = vunpack.c.l.b16 %v2312
  %v2590 = vunpack.c.h.b16 %v2312
  %v2591 = vunpack.c.l.b16 %v2313
  %v2592 = vunpack.c.h.b16 %v2313
  %v2593 = vunpack.c.l.b16 %v2314
  %v2594 = vunpack.c.h.b16 %v2314
  %v2595 = vunpack.c.l.b16 %v2315
  %v2596 = vunpack.c.h.b16 %v2315
  %v2597 = vunpack.c.l.b16 %v2316
  %v2598 = vunpack.c.h.b16 %v2316
  %v2599 = vunpack.c.l.b16 %v2317
  %v2600 = vunpack.c.h.b16 %v2317
  %v2601 = vunpack.c.l.b16 %v2318
  %v2602 = vunpack.c.h.b16 %v2318
  %v2603 = vunpack.c.l.b16 %v2319
  %v2604 = vunpack.c.h.b16 %v2319
  %v2605 = vunpack.c.l.b16 %v2320
  %v2606 = vunpack.c.h.b16 %v2320
  %v2607 = vunpack.c.l.b16 %v2321
  %v2608 = vunpack.c.h.b16 %v2321
  %v2609 = vunpack.c.l.b16 %v2322
  %v2610 = vunpack.c.h.b16 %v2322
  %v2611 = vunpack.c.l.b16 %v2323
  %v2612 = vunpack.c.h.b16 %v2323
  %v2613 = vunpack.c.l.b16 %v2324
  %v2614 = vunpack.c.h.b16 %v2324
  %v2615 = vunpack.c.l.b16 %v2325
  %v2616 = vunpack.c.h.b16 %v2325
  %v2617 = vunpack.c.l.b16 %v2326
  %v2618 = vunpack.c.h.b16 %v2326
  %v2619 = vunpack.c.l.b16 %v2327
  %v2620 = vunpack.c.h.b16 %v2327
  %v2621 = vunpack.c.l.b16 %v2328
  %v2622 = vunpack.c.h.b16 %v2328
  %v2623 = vunpack.c.l.b16 %v2329
  %v2624 = vunpack.c.h.b16 %v2329
  %v2625 = vunpack.c.l.b16 %v2330
  %v2626 = vunpack.c.h.b16 %v2330
  %v2627 = vunpack.c.l.b16 %v2331
  %v2628 = vunpack.c.h.b16 %v2331
  %v2629 = vunpack.c.l.b16 %v2332
  %v2630 = vunpack.c.h.b16 %v2332
  %v2631 = vunpack.c.l.b16 %v2333
  %v2632 = vunpack.c.h.b16 %v2333
  %v2633 = vunpack.c.l.b16 %v2334
  %v2634 = vunpack.c.h.b16 %v2334
  %v2635 = vunpack.c.l.b16 %v2335
  %v2636 = vunpack.c.h.b16 %v2335
  %v2637 = vunpack.c.l.b16 %v2336
  %v2638 = vunpack.c.h.b16 %v2336
  %v2639 = vunpack.c.l.b16 %v2337
  %v2640 = vunpack.c.h.b16 %v2337
  %v2641 = vunpack.c.l.b16 %v2338
  %v2642 = vunpack.c.h.b16 %v2338
  %v2643 = vunpack.c.l.b16 %v2339
  %v2644 = vunpack.c.h.b16 %v2339
  %v2645 = vunpack.c.l.b16 %v2340
  %v2646 = vunpack.c.h.b16 %v2340
  %v2647 = vunpack.c.l.b16 %v2341
  %v2648 = vunpack.c.h.b16 %v2341
  %v2649 = vunpack.c.l.b16 %v2342
  %v2650 = vunpack.c.h.b16 %v2342
  %v2651 = vunpack.c.l.b16 %v2343
  %v2652 = vunpack.c.h.b16 %v2343
  %v2653 = vunpack.c.l.b16 %v2344
  %v2654 = vunpack.c.h.b16 %v2344
  %v2655 = vunpack.c.l.b16 %v2345
  %v2656 = vunpack.c.h.b16 %v2345
  %v2657 = vunpack.c.l.b16 %v2346
  %v2658 = vunpack.c.h.b16 %v2346
  %v2659 = vunpack.c.l.b16 %v2347
  %v2660 = vunpack.c.h.b16 %v2347
  %v2661 = vunpack.c.l.b16 %v2348
  %v2662 = vunpack.c.h.b16 %v2348
  %v2663 = vunpack.c.l.b16 %v2349
  %v2664 = vunpack.c.h.b16 %v2349
  %v2665 = vunpack.c.l.b16 %v2350
  %v2666 = vunpack.c.h.b16 %v2350
  %v2667 = vunpack.c.l.b16 %v2351
  %v2668 = vunpack.c.h.b16 %v2351
  %v2669 = vunpack.c.l.b16 %v2352
  %v2670 = vunpack.c.h.b16 %v2352
  %v2671 = vunpack.c.l.b16 %v2353
  %v2672 = vunpack.c.h.b16 %v2353
  %v2673 = vunpack.c.l.b16 %v2354
  %v2674 = vunpack.c.h.b16 %v2354
  %v2675 = vunpack.c.l.b16 %v2355
  %v2676 = vunpack.c.h.b16 %v2355
  %v2677 = vunpack.c.l.b16 %v2356
  %v2678 = vunpack.c.h.b16 %v2356
  %v2679 = vpack.c.b16 %v2483, %v2479
  %v2680 = vpack.c.b16 %v2484, %v2480
  %v2681 = vpack.c.b16 %v2485, %v2481
  %v2682 = vpack.c.b16 %v2486, %v2482
  %v2683 = vpack.c.b16 %v2491, %v2487
  %v2684 = vpack.c.b16 %v2492, %v2488
  %v2685 = vpack.c.b16 %v2493, %v2489
  %v2686 = vpack.c.b16 %v2494, %v2490
  %v2687 = vpack.c.b16 %v2499, %v2495
  %v2688 = vpack.c.b16 %v2500, %v2496
  %v2689 = vpack.c.b16 %v2501, %v2497
  %v2690 = vpack.c.b16 %v2502, %v2498
  %v2691 = vpack.c.b16 %v2507, %v2503
  %v2692 = vpack.c.b16 %v2508, %v2504
  %v2693 = vpack.c.b16 %v2509, %v2505
  %v2694 = vpack.c.b16 %v2510, %v2506
  %v2695 = vpack.c.b16 %v2515, %v2511
  %v2696 = vpack.c.b16 %v2516, %v2512
  %v2697 = vpack.c.b16 %v2517, %v2513
  %v2698 = vpack.c.b16 %v2518, %v2514
  %v2699 = vpack.c.b16 %v2523, %v2519
  %v2700 = vpack.c.b16 %v2524, %v2520
  %v2701 = vpack.c.b16 %v2525, %v2521
  %v2702 = vpack.c.b16 %v2526, %v2522
  %v2703 = vpack.c.b16 %v2531, %v2527
  %v2704 = vpack.c.b16 %v2532, %v2528
  %v2705 = vpack.c.b16 %v2533, %v2529
  %v2706 = vpack.c.b16 %v2534, %v2530
  %v2707 = vpack.c.b16 %v2539, %v2535
  %v2708 = vpack.c.b16 %v2540, %v2536
  %v2709 = vpack.c.b16 %v2541, %v2537
  %v2710 = vpack.c.b16 %v2542, %v2538
  %v2711 = vpack.c.b16 %v2547, %v2543
  %v2712 = vpack.c.b16 %v2548, %v2544
  %v2713 = vpack.c.b16 %v2549, %v2545
  %v2714 = vpack.c.b16 %v2550, %v2546
  %v2715 = vpack.c.b16 %v2555, %v2551
  %v2716 = vpack.c.b16 %v2556, %v2552
  %v2717 = vpack.c.b16 %v2557, %v2553
  %v2718 = vpack.c.b16 %v2558, %v2554
  %v2719 = vpack.c.b16 %v2563, %v2559
  %v2720 = vpack.c.b16 %v2564, %v2560
  %v2721 = vpack.c.b16 %v2565, %v2561
  %v2722 = vpack.c.b16 %v2566, %v2562
  %v2723 = vpack.c.b16 %v2571, %v2567
  %v2724 = vpack.c.b16 %v2572, %v2568
  %v2725 = vpack.c.b16 %v2573, %v2569
  %v2726 = vpack.c.b16 %v2574, %v2570
  %v2727 = vpack.c.b16 %v2579, %v2575
  %v2728 = vpack.c.b16 %v2580, %v2576
  %v2729 = vpack.c.b16 %v2581, %v2577
  %v2730 = vpack.c.b16 %v2582, %v2578
  %v2731 = vpack.c.b16 %v2587, %v2583
  %v2732 = vpack.c.b16 %v2588, %v2584
  %v2733 = vpack.c.b16 %v2589, %v2585
  %v2734 = vpack.c.b16 %v2590, %v2586
  %v2735 = vpack.c.b16 %v2595, %v2591
  %v2736 = vpack.c.b16 %v2596, %v2592
  %v2737 = vpack.c.b16 %v2597, %v2593
  %v2738 = vpack.c.b16 %v2598, %v2594
  %v2739 = vpack.c.b16 %v2603, %v2599
  %v2740 = vpack.c.b16 %v2604, %v2600
  %v2741 = vpack.c.b16 %v2605, %v2601
  %v2742 = vpack.c.b16 %v2606, %v2602
  %v2743 = vpack.c.b16 %v2611, %v2607
  %v2744 = vpack.c.b16 %v2612, %v2608
  %v2745 = vpack.c.b16 %v2613, %v2609
  %v2746 = vpack.c.b16 %v2614, %v2610
  %v2747 = vpack.c.b16 %v2619, %v2615
  %v2748 = vpack.c.b16 %v2620, %v2616
  %v2749 = vpack.c.b16 %v2621, %v2617
  %v2750 = vpack.c.b16 %v2622, %v2618
  %v2751 = vpack.c.b16 %v2627, %v2623
  %v2752 = vpack.c.b16 %v2628, %v2624
  %v2753 = vpack.c.b16 %v2629, %v2625
  %v2754 = vpack.c.b16 %v2630, %v2626
  %v2755 = vpack.c.b16 %v2635, %v2631
  %v2756 = vpack.c.b16 %v2636, %v2632
  %v2757 = vpack.c.b16 %v2637, %v2633
  %v2758 = vpack.c.b16 %v2638, %v2634
  %v2759 = vpack.c.b16 %v2643, %v2639
  %v2760 = vpack.c.b16 %v2644, %v2640
  %v2761 = vpack.c.b16 %v2645, %v2641
  %v2762 = vpack.c.b16 %v2646, %v2642
  %v2763 = vpack.c.b16 %v2651, %v2647
  %v2764 = vpack.c.b16 %v2652, %v2648
  %v2765 = vpack.c.b16 %v2653, %v2649
  %v2766 = vpack.c.b16 %v2654, %v2650
  %v2767 = vpack.c.b16 %v2659, %v2655
  %v2768 = vpack.c.b16 %v2660, %v2656
  %v2769 = vpack.c.b16 %v2661, %v2657
  %v2770 = vpack.c.b16 %v2662, %v2658
  %v2771 = vpack.c.b16 %v2667, %v2663
  %v2772 = vpack.c.b16 %v2668, %v2664
  %v2773 = vpack.c.b16 %v2669, %v2665
  %v2774 = vpack.c.b16 %v2670, %v2666
  %v2775 = vpack.c.b16 %v2675, %v2671
  %v2776 = vpack.c.b16 %v2676, %v2672
  %v2777 = vpack.c.b16 %v2677, %v2673
  %v2778 = vpack.c.b16 %v2678, %v2674
  %vm2879 = vcmask 130048
  %v2881 = vsel %vm2879, %v2196, 0
  %v2884 = vsel %vm2879, %v2200, 0
  %v2887 = vsel %vm2879, %v2204, 0
  %v2890 = vsel %vm2879, %v2208, 0
  %v2893 = vsel %vm2879, %v2212, 0
  %v2896 = vsel %vm2879, %v2216, 0
  %v2899 = vsel %vm2879, %v2220, 0
  %v2902 = vsel %vm2879, %v2224, 0
  %v2905 = vsel %vm2879, %v2228, 0
  %v2908 = vsel %vm2879, %v2232, 0
  %v2911 = vsel %vm2879, %v2236, 0
  %v2914 = vsel %vm2879, %v2240, 0
  %v2917 = vsel %vm2879, %v2244, 0
  %v2920 = vsel %vm2879, %v2248, 0
  %v2923 = vsel %vm2879, %v2252, 0
  %v2926 = vsel %vm2879, %v2256, 0
  %2928 = vmatprep.subr.bf16.mxu0 %v2680
  %2929 = vmatpush1.bf16.msra.mxu0 %v2679
  %2930 = vmatprep.subr.bf16.mxu0 %v2684
  %2931 = vmatpush1.bf16.msra.mxu0 %v2683
  %2932 = vmatprep.subr.bf16.mxu0 %v2688
  %2933 = vmatpush1.bf16.msra.mxu0 %v2687
  %2934 = vmatprep.subr.bf16.mxu0 %v2692
  %2935 = vmatpush1.bf16.msra.mxu0 %v2691
  %2936 = vmatprep.subr.bf16.mxu0 %v2696
  %2937 = vmatpush1.bf16.msra.mxu0 %v2695
  %2938 = vmatprep.subr.bf16.mxu0 %v2700
  %2939 = vmatpush1.bf16.msra.mxu0 %v2699
  %2940 = vmatprep.subr.bf16.mxu0 %v2704
  %2941 = vmatpush1.bf16.msra.mxu0 %v2703
  %2942 = vmatprep.subr.bf16.mxu0 %v2708
  %2943 = vmatpush1.bf16.msra.mxu0 %v2707
  %2944 = vmatprep.subr.bf16.mxu0 %v2712
  %2945 = vmatpush1.bf16.msra.mxu0 %v2711
  %2946 = vmatprep.subr.bf16.mxu0 %v2716
  %2947 = vmatpush1.bf16.msra.mxu0 %v2715
  %2948 = vmatprep.subr.bf16.mxu0 %v2720
  %2949 = vmatpush1.bf16.msra.mxu0 %v2719
  %2950 = vmatprep.subr.bf16.mxu0 %v2724
  %2951 = vmatpush1.bf16.msra.mxu0 %v2723
  %2952 = vmatprep.subr.bf16.mxu0 %v2728
  %2953 = vmatpush1.bf16.msra.mxu0 %v2727
  %2954 = vmatprep.subr.bf16.mxu0 %v2732
  %2955 = vmatpush1.bf16.msra.mxu0 %v2731
  %2956 = vmatprep.subr.bf16.mxu0 %v2736
  %2957 = vmatpush1.bf16.msra.mxu0 %v2735
  %2958 = vmatprep.subr.bf16.mxu0 %v2740
  %2959 = vmatpush1.bf16.msra.mxu0 %v2739
  %2960 = vmatprep.mubr.bf16.mxu0 %v2194
  %2961 = vmatmul.mubr.bf16.gmra.mrb[0].mxu0 %v2193
  %v2962 = vpop.f32.mrb[0].mxu0
  %v2963 = vadd.f32 %v2362, %v2962
  %v2964 = vpop.f32.mrb[0].mxu0
  %v2965 = vadd.f32 %v2366, %v2964
  %v2966 = vpop.f32.mrb[0].mxu0
  %v2967 = vadd.f32 %v2362, %v2966
  %v2968 = vpop.f32.mrb[0].mxu0
  %v2969 = vadd.f32 %v2366, %v2968
  %2970 = vmatprep.mubr.bf16.mxu0 %v2198
  %2971 = vmatmul.mubr.bf16.gmra.mrb[0].mxu0 %v2197
  %v2972 = vpop.f32.mrb[0].mxu0
  %v2973 = vadd.f32 %v2362, %v2972
  %v2974 = vpop.f32.mrb[0].mxu0
  %v2975 = vadd.f32 %v2366, %v2974
  %v2976 = vpop.f32.mrb[0].mxu0
  %v2977 = vadd.f32 %v2362, %v2976
  %v2978 = vpop.f32.mrb[0].mxu0
  %v2979 = vadd.f32 %v2366, %v2978
  %2980 = vmatprep.mubr.bf16.mxu0 %v2202
  %2981 = vmatmul.mubr.bf16.gmra.mrb[0].mxu0 %v2201
  %v2982 = vpop.f32.mrb[0].mxu0
  %v2983 = vadd.f32 %v2362, %v2982
  %v2984 = vpop.f32.mrb[0].mxu0
  %v2985 = vadd.f32 %v2366, %v2984
  %v2986 = vpop.f32.mrb[0].mxu0
  %v2987 = vadd.f32 %v2362, %v2986
  %v2988 = vpop.f32.mrb[0].mxu0
  %v2989 = vadd.f32 %v2366, %v2988
  %2990 = vmatprep.mubr.bf16.mxu0 %v2206
  %2991 = vmatmul.mubr.bf16.gmra.mrb[0].mxu0 %v2205
  %v2992 = vpop.f32.mrb[0].mxu0
  %v2993 = vadd.f32 %v2362, %v2992
  %v2994 = vpop.f32.mrb[0].mxu0
  %v2995 = vadd.f32 %v2366, %v2994
  %v2996 = vpop.f32.mrb[0].mxu0
  %v2997 = vadd.f32 %v2362, %v2996
  %v2998 = vpop.f32.mrb[0].mxu0
  %v2999 = vadd.f32 %v2366, %v2998
  %3000 = vmatprep.mubr.bf16.mxu0 %v2210
  %3001 = vmatmul.mubr.bf16.gmra.mrb[0].mxu0 %v2209
  %v3002 = vpop.f32.mrb[0].mxu0
  %v3003 = vadd.f32 %v2362, %v3002
  %v3004 = vpop.f32.mrb[0].mxu0
  %v3005 = vadd.f32 %v2366, %v3004
  %v3006 = vpop.f32.mrb[0].mxu0
  %v3007 = vadd.f32 %v2362, %v3006
  %v3008 = vpop.f32.mrb[0].mxu0
  %v3009 = vadd.f32 %v2366, %v3008
  %3010 = vmatprep.mubr.bf16.mxu0 %v2214
  %3011 = vmatmul.mubr.bf16.gmra.mrb[0].mxu0 %v2213
  %v3012 = vpop.f32.mrb[0].mxu0
  %v3013 = vadd.f32 %v2362, %v3012
  %v3014 = vpop.f32.mrb[0].mxu0
  %v3015 = vadd.f32 %v2366, %v3014
  %v3016 = vpop.f32.mrb[0].mxu0
  %v3017 = vadd.f32 %v2362, %v3016
  %v3018 = vpop.f32.mrb[0].mxu0
  %v3019 = vadd.f32 %v2366, %v3018
  %3020 = vmatprep.mubr.bf16.mxu0 %v2218
  %3021 = vmatmul.mubr.bf16.gmra.mrb[0].mxu0 %v2217
  %v3022 = vpop.f32.mrb[0].mxu0
  %v3023 = vadd.f32 %v2362, %v3022
  %v3024 = vpop.f32.mrb[0].mxu0
  %v3025 = vadd.f32 %v2366, %v3024
  %v3026 = vpop.f32.mrb[0].mxu0
  %v3027 = vadd.f32 %v2362, %v3026
  %v3028 = vpop.f32.mrb[0].mxu0
  %v3029 = vadd.f32 %v2366, %v3028
  %3030 = vmatprep.mubr.bf16.mxu0 %v2222
  %3031 = vmatmul.mubr.bf16.gmra.mrb[0].mxu0 %v2221
  %v3032 = vpop.f32.mrb[0].mxu0
  %v3033 = vadd.f32 %v2362, %v3032
  %v3034 = vpop.f32.mrb[0].mxu0
  %v3035 = vadd.f32 %v2366, %v3034
  %v3036 = vpop.f32.mrb[0].mxu0
  %v3037 = vadd.f32 %v2362, %v3036
  %v3038 = vpop.f32.mrb[0].mxu0
  %v3039 = vadd.f32 %v2366, %v3038
  %3040 = vmatprep.mubr.bf16.mxu0 %v2226
  %3041 = vmatmul.mubr.bf16.gmra.mrb[0].mxu0 %v2225
  %v3042 = vpop.f32.mrb[0].mxu0
  %v3043 = vadd.f32 %v2362, %v3042
  %v3044 = vpop.f32.mrb[0].mxu0
  %v3045 = vadd.f32 %v2366, %v3044
  %v3046 = vpop.f32.mrb[0].mxu0
  %v3047 = vadd.f32 %v2362, %v3046
  %v3048 = vpop.f32.mrb[0].mxu0
  %v3049 = vadd.f32 %v2366, %v3048
  %3050 = vmatprep.mubr.bf16.mxu0 %v2230
  %3051 = vmatmul.mubr.bf16.gmra.mrb[0].mxu0 %v2229
  %v3052 = vpop.f32.mrb[0].mxu0
  %v3053 = vadd.f32 %v2362, %v3052
  %v3054 = vpop.f32.mrb[0].mxu0
  %v3055 = vadd.f32 %v2366, %v3054
  %v3056 = vpop.f32.mrb[0].mxu0
  %v3057 = vadd.f32 %v2362, %v3056
  %v3058 = vpop.f32.mrb[0].mxu0
  %v3059 = vadd.f32 %v2366, %v3058
  %3060 = vmatprep.mubr.bf16.mxu0 %v2234
  %3061 = vmatmul.mubr.bf16.gmra.mrb[0].mxu0 %v2233
  %v3062 = vpop.f32.mrb[0].mxu0
  %v3063 = vadd.f32 %v2362, %v3062
  %v3064 = vpop.f32.mrb[0].mxu0
  %v3065 = vadd.f32 %v2366, %v3064
  %v3066 = vpop.f32.mrb[0].mxu0
  %v3067 = vadd.f32 %v2362, %v3066
  %v3068 = vpop.f32.mrb[0].mxu0
  %v3069 = vadd.f32 %v2366, %v3068
  %3070 = vmatprep.mubr.bf16.mxu0 %v2238
  %3071 = vmatmul.mubr.bf16.gmra.mrb[0].mxu0 %v2237
  %v3072 = vpop.f32.mrb[0].mxu0
  %v3073 = vadd.f32 %v2362, %v3072
  %v3074 = vpop.f32.mrb[0].mxu0
  %v3075 = vadd.f32 %v2366, %v3074
  %v3076 = vpop.f32.mrb[0].mxu0
  %v3077 = vadd.f32 %v2362, %v3076
  %v3078 = vpop.f32.mrb[0].mxu0
  %v3079 = vadd.f32 %v2366, %v3078
  %3080 = vmatprep.mubr.bf16.mxu0 %v2242
  %3081 = vmatmul.mubr.bf16.gmra.mrb[0].mxu0 %v2241
  %v3082 = vpop.f32.mrb[0].mxu0
  %v3083 = vadd.f32 %v2362, %v3082
  %v3084 = vpop.f32.mrb[0].mxu0
  %v3085 = vadd.f32 %v2366, %v3084
  %v3086 = vpop.f32.mrb[0].mxu0
  %v3087 = vadd.f32 %v2362, %v3086
  %v3088 = vpop.f32.mrb[0].mxu0
  %v3089 = vadd.f32 %v2366, %v3088
  %3090 = vmatprep.mubr.bf16.mxu0 %v2246
  %3091 = vmatmul.mubr.bf16.gmra.mrb[0].mxu0 %v2245
  %v3092 = vpop.f32.mrb[0].mxu0
  %v3093 = vadd.f32 %v2362, %v3092
  %v3094 = vpop.f32.mrb[0].mxu0
  %v3095 = vadd.f32 %v2366, %v3094
  %v3096 = vpop.f32.mrb[0].mxu0
  %v3097 = vadd.f32 %v2362, %v3096
  %v3098 = vpop.f32.mrb[0].mxu0
  %v3099 = vadd.f32 %v2366, %v3098
  %3100 = vmatprep.mubr.bf16.mxu0 %v2250
  %3101 = vmatmul.mubr.bf16.gmra.mrb[0].mxu0 %v2249
  %v3102 = vpop.f32.mrb[0].mxu0
  %v3103 = vadd.f32 %v2362, %v3102
  %v3104 = vpop.f32.mrb[0].mxu0
  %v3105 = vadd.f32 %v2366, %v3104
  %v3106 = vpop.f32.mrb[0].mxu0
  %v3107 = vadd.f32 %v2362, %v3106
  %v3108 = vpop.f32.mrb[0].mxu0
  %v3109 = vadd.f32 %v2366, %v3108
  %3110 = vmatprep.mubr.bf16.mxu0 %v2254
  %3111 = vmatmul.mubr.bf16.gmra.mrb[0].mxu0 %v2253
  %v3112 = vpop.f32.mrb[0].mxu0
  %v3113 = vadd.f32 %v2362, %v3112
  %v3114 = vpop.f32.mrb[0].mxu0
  %v3115 = vadd.f32 %v2366, %v3114
  %v3116 = vpop.f32.mrb[0].mxu0
  %v3117 = vadd.f32 %v2362, %v3116
  %v3118 = vpop.f32.mrb[0].mxu0
  %v3119 = vadd.f32 %v2366, %v3118
  %3120 = vdwg.mxu0
  %3121 = vmatprep.subr.bf16.mxu0 %v2744
  %3122 = vmatpush1.bf16.msra.mxu0 %v2743
  %3123 = vmatprep.subr.bf16.mxu0 %v2748
  %3124 = vmatpush1.bf16.msra.mxu0 %v2747
  %3125 = vmatprep.subr.bf16.mxu0 %v2752
  %3126 = vmatpush1.bf16.msra.mxu0 %v2751
  %3127 = vmatprep.subr.bf16.mxu0 %v2756
  %3128 = vmatpush1.bf16.msra.mxu0 %v2755
  %3129 = vmatprep.subr.bf16.mxu0 %v2760
  %3130 = vmatpush1.bf16.msra.mxu0 %v2759
  %3131 = vmatprep.subr.bf16.mxu0 %v2764
  %3132 = vmatpush1.bf16.msra.mxu0 %v2763
  %3133 = vmatprep.subr.bf16.mxu0 %v2768
  %3134 = vmatpush1.bf16.msra.mxu0 %v2767
  %3135 = vmatprep.subr.bf16.mxu0 %v2772
  %3136 = vmatpush1.bf16.msra.mxu0 %v2771
  %3137 = vmatprep.subr.bf16.mxu0 %v2776
  %3138 = vmatpush1.bf16.msra.mxu0 %v2775
  %3139 = vmatprep.subr.bf16.mxu0 0
  %3140 = vmatpush1.bf16.msra.mxu0 0
  %3141 = vmatprep.subr.bf16.mxu0 0
  %3142 = vmatpush1.bf16.msra.mxu0 0
  %3143 = vmatprep.subr.bf16.mxu0 0
  %3144 = vmatpush1.bf16.msra.mxu0 0
  %3145 = vmatprep.subr.bf16.mxu0 0
  %3146 = vmatpush1.bf16.msra.mxu0 0
  %3147 = vmatprep.subr.bf16.mxu0 0
  %3148 = vmatpush1.bf16.msra.mxu0 0
  %3149 = vmatprep.subr.bf16.mxu0 0
  %3150 = vmatpush1.bf16.msra.mxu0 0
  %3151 = vmatprep.subr.bf16.mxu0 0
  %3152 = vmatpush1.bf16.msra.mxu0 0
  %3153 = vmatprep.mubr.bf16.mxu0 %v2881
  %3154 = vmatmul.mubr.bf16.gmra.mrb[0].mxu0 %v2195
  %v3155 = vpop.f32.mrb[0].mxu0
  %v3156 = vadd.f32 %v2963, %v3155
  %v3157 = vpop.f32.mrb[0].mxu0
  %v3158 = vadd.f32 %v2965, %v3157
  %v3159 = vpop.f32.mrb[0].mxu0
  %v3160 = vadd.f32 %v2967, %v3159
  %v3161 = vpop.f32.mrb[0].mxu0
  %v3162 = vadd.f32 %v2969, %v3161
  %3163 = vmatprep.mubr.bf16.mxu0 %v2884
  %3164 = vmatmul.mubr.bf16.gmra.mrb[0].mxu0 %v2199
  %v3165 = vpop.f32.mrb[0].mxu0
  %v3166 = vadd.f32 %v2973, %v3165
  %v3167 = vpop.f32.mrb[0].mxu0
  %v3168 = vadd.f32 %v2975, %v3167
  %v3169 = vpop.f32.mrb[0].mxu0
  %v3170 = vadd.f32 %v2977, %v3169
  %v3171 = vpop.f32.mrb[0].mxu0
  %v3172 = vadd.f32 %v2979, %v3171
  %3173 = vmatprep.mubr.bf16.mxu0 %v2887
  %3174 = vmatmul.mubr.bf16.gmra.mrb[0].mxu0 %v2203
  %v3175 = vpop.f32.mrb[0].mxu0
  %v3176 = vadd.f32 %v2983, %v3175
  %v3177 = vpop.f32.mrb[0].mxu0
  %v3178 = vadd.f32 %v2985, %v3177
  %v3179 = vpop.f32.mrb[0].mxu0
  %v3180 = vadd.f32 %v2987, %v3179
  %v3181 = vpop.f32.mrb[0].mxu0
  %v3182 = vadd.f32 %v2989, %v3181
  %3183 = vmatprep.mubr.bf16.mxu0 %v2890
  %3184 = vmatmul.mubr.bf16.gmra.mrb[0].mxu0 %v2207
  %v3185 = vpop.f32.mrb[0].mxu0
  %v3186 = vadd.f32 %v2993, %v3185
  %v3187 = vpop.f32.mrb[0].mxu0
  %v3188 = vadd.f32 %v2995, %v3187
  %v3189 = vpop.f32.mrb[0].mxu0
  %v3190 = vadd.f32 %v2997, %v3189
  %v3191 = vpop.f32.mrb[0].mxu0
  %v3192 = vadd.f32 %v2999, %v3191
  %3193 = vmatprep.mubr.bf16.mxu0 %v2893
  %3194 = vmatmul.mubr.bf16.gmra.mrb[0].mxu0 %v2211
  %v3195 = vpop.f32.mrb[0].mxu0
  %v3196 = vadd.f32 %v3003, %v3195
  %v3197 = vpop.f32.mrb[0].mxu0
  %v3198 = vadd.f32 %v3005, %v3197
  %v3199 = vpop.f32.mrb[0].mxu0
  %v3200 = vadd.f32 %v3007, %v3199
  %v3201 = vpop.f32.mrb[0].mxu0
  %v3202 = vadd.f32 %v3009, %v3201
  %3203 = vmatprep.mubr.bf16.mxu0 %v2896
  %3204 = vmatmul.mubr.bf16.gmra.mrb[0].mxu0 %v2215
  %v3205 = vpop.f32.mrb[0].mxu0
  %v3206 = vadd.f32 %v3013, %v3205
  %v3207 = vpop.f32.mrb[0].mxu0
  %v3208 = vadd.f32 %v3015, %v3207
  %v3209 = vpop.f32.mrb[0].mxu0
  %v3210 = vadd.f32 %v3017, %v3209
  %v3211 = vpop.f32.mrb[0].mxu0
  %v3212 = vadd.f32 %v3019, %v3211
  %3213 = vmatprep.mubr.bf16.mxu0 %v2899
  %3214 = vmatmul.mubr.bf16.gmra.mrb[0].mxu0 %v2219
  %v3215 = vpop.f32.mrb[0].mxu0
  %v3216 = vadd.f32 %v3023, %v3215
  %v3217 = vpop.f32.mrb[0].mxu0
  %v3218 = vadd.f32 %v3025, %v3217
  %v3219 = vpop.f32.mrb[0].mxu0
  %v3220 = vadd.f32 %v3027, %v3219
  %v3221 = vpop.f32.mrb[0].mxu0
  %v3222 = vadd.f32 %v3029, %v3221
  %3223 = vmatprep.mubr.bf16.mxu0 %v2902
  %3224 = vmatmul.mubr.bf16.gmra.mrb[0].mxu0 %v2223
  %v3225 = vpop.f32.mrb[0].mxu0
  %v3226 = vadd.f32 %v3033, %v3225
  %v3227 = vpop.f32.mrb[0].mxu0
  %v3228 = vadd.f32 %v3035, %v3227
  %v3229 = vpop.f32.mrb[0].mxu0
  %v3230 = vadd.f32 %v3037, %v3229
  %v3231 = vpop.f32.mrb[0].mxu0
  %v3232 = vadd.f32 %v3039, %v3231
  %3233 = vmatprep.mubr.bf16.mxu0 %v2905
  %3234 = vmatmul.mubr.bf16.gmra.mrb[0].mxu0 %v2227
  %v3235 = vpop.f32.mrb[0].mxu0
  %v3236 = vadd.f32 %v3043, %v3235
  %v3237 = vpop.f32.mrb[0].mxu0
  %v3238 = vadd.f32 %v3045, %v3237
  %v3239 = vpop.f32.mrb[0].mxu0
  %v3240 = vadd.f32 %v3047, %v3239
  %v3241 = vpop.f32.mrb[0].mxu0
  %v3242 = vadd.f32 %v3049, %v3241
  %3243 = vmatprep.mubr.bf16.mxu0 %v2908
  %3244 = vmatmul.mubr.bf16.gmra.mrb[0].mxu0 %v2231
  %v3245 = vpop.f32.mrb[0].mxu0
  %v3246 = vadd.f32 %v3053, %v3245
  %v3247 = vpop.f32.mrb[0].mxu0
  %v3248 = vadd.f32 %v3055, %v3247
  %v3249 = vpop.f32.mrb[0].mxu0
  %v3250 = vadd.f32 %v3057, %v3249
  %v3251 = vpop.f32.mrb[0].mxu0
  %v3252 = vadd.f32 %v3059, %v3251
  %3253 = vmatprep.mubr.bf16.mxu0 %v2911
  %3254 = vmatmul.mubr.bf16.gmra.mrb[0].mxu0 %v2235
  %v3255 = vpop.f32.mrb[0].mxu0
  %v3256 = vadd.f32 %v3063, %v3255
  %v3257 = vpop.f32.mrb[0].mxu0
  %v3258 = vadd.f32 %v3065, %v3257
  %v3259 = vpop.f32.mrb[0].mxu0
  %v3260 = vadd.f32 %v3067, %v3259
  %v3261 = vpop.f32.mrb[0].mxu0
  %v3262 = vadd.f32 %v3069, %v3261
  %3263 = vmatprep.mubr.bf16.mxu0 %v2914
  %3264 = vmatmul.mubr.bf16.gmra.mrb[0].mxu0 %v2239
  %v3265 = vpop.f32.mrb[0].mxu0
  %v3266 = vadd.f32 %v3073, %v3265
  %v3267 = vpop.f32.mrb[0].mxu0
  %v3268 = vadd.f32 %v3075, %v3267
  %v3269 = vpop.f32.mrb[0].mxu0
  %v3270 = vadd.f32 %v3077, %v3269
  %v3271 = vpop.f32.mrb[0].mxu0
  %v3272 = vadd.f32 %v3079, %v3271
  %3273 = vmatprep.mubr.bf16.mxu0 %v2917
  %3274 = vmatmul.mubr.bf16.gmra.mrb[0].mxu0 %v2243
  %v3275 = vpop.f32.mrb[0].mxu0
  %v3276 = vadd.f32 %v3083, %v3275
  %v3277 = vpop.f32.mrb[0].mxu0
  %v3278 = vadd.f32 %v3085, %v3277
  %v3279 = vpop.f32.mrb[0].mxu0
  %v3280 = vadd.f32 %v3087, %v3279
  %v3281 = vpop.f32.mrb[0].mxu0
  %v3282 = vadd.f32 %v3089, %v3281
  %3283 = vmatprep.mubr.bf16.mxu0 %v2920
  %3284 = vmatmul.mubr.bf16.gmra.mrb[0].mxu0 %v2247
  %v3285 = vpop.f32.mrb[0].mxu0
  %v3286 = vadd.f32 %v3093, %v3285
  %v3287 = vpop.f32.mrb[0].mxu0
  %v3288 = vadd.f32 %v3095, %v3287
  %v3289 = vpop.f32.mrb[0].mxu0
  %v3290 = vadd.f32 %v3097, %v3289
  %v3291 = vpop.f32.mrb[0].mxu0
  %v3292 = vadd.f32 %v3099, %v3291
  %3293 = vmatprep.mubr.bf16.mxu0 %v2923
  %3294 = vmatmul.mubr.bf16.gmra.mrb[0].mxu0 %v2251
  %v3295 = vpop.f32.mrb[0].mxu0
  %v3296 = vadd.f32 %v3103, %v3295
  %v3297 = vpop.f32.mrb[0].mxu0
  %v3298 = vadd.f32 %v3105, %v3297
  %v3299 = vpop.f32.mrb[0].mxu0
  %v3300 = vadd.f32 %v3107, %v3299
  %v3301 = vpop.f32.mrb[0].mxu0
  %v3302 = vadd.f32 %v3109, %v3301
  %3303 = vmatprep.mubr.bf16.mxu0 %v2926
  %3304 = vmatmul.mubr.bf16.gmra.mrb[0].mxu0 %v2255
  %v3305 = vpop.f32.mrb[0].mxu0
  %v3306 = vadd.f32 %v3113, %v3305
  %v3307 = vpop.f32.mrb[0].mxu0
  %v3308 = vadd.f32 %v3115, %v3307
  %v3309 = vpop.f32.mrb[0].mxu0
  %v3310 = vadd.f32 %v3117, %v3309
  %v3311 = vpop.f32.mrb[0].mxu0
  %v3312 = vadd.f32 %v3119, %v3311
  %3313 = vdwg.mxu0
  %3314 = vmatprep.subr.bf16.mxu0 %v2682
  %3315 = vmatpush1.bf16.msra.mxu0 %v2681
  %3316 = vmatprep.subr.bf16.mxu0 %v2686
  %3317 = vmatpush1.bf16.msra.mxu0 %v2685
  %3318 = vmatprep.subr.bf16.mxu0 %v2690
  %3319 = vmatpush1.bf16.msra.mxu0 %v2689
  %3320 = vmatprep.subr.bf16.mxu0 %v2694
  %3321 = vmatpush1.bf16.msra.mxu0 %v2693
  %3322 = vmatprep.subr.bf16.mxu0 %v2698
  %3323 = vmatpush1.bf16.msra.mxu0 %v2697
  %3324 = vmatprep.subr.bf16.mxu0 %v2702
  %3325 = vmatpush1.bf16.msra.mxu0 %v2701
  %3326 = vmatprep.subr.bf16.mxu0 %v2706
  %3327 = vmatpush1.bf16.msra.mxu0 %v2705
  %3328 = vmatprep.subr.bf16.mxu0 %v2710
  %3329 = vmatpush1.bf16.msra.mxu0 %v2709
  %3330 = vmatprep.subr.bf16.mxu0 %v2714
  %3331 = vmatpush1.bf16.msra.mxu0 %v2713
  %3332 = vmatprep.subr.bf16.mxu0 %v2718
  %3333 = vmatpush1.bf16.msra.mxu0 %v2717
  %3334 = vmatprep.subr.bf16.mxu0 %v2722
  %3335 = vmatpush1.bf16.msra.mxu0 %v2721
  %3336 = vmatprep.subr.bf16.mxu0 %v2726
  %3337 = vmatpush1.bf16.msra.mxu0 %v2725
  %3338 = vmatprep.subr.bf16.mxu0 %v2730
  %3339 = vmatpush1.bf16.msra.mxu0 %v2729
  %3340 = vmatprep.subr.bf16.mxu0 %v2734
  %3341 = vmatpush1.bf16.msra.mxu0 %v2733
  %3342 = vmatprep.subr.bf16.mxu0 %v2738
  %3343 = vmatpush1.bf16.msra.mxu0 %v2737
  %3344 = vmatprep.subr.bf16.mxu0 %v2742
  %3345 = vmatpush1.bf16.msra.mxu0 %v2741
  %3346 = vmatprep.mubr.bf16.mxu0 %v2194
  %3347 = vmatmul.mubr.bf16.gmra.mrb[0].mxu0 %v2193
  %v3348 = vpop.f32.mrb[0].mxu0
  %v3349 = vadd.f32 %v2370, %v3348
  %v3350 = vpop.f32.mrb[0].mxu0
  %v3351 = vadd.f32 %v2374, %v3350
  %v3352 = vpop.f32.mrb[0].mxu0
  %v3353 = vadd.f32 %v2370, %v3352
  %v3354 = vpop.f32.mrb[0].mxu0
  %v3355 = vadd.f32 %v2374, %v3354
  %3356 = vmatprep.mubr.bf16.mxu0 %v2198
  %3357 = vmatmul.mubr.bf16.gmra.mrb[0].mxu0 %v2197
  %v3358 = vpop.f32.mrb[0].mxu0
  %v3359 = vadd.f32 %v2370, %v3358
  %v3360 = vpop.f32.mrb[0].mxu0
  %v3361 = vadd.f32 %v2374, %v3360
  %v3362 = vpop.f32.mrb[0].mxu0
  %v3363 = vadd.f32 %v2370, %v3362
  %v3364 = vpop.f32.mrb[0].mxu0
  %v3365 = vadd.f32 %v2374, %v3364
  %3366 = vmatprep.mubr.bf16.mxu0 %v2202
  %3367 = vmatmul.mubr.bf16.gmra.mrb[0].mxu0 %v2201
  %v3368 = vpop.f32.mrb[0].mxu0
  %v3369 = vadd.f32 %v2370, %v3368
  %v3370 = vpop.f32.mrb[0].mxu0
  %v3371 = vadd.f32 %v2374, %v3370
  %v3372 = vpop.f32.mrb[0].mxu0
  %v3373 = vadd.f32 %v2370, %v3372
  %v3374 = vpop.f32.mrb[0].mxu0
  %v3375 = vadd.f32 %v2374, %v3374
  %3376 = vmatprep.mubr.bf16.mxu0 %v2206
  %3377 = vmatmul.mubr.bf16.gmra.mrb[0].mxu0 %v2205
  %v3378 = vpop.f32.mrb[0].mxu0
  %v3379 = vadd.f32 %v2370, %v3378
  %v3380 = vpop.f32.mrb[0].mxu0
  %v3381 = vadd.f32 %v2374, %v3380
  %v3382 = vpop.f32.mrb[0].mxu0
  %v3383 = vadd.f32 %v2370, %v3382
  %v3384 = vpop.f32.mrb[0].mxu0
  %v3385 = vadd.f32 %v2374, %v3384
  %3386 = vmatprep.mubr.bf16.mxu0 %v2210
  %3387 = vmatmul.mubr.bf16.gmra.mrb[0].mxu0 %v2209
  %v3388 = vpop.f32.mrb[0].mxu0
  %v3389 = vadd.f32 %v2370, %v3388
  %v3390 = vpop.f32.mrb[0].mxu0
  %v3391 = vadd.f32 %v2374, %v3390
  %v3392 = vpop.f32.mrb[0].mxu0
  %v3393 = vadd.f32 %v2370, %v3392
  %v3394 = vpop.f32.mrb[0].mxu0
  %v3395 = vadd.f32 %v2374, %v3394
  %3396 = vmatprep.mubr.bf16.mxu0 %v2214
  %3397 = vmatmul.mubr.bf16.gmra.mrb[0].mxu0 %v2213
  %v3398 = vpop.f32.mrb[0].mxu0
  %v3399 = vadd.f32 %v2370, %v3398
  %v3400 = vpop.f32.mrb[0].mxu0
  %v3401 = vadd.f32 %v2374, %v3400
  %v3402 = vpop.f32.mrb[0].mxu0
  %v3403 = vadd.f32 %v2370, %v3402
  %v3404 = vpop.f32.mrb[0].mxu0
  %v3405 = vadd.f32 %v2374, %v3404
  %3406 = vmatprep.mubr.bf16.mxu0 %v2218
  %3407 = vmatmul.mubr.bf16.gmra.mrb[0].mxu0 %v2217
  %v3408 = vpop.f32.mrb[0].mxu0
  %v3409 = vadd.f32 %v2370, %v3408
  %v3410 = vpop.f32.mrb[0].mxu0
  %v3411 = vadd.f32 %v2374, %v3410
  %v3412 = vpop.f32.mrb[0].mxu0
  %v3413 = vadd.f32 %v2370, %v3412
  %v3414 = vpop.f32.mrb[0].mxu0
  %v3415 = vadd.f32 %v2374, %v3414
  %3416 = vmatprep.mubr.bf16.mxu0 %v2222
  %3417 = vmatmul.mubr.bf16.gmra.mrb[0].mxu0 %v2221
  %v3418 = vpop.f32.mrb[0].mxu0
  %v3419 = vadd.f32 %v2370, %v3418
  %v3420 = vpop.f32.mrb[0].mxu0
  %v3421 = vadd.f32 %v2374, %v3420
  %v3422 = vpop.f32.mrb[0].mxu0
  %v3423 = vadd.f32 %v2370, %v3422
  %v3424 = vpop.f32.mrb[0].mxu0
  %v3425 = vadd.f32 %v2374, %v3424
  %3426 = vmatprep.mubr.bf16.mxu0 %v2226
  %3427 = vmatmul.mubr.bf16.gmra.mrb[0].mxu0 %v2225
  %v3428 = vpop.f32.mrb[0].mxu0
  %v3429 = vadd.f32 %v2370, %v3428
  %v3430 = vpop.f32.mrb[0].mxu0
  %v3431 = vadd.f32 %v2374, %v3430
  %v3432 = vpop.f32.mrb[0].mxu0
  %v3433 = vadd.f32 %v2370, %v3432
  %v3434 = vpop.f32.mrb[0].mxu0
  %v3435 = vadd.f32 %v2374, %v3434
  %3436 = vmatprep.mubr.bf16.mxu0 %v2230
  %3437 = vmatmul.mubr.bf16.gmra.mrb[0].mxu0 %v2229
  %v3438 = vpop.f32.mrb[0].mxu0
  %v3439 = vadd.f32 %v2370, %v3438
  %v3440 = vpop.f32.mrb[0].mxu0
  %v3441 = vadd.f32 %v2374, %v3440
  %v3442 = vpop.f32.mrb[0].mxu0
  %v3443 = vadd.f32 %v2370, %v3442
  %v3444 = vpop.f32.mrb[0].mxu0
  %v3445 = vadd.f32 %v2374, %v3444
  %3446 = vmatprep.mubr.bf16.mxu0 %v2234
  %3447 = vmatmul.mubr.bf16.gmra.mrb[0].mxu0 %v2233
  %v3448 = vpop.f32.mrb[0].mxu0
  %v3449 = vadd.f32 %v2370, %v3448
  %v3450 = vpop.f32.mrb[0].mxu0
  %v3451 = vadd.f32 %v2374, %v3450
  %v3452 = vpop.f32.mrb[0].mxu0
  %v3453 = vadd.f32 %v2370, %v3452
  %v3454 = vpop.f32.mrb[0].mxu0
  %v3455 = vadd.f32 %v2374, %v3454
  %3456 = vmatprep.mubr.bf16.mxu0 %v2238
  %3457 = vmatmul.mubr.bf16.gmra.mrb[0].mxu0 %v2237
  %v3458 = vpop.f32.mrb[0].mxu0
  %v3459 = vadd.f32 %v2370, %v3458
  %v3460 = vpop.f32.mrb[0].mxu0
  %v3461 = vadd.f32 %v2374, %v3460
  %v3462 = vpop.f32.mrb[0].mxu0
  %v3463 = vadd.f32 %v2370, %v3462
  %v3464 = vpop.f32.mrb[0].mxu0
  %v3465 = vadd.f32 %v2374, %v3464
  %3466 = vmatprep.mubr.bf16.mxu0 %v2242
  %3467 = vmatmul.mubr.bf16.gmra.mrb[0].mxu0 %v2241
  %v3468 = vpop.f32.mrb[0].mxu0
  %v3469 = vadd.f32 %v2370, %v3468
  %v3470 = vpop.f32.mrb[0].mxu0
  %v3471 = vadd.f32 %v2374, %v3470
  %v3472 = vpop.f32.mrb[0].mxu0
  %v3473 = vadd.f32 %v2370, %v3472
  %v3474 = vpop.f32.mrb[0].mxu0
  %v3475 = vadd.f32 %v2374, %v3474
  %3476 = vmatprep.mubr.bf16.mxu0 %v2246
  %3477 = vmatmul.mubr.bf16.gmra.mrb[0].mxu0 %v2245
  %v3478 = vpop.f32.mrb[0].mxu0
  %v3479 = vadd.f32 %v2370, %v3478
  %v3480 = vpop.f32.mrb[0].mxu0
  %v3481 = vadd.f32 %v2374, %v3480
  %v3482 = vpop.f32.mrb[0].mxu0
  %v3483 = vadd.f32 %v2370, %v3482
  %v3484 = vpop.f32.mrb[0].mxu0
  %v3485 = vadd.f32 %v2374, %v3484
  %3486 = vmatprep.mubr.bf16.mxu0 %v2250
  %3487 = vmatmul.mubr.bf16.gmra.mrb[0].mxu0 %v2249
  %v3488 = vpop.f32.mrb[0].mxu0
  %v3489 = vadd.f32 %v2370, %v3488
  %v3490 = vpop.f32.mrb[0].mxu0
  %v3491 = vadd.f32 %v2374, %v3490
  %v3492 = vpop.f32.mrb[0].mxu0
  %v3493 = vadd.f32 %v2370, %v3492
  %v3494 = vpop.f32.mrb[0].mxu0
  %v3495 = vadd.f32 %v2374, %v3494
  %3496 = vmatprep.mubr.bf16.mxu0 %v2254
  %3497 = vmatmul.mubr.bf16.gmra.mrb[0].mxu0 %v2253
  %v3498 = vpop.f32.mrb[0].mxu0
  %v3499 = vadd.f32 %v2370, %v3498
  %v3500 = vpop.f32.mrb[0].mxu0
  %v3501 = vadd.f32 %v2374, %v3500
  %v3502 = vpop.f32.mrb[0].mxu0
  %v3503 = vadd.f32 %v2370, %v3502
  %v3504 = vpop.f32.mrb[0].mxu0
  %v3505 = vadd.f32 %v2374, %v3504
  %3506 = vdwg.mxu0
  %3507 = vmatprep.subr.bf16.mxu0 %v2746
  %3508 = vmatpush1.bf16.msra.mxu0 %v2745
  %3509 = vmatprep.subr.bf16.mxu0 %v2750
  %3510 = vmatpush1.bf16.msra.mxu0 %v2749
  %3511 = vmatprep.subr.bf16.mxu0 %v2754
  %3512 = vmatpush1.bf16.msra.mxu0 %v2753
  %3513 = vmatprep.subr.bf16.mxu0 %v2758
  %3514 = vmatpush1.bf16.msra.mxu0 %v2757
  %3515 = vmatprep.subr.bf16.mxu0 %v2762
  %3516 = vmatpush1.bf16.msra.mxu0 %v2761
  %3517 = vmatprep.subr.bf16.mxu0 %v2766
  %3518 = vmatpush1.bf16.msra.mxu0 %v2765
  %3519 = vmatprep.subr.bf16.mxu0 %v2770
  %3520 = vmatpush1.bf16.msra.mxu0 %v2769
  %3521 = vmatprep.subr.bf16.mxu0 %v2774
  %3522 = vmatpush1.bf16.msra.mxu0 %v2773
  %3523 = vmatprep.subr.bf16.mxu0 %v2778
  %3524 = vmatpush1.bf16.msra.mxu0 %v2777
  %3525 = vmatprep.subr.bf16.mxu0 0
  %3526 = vmatpush1.bf16.msra.mxu0 0
  %3527 = vmatprep.subr.bf16.mxu0 0
  %3528 = vmatpush1.bf16.msra.mxu0 0
  %3529 = vmatprep.subr.bf16.mxu0 0
  %3530 = vmatpush1.bf16.msra.mxu0 0
  %3531 = vmatprep.subr.bf16.mxu0 0
  %3532 = vmatpush1.bf16.msra.mxu0 0
  %3533 = vmatprep.subr.bf16.mxu0 0
  %3534 = vmatpush1.bf16.msra.mxu0 0
  %3535 = vmatprep.subr.bf16.mxu0 0
  %3536 = vmatpush1.bf16.msra.mxu0 0
  %3537 = vmatprep.subr.bf16.mxu0 0
  %3538 = vmatpush1.bf16.msra.mxu0 0
  %3539 = vmatprep.mubr.bf16.mxu0 %v2881
  %3540 = vmatmul.mubr.bf16.gmra.mrb[0].mxu0 %v2195
  %v3541 = vpop.f32.mrb[0].mxu0
  %v3542 = vadd.f32 %v3349, %v3541
  %v3543 = vpop.f32.mrb[0].mxu0
  %v3544 = vadd.f32 %v3351, %v3543
  %v3545 = vpop.f32.mrb[0].mxu0
  %v3546 = vadd.f32 %v3353, %v3545
  %v3547 = vpop.f32.mrb[0].mxu0
  %v3548 = vadd.f32 %v3355, %v3547
  %3549 = vmatprep.mubr.bf16.mxu0 %v2884
  %3550 = vmatmul.mubr.bf16.gmra.mrb[0].mxu0 %v2199
  %v3551 = vpop.f32.mrb[0].mxu0
  %v3552 = vadd.f32 %v3359, %v3551
  %v3553 = vpop.f32.mrb[0].mxu0
  %v3554 = vadd.f32 %v3361, %v3553
  %v3555 = vpop.f32.mrb[0].mxu0
  %v3556 = vadd.f32 %v3363, %v3555
  %v3557 = vpop.f32.mrb[0].mxu0
  %v3558 = vadd.f32 %v3365, %v3557
  %3559 = vmatprep.mubr.bf16.mxu0 %v2887
  %3560 = vmatmul.mubr.bf16.gmra.mrb[0].mxu0 %v2203
  %v3561 = vpop.f32.mrb[0].mxu0
  %v3562 = vadd.f32 %v3369, %v3561
  %v3563 = vpop.f32.mrb[0].mxu0
  %v3564 = vadd.f32 %v3371, %v3563
  %v3565 = vpop.f32.mrb[0].mxu0
  %v3566 = vadd.f32 %v3373, %v3565
  %v3567 = vpop.f32.mrb[0].mxu0
  %v3568 = vadd.f32 %v3375, %v3567
  %3569 = vmatprep.mubr.bf16.mxu0 %v2890
  %3570 = vmatmul.mubr.bf16.gmra.mrb[0].mxu0 %v2207
  %v3571 = vpop.f32.mrb[0].mxu0
  %v3572 = vadd.f32 %v3379, %v3571
  %v3573 = vpop.f32.mrb[0].mxu0
  %v3574 = vadd.f32 %v3381, %v3573
  %v3575 = vpop.f32.mrb[0].mxu0
  %v3576 = vadd.f32 %v3383, %v3575
  %v3577 = vpop.f32.mrb[0].mxu0
  %v3578 = vadd.f32 %v3385, %v3577
  %3579 = vmatprep.mubr.bf16.mxu0 %v2893
  %3580 = vmatmul.mubr.bf16.gmra.mrb[0].mxu0 %v2211
  %v3581 = vpop.f32.mrb[0].mxu0
  %v3582 = vadd.f32 %v3389, %v3581
  %v3583 = vpop.f32.mrb[0].mxu0
  %v3584 = vadd.f32 %v3391, %v3583
  %v3585 = vpop.f32.mrb[0].mxu0
  %v3586 = vadd.f32 %v3393, %v3585
  %v3587 = vpop.f32.mrb[0].mxu0
  %v3588 = vadd.f32 %v3395, %v3587
  %3589 = vmatprep.mubr.bf16.mxu0 %v2896
  %3590 = vmatmul.mubr.bf16.gmra.mrb[0].mxu0 %v2215
  %v3591 = vpop.f32.mrb[0].mxu0
  %v3592 = vadd.f32 %v3399, %v3591
  %v3593 = vpop.f32.mrb[0].mxu0
  %v3594 = vadd.f32 %v3401, %v3593
  %v3595 = vpop.f32.mrb[0].mxu0
  %v3596 = vadd.f32 %v3403, %v3595
  %v3597 = vpop.f32.mrb[0].mxu0
  %v3598 = vadd.f32 %v3405, %v3597
  %3599 = vmatprep.mubr.bf16.mxu0 %v2899
  %3600 = vmatmul.mubr.bf16.gmra.mrb[0].mxu0 %v2219
  %v3601 = vpop.f32.mrb[0].mxu0
  %v3602 = vadd.f32 %v3409, %v3601
  %v3603 = vpop.f32.mrb[0].mxu0
  %v3604 = vadd.f32 %v3411, %v3603
  %v3605 = vpop.f32.mrb[0].mxu0
  %v3606 = vadd.f32 %v3413, %v3605
  %v3607 = vpop.f32.mrb[0].mxu0
  %v3608 = vadd.f32 %v3415, %v3607
  %3609 = vmatprep.mubr.bf16.mxu0 %v2902
  %3610 = vmatmul.mubr.bf16.gmra.mrb[0].mxu0 %v2223
  %v3611 = vpop.f32.mrb[0].mxu0
  %v3612 = vadd.f32 %v3419, %v3611
  %v3613 = vpop.f32.mrb[0].mxu0
  %v3614 = vadd.f32 %v3421, %v3613
  %v3615 = vpop.f32.mrb[0].mxu0
  %v3616 = vadd.f32 %v3423, %v3615
  %v3617 = vpop.f32.mrb[0].mxu0
  %v3618 = vadd.f32 %v3425, %v3617
  %3619 = vmatprep.mubr.bf16.mxu0 %v2905
  %3620 = vmatmul.mubr.bf16.gmra.mrb[0].mxu0 %v2227
  %v3621 = vpop.f32.mrb[0].mxu0
  %v3622 = vadd.f32 %v3429, %v3621
  %v3623 = vpop.f32.mrb[0].mxu0
  %v3624 = vadd.f32 %v3431, %v3623
  %v3625 = vpop.f32.mrb[0].mxu0
  %v3626 = vadd.f32 %v3433, %v3625
  %v3627 = vpop.f32.mrb[0].mxu0
  %v3628 = vadd.f32 %v3435, %v3627
  %3629 = vmatprep.mubr.bf16.mxu0 %v2908
  %3630 = vmatmul.mubr.bf16.gmra.mrb[0].mxu0 %v2231
  %v3631 = vpop.f32.mrb[0].mxu0
  %v3632 = vadd.f32 %v3439, %v3631
  %v3633 = vpop.f32.mrb[0].mxu0
  %v3634 = vadd.f32 %v3441, %v3633
  %v3635 = vpop.f32.mrb[0].mxu0
  %v3636 = vadd.f32 %v3443, %v3635
  %v3637 = vpop.f32.mrb[0].mxu0
  %v3638 = vadd.f32 %v3445, %v3637
  %3639 = vmatprep.mubr.bf16.mxu0 %v2911
  %3640 = vmatmul.mubr.bf16.gmra.mrb[0].mxu0 %v2235
  %v3641 = vpop.f32.mrb[0].mxu0
  %v3642 = vadd.f32 %v3449, %v3641
  %v3643 = vpop.f32.mrb[0].mxu0
  %v3644 = vadd.f32 %v3451, %v3643
  %v3645 = vpop.f32.mrb[0].mxu0
  %v3646 = vadd.f32 %v3453, %v3645
  %v3647 = vpop.f32.mrb[0].mxu0
  %v3648 = vadd.f32 %v3455, %v3647
  %3649 = vmatprep.mubr.bf16.mxu0 %v2914
  %3650 = vmatmul.mubr.bf16.gmra.mrb[0].mxu0 %v2239
  %v3651 = vpop.f32.mrb[0].mxu0
  %v3652 = vadd.f32 %v3459, %v3651
  %v3653 = vpop.f32.mrb[0].mxu0
  %v3654 = vadd.f32 %v3461, %v3653
  %v3655 = vpop.f32.mrb[0].mxu0
  %v3656 = vadd.f32 %v3463, %v3655
  %v3657 = vpop.f32.mrb[0].mxu0
  %v3658 = vadd.f32 %v3465, %v3657
  %3659 = vmatprep.mubr.bf16.mxu0 %v2917
  %3660 = vmatmul.mubr.bf16.gmra.mrb[0].mxu0 %v2243
  %v3661 = vpop.f32.mrb[0].mxu0
  %v3662 = vadd.f32 %v3469, %v3661
  %v3663 = vpop.f32.mrb[0].mxu0
  %v3664 = vadd.f32 %v3471, %v3663
  %v3665 = vpop.f32.mrb[0].mxu0
  %v3666 = vadd.f32 %v3473, %v3665
  %v3667 = vpop.f32.mrb[0].mxu0
  %v3668 = vadd.f32 %v3475, %v3667
  %3669 = vmatprep.mubr.bf16.mxu0 %v2920
  %3670 = vmatmul.mubr.bf16.gmra.mrb[0].mxu0 %v2247
  %v3671 = vpop.f32.mrb[0].mxu0
  %v3672 = vadd.f32 %v3479, %v3671
  %v3673 = vpop.f32.mrb[0].mxu0
  %v3674 = vadd.f32 %v3481, %v3673
  %v3675 = vpop.f32.mrb[0].mxu0
  %v3676 = vadd.f32 %v3483, %v3675
  %v3677 = vpop.f32.mrb[0].mxu0
  %v3678 = vadd.f32 %v3485, %v3677
  %3679 = vmatprep.mubr.bf16.mxu0 %v2923
  %3680 = vmatmul.mubr.bf16.gmra.mrb[0].mxu0 %v2251
  %v3681 = vpop.f32.mrb[0].mxu0
  %v3682 = vadd.f32 %v3489, %v3681
  %v3683 = vpop.f32.mrb[0].mxu0
  %v3684 = vadd.f32 %v3491, %v3683
  %v3685 = vpop.f32.mrb[0].mxu0
  %v3686 = vadd.f32 %v3493, %v3685
  %v3687 = vpop.f32.mrb[0].mxu0
  %v3688 = vadd.f32 %v3495, %v3687
  %3689 = vmatprep.mubr.bf16.mxu0 %v2926
  %3690 = vmatmul.mubr.bf16.gmra.mrb[0].mxu0 %v2255
  %v3691 = vpop.f32.mrb[0].mxu0
  %v3692 = vadd.f32 %v3499, %v3691
  %v3693 = vpop.f32.mrb[0].mxu0
  %v3694 = vadd.f32 %v3501, %v3693
  %v3695 = vpop.f32.mrb[0].mxu0
  %v3696 = vadd.f32 %v3503, %v3695
  %v3697 = vpop.f32.mrb[0].mxu0
  %v3698 = vadd.f32 %v3505, %v3697
  %3699 = vdwg.mxu0
  %v3700 = vmax.f32 %v3156, 0.0
  %v3701 = vmax.f32 %v3158, 0.0
  %v3702 = vmax.f32 %v3542, 0.0
  %v3703 = vmax.f32 %v3544, 0.0
  %v3704 = vmax.f32 %v3160, 0.0
  %v3705 = vmax.f32 %v3162, 0.0
  %v3706 = vmax.f32 %v3546, 0.0
  %v3707 = vmax.f32 %v3548, 0.0
  %v3708 = vmax.f32 %v3166, 0.0
  %v3709 = vmax.f32 %v3168, 0.0
  %v3710 = vmax.f32 %v3552, 0.0
  %v3711 = vmax.f32 %v3554, 0.0
  %v3712 = vmax.f32 %v3170, 0.0
  %v3713 = vmax.f32 %v3172, 0.0
  %v3714 = vmax.f32 %v3556, 0.0
  %v3715 = vmax.f32 %v3558, 0.0
  %v3716 = vmax.f32 %v3176, 0.0
  %v3717 = vmax.f32 %v3178, 0.0
  %v3718 = vmax.f32 %v3562, 0.0
  %v3719 = vmax.f32 %v3564, 0.0
  %v3720 = vmax.f32 %v3180, 0.0
  %v3721 = vmax.f32 %v3182, 0.0
  %v3722 = vmax.f32 %v3566, 0.0
  %v3723 = vmax.f32 %v3568, 0.0
  %v3724 = vmax.f32 %v3186, 0.0
  %v3725 = vmax.f32 %v3188, 0.0
  %v3726 = vmax.f32 %v3572, 0.0
  %v3727 = vmax.f32 %v3574, 0.0
  %v3728 = vmax.f32 %v3190, 0.0
  %v3729 = vmax.f32 %v3192, 0.0
  %v3730 = vmax.f32 %v3576, 0.0
  %v3731 = vmax.f32 %v3578, 0.0
  %v3732 = vmax.f32 %v3196, 0.0
  %v3733 = vmax.f32 %v3198, 0.0
  %v3734 = vmax.f32 %v3582, 0.0
  %v3735 = vmax.f32 %v3584, 0.0
  %v3736 = vmax.f32 %v3200, 0.0
  %v3737 = vmax.f32 %v3202, 0.0
  %v3738 = vmax.f32 %v3586, 0.0
  %v3739 = vmax.f32 %v3588, 0.0
  %v3740 = vmax.f32 %v3206, 0.0
  %v3741 = vmax.f32 %v3208, 0.0
  %v3742 = vmax.f32 %v3592, 0.0
  %v3743 = vmax.f32 %v3594, 0.0
  %v3744 = vmax.f32 %v3210, 0.0
  %v3745 = vmax.f32 %v3212, 0.0
  %v3746 = vmax.f32 %v3596, 0.0
  %v3747 = vmax.f32 %v3598, 0.0
  %v3748 = vmax.f32 %v3216, 0.0
  %v3749 = vmax.f32 %v3218, 0.0
  %v3750 = vmax.f32 %v3602, 0.0
  %v3751 = vmax.f32 %v3604, 0.0
  %v3752 = vmax.f32 %v3220, 0.0
  %v3753 = vmax.f32 %v3222, 0.0
  %v3754 = vmax.f32 %v3606, 0.0
  %v3755 = vmax.f32 %v3608, 0.0
  %v3756 = vmax.f32 %v3226, 0.0
  %v3757 = vmax.f32 %v3228, 0.0
  %v3758 = vmax.f32 %v3612, 0.0
  %v3759 = vmax.f32 %v3614, 0.0
  %v3760 = vmax.f32 %v3230, 0.0
  %v3761 = vmax.f32 %v3232, 0.0
  %v3762 = vmax.f32 %v3616, 0.0
  %v3763 = vmax.f32 %v3618, 0.0
  %v3764 = vmax.f32 %v3236, 0.0
  %v3765 = vmax.f32 %v3238, 0.0
  %v3766 = vmax.f32 %v3622, 0.0
  %v3767 = vmax.f32 %v3624, 0.0
  %v3768 = vmax.f32 %v3240, 0.0
  %v3769 = vmax.f32 %v3242, 0.0
  %v3770 = vmax.f32 %v3626, 0.0
  %v3771 = vmax.f32 %v3628, 0.0
  %v3772 = vmax.f32 %v3246, 0.0
  %v3773 = vmax.f32 %v3248, 0.0
  %v3774 = vmax.f32 %v3632, 0.0
  %v3775 = vmax.f32 %v3634, 0.0
  %v3776 = vmax.f32 %v3250, 0.0
  %v3777 = vmax.f32 %v3252, 0.0
  %v3778 = vmax.f32 %v3636, 0.0
  %v3779 = vmax.f32 %v3638, 0.0
  %v3780 = vmax.f32 %v3256, 0.0
  %v3781 = vmax.f32 %v3258, 0.0
  %v3782 = vmax.f32 %v3642, 0.0
  %v3783 = vmax.f32 %v3644, 0.0
  %v3784 = vmax.f32 %v3260, 0.0
  %v3785 = vmax.f32 %v3262, 0.0
  %v3786 = vmax.f32 %v3646, 0.0
  %v3787 = vmax.f32 %v3648, 0.0
  %v3788 = vmax.f32 %v3266, 0.0
  %v3789 = vmax.f32 %v3268, 0.0
  %v3790 = vmax.f32 %v3652, 0.0
  %v3791 = vmax.f32 %v3654, 0.0
  %v3792 = vmax.f32 %v3270, 0.0
  %v3793 = vmax.f32 %v3272, 0.0
  %v3794 = vmax.f32 %v3656, 0.0
  %v3795 = vmax.f32 %v3658, 0.0
  %v3796 = vmax.f32 %v3276, 0.0
  %v3797 = vmax.f32 %v3278, 0.0
  %v3798 = vmax.f32 %v3662, 0.0
  %v3799 = vmax.f32 %v3664, 0.0
  %v3800 = vmax.f32 %v3280, 0.0
  %v3801 = vmax.f32 %v3282, 0.0
  %v3802 = vmax.f32 %v3666, 0.0
  %v3803 = vmax.f32 %v3668, 0.0
  %v3804 = vmax.f32 %v3286, 0.0
  %v3805 = vmax.f32 %v3288, 0.0
  %v3806 = vmax.f32 %v3672, 0.0
  %v3807 = vmax.f32 %v3674, 0.0
  %v3808 = vmax.f32 %v3290, 0.0
  %v3809 = vmax.f32 %v3292, 0.0
  %v3810 = vmax.f32 %v3676, 0.0
  %v3811 = vmax.f32 %v3678, 0.0
  %v3812 = vmax.f32 %v3296, 0.0
  %v3813 = vmax.f32 %v3298, 0.0
  %v3814 = vmax.f32 %v3682, 0.0
  %v3815 = vmax.f32 %v3684, 0.0
  %v3816 = vmax.f32 %v3300, 0.0
  %v3817 = vmax.f32 %v3302, 0.0
  %v3818 = vmax.f32 %v3686, 0.0
  %v3819 = vmax.f32 %v3688, 0.0
  %v3820 = vmax.f32 %v3306, 0.0
  %v3821 = vmax.f32 %v3308, 0.0
  %v3822 = vmax.f32 %v3692, 0.0
  %v3823 = vmax.f32 %v3694, 0.0
  %v3824 = vmax.f32 %v3310, 0.0
  %v3825 = vmax.f32 %v3312, 0.0
  %v3826 = vmax.f32 %v3696, 0.0
  %v3827 = vmax.f32 %v3698, 0.0
  %v3828 = vpack.c.bf16 %v3704, %v3700
  %v3829 = vpack.c.bf16 %v3705, %v3701
  %v3830 = vpack.c.bf16 %v3706, %v3702
  %v3831 = vpack.c.bf16 %v3707, %v3703
  %v3832 = vpack.c.bf16 %v3712, %v3708
  %v3833 = vpack.c.bf16 %v3713, %v3709
  %v3834 = vpack.c.bf16 %v3714, %v3710
  %v3835 = vpack.c.bf16 %v3715, %v3711
  %v3836 = vpack.c.bf16 %v3720, %v3716
  %v3837 = vpack.c.bf16 %v3721, %v3717
  %v3838 = vpack.c.bf16 %v3722, %v3718
  %v3839 = vpack.c.bf16 %v3723, %v3719
  %v3840 = vpack.c.bf16 %v3728, %v3724
  %v3841 = vpack.c.bf16 %v3729, %v3725
  %v3842 = vpack.c.bf16 %v3730, %v3726
  %v3843 = vpack.c.bf16 %v3731, %v3727
  %v3844 = vpack.c.bf16 %v3736, %v3732
  %v3845 = vpack.c.bf16 %v3737, %v3733
  %v3846 = vpack.c.bf16 %v3738, %v3734
  %v3847 = vpack.c.bf16 %v3739, %v3735
  %v3848 = vpack.c.bf16 %v3744, %v3740
  %v3849 = vpack.c.bf16 %v3745, %v3741
  %v3850 = vpack.c.bf16 %v3746, %v3742
  %v3851 = vpack.c.bf16 %v3747, %v3743
  %v3852 = vpack.c.bf16 %v3752, %v3748
  %v3853 = vpack.c.bf16 %v3753, %v3749
  %v3854 = vpack.c.bf16 %v3754, %v3750
  %v3855 = vpack.c.bf16 %v3755, %v3751
  %v3856 = vpack.c.bf16 %v3760, %v3756
  %v3857 = vpack.c.bf16 %v3761, %v3757
  %v3858 = vpack.c.bf16 %v3762, %v3758
  %v3859 = vpack.c.bf16 %v3763, %v3759
  %v3860 = vpack.c.bf16 %v3768, %v3764
  %v3861 = vpack.c.bf16 %v3769, %v3765
  %v3862 = vpack.c.bf16 %v3770, %v3766
  %v3863 = vpack.c.bf16 %v3771, %v3767
  %v3864 = vpack.c.bf16 %v3776, %v3772
  %v3865 = vpack.c.bf16 %v3777, %v3773
  %v3866 = vpack.c.bf16 %v3778, %v3774
  %v3867 = vpack.c.bf16 %v3779, %v3775
  %v3868 = vpack.c.bf16 %v3784, %v3780
  %v3869 = vpack.c.bf16 %v3785, %v3781
  %v3870 = vpack.c.bf16 %v3786, %v3782
  %v3871 = vpack.c.bf16 %v3787, %v3783
  %v3872 = vpack.c.bf16 %v3792, %v3788
  %v3873 = vpack.c.bf16 %v3793, %v3789
  %v3874 = vpack.c.bf16 %v3794, %v3790
  %v3875 = vpack.c.bf16 %v3795, %v3791
  %v3876 = vpack.c.bf16 %v3800, %v3796
  %v3877 = vpack.c.bf16 %v3801, %v3797
  %v3878 = vpack.c.bf16 %v3802, %v3798
  %v3879 = vpack.c.bf16 %v3803, %v3799
  %v3880 = vpack.c.bf16 %v3808, %v3804
  %v3881 = vpack.c.bf16 %v3809, %v3805
  %v3882 = vpack.c.bf16 %v3810, %v3806
  %v3883 = vpack.c.bf16 %v3811, %v3807
  %v3884 = vpack.c.bf16 %v3816, %v3812
  %v3885 = vpack.c.bf16 %v3817, %v3813
  %v3886 = vpack.c.bf16 %v3818, %v3814
  %v3887 = vpack.c.bf16 %v3819, %v3815
  %v3888 = vpack.c.bf16 %v3824, %v3820
  %v3889 = vpack.c.bf16 %v3825, %v3821
  %v3890 = vpack.c.bf16 %v3826, %v3822
  %v3891 = vpack.c.bf16 %v3827, %v3823
  %v3892 = vld [vmem:[%s7] sm:$0xff]
  %v3893 = vld [vmem:[%s7 + $0x8] sm:$0xff]
  %v3894 = vld [vmem:[%s7 + $0x10] sm:$0xff]
  %v3895 = vld [vmem:[%s7 + $0x18] sm:$0xff]
  %v3896 = vld [vmem:[%s7 + $0x20] sm:$0xff]
  %v3897 = vld [vmem:[%s7 + $0x28] sm:$0xff]
  %v3898 = vld [vmem:[%s7 + $0x30] sm:$0xff]
  %v3899 = vld [vmem:[%s7 + $0x38] sm:$0xff]
  %v3900 = vld [vmem:[%s7 + $0x40] sm:$0xff]
  %v3901 = vld [vmem:[%s7 + $0x48] sm:$0xff]
  %v3902 = vld [vmem:[%s7 + $0x50] sm:$0xff]
  %v3903 = vld [vmem:[%s7 + $0x58] sm:$0xff]
  %v3904 = vld [vmem:[%s7 + $0x60] sm:$0xff]
  %v3905 = vld [vmem:[%s7 + $0x68] sm:$0xff]
  %v3906 = vld [vmem:[%s7 + $0x70] sm:$0xff]
  %v3907 = vld [vmem:[%s7 + $0x78] sm:$0xff]
  %v3908 = vld [vmem:[%s7 + $0x80] sm:$0xff]
  %v3909 = vld [vmem:[%s7 + $0x88] sm:$0xff]
  %v3910 = vld [vmem:[%s7 + $0x90] sm:$0xff]
  %v3911 = vld [vmem:[%s7 + $0x98] sm:$0xff]
  %v3912 = vld [vmem:[%s7 + $0xa0] sm:$0xff]
  %v3913 = vld [vmem:[%s7 + $0xa8] sm:$0xff]
  %v3914 = vld [vmem:[%s7 + $0xb0] sm:$0xff]
  %v3915 = vld [vmem:[%s7 + $0xb8] sm:$0xff]
  %v3916 = vld [vmem:[%s7 + $0xc0] sm:$0xff]
  %v3917 = vld [vmem:[%s7 + $0xc8] sm:$0xff]
  %v3918 = vld [vmem:[%s7 + $0xd0] sm:$0xff]
  %v3919 = vld [vmem:[%s7 + $0xd8] sm:$0xff]
  %v3920 = vld [vmem:[%s7 + $0xe0] sm:$0xff]
  %v3921 = vld [vmem:[%s7 + $0xe8] sm:$0xff]
  %v3922 = vld [vmem:[%s7 + $0xf0] sm:$0xff]
  %v3923 = vld [vmem:[%s7 + $0xf8] sm:$0xff]
  %v3924 = vld [vmem:[%s7 + $0x100] sm:$0xff]
  %v3925 = vld [vmem:[%s7 + $0x108] sm:$0xff]
  %v3926 = vld [vmem:[%s7 + $0x110] sm:$0xff]
  %v3927 = vld [vmem:[%s7 + $0x118] sm:$0xff]
  %v3928 = vld [vmem:[%s7 + $0x120] sm:$0xff]
  %v3929 = vld [vmem:[%s7 + $0x128] sm:$0xff]
  %v3930 = vld [vmem:[%s7 + $0x130] sm:$0xff]
  %v3931 = vld [vmem:[%s7 + $0x138] sm:$0xff]
  %v3932 = vld [vmem:[%s7 + $0x140] sm:$0xff]
  %v3933 = vld [vmem:[%s7 + $0x148] sm:$0xff]
  %v3934 = vld [vmem:[%s7 + $0x150] sm:$0xff]
  %v3935 = vld [vmem:[%s7 + $0x158] sm:$0xff]
  %v3936 = vld [vmem:[%s7 + $0x160] sm:$0xff]
  %v3937 = vld [vmem:[%s7 + $0x168] sm:$0xff]
  %v3938 = vld [vmem:[%s7 + $0x170] sm:$0xff]
  %v3939 = vld [vmem:[%s7 + $0x178] sm:$0xff]
  %v3940 = vld [vmem:[%s7 + $0x180] sm:$0xff]
  %v3941 = vld [vmem:[%s7 + $0x188] sm:$0xff]
  %v3942 = vld [vmem:[%s7 + $0x190] sm:$0xff]
  %v3943 = vld [vmem:[%s7 + $0x198] sm:$0xff]
  %v3944 = vld [vmem:[%s7 + $0x1a0] sm:$0xff]
  %v3945 = vld [vmem:[%s7 + $0x1a8] sm:$0xff]
  %v3946 = vld [vmem:[%s7 + $0x1b0] sm:$0xff]
  %v3947 = vld [vmem:[%s7 + $0x1b8] sm:$0xff]
  %v3948 = vld [vmem:[%s7 + $0x1c0] sm:$0xff]
  %v3949 = vld [vmem:[%s7 + $0x1c8] sm:$0xff]
  %v3950 = vld [vmem:[%s7 + $0x1d0] sm:$0xff]
  %v3951 = vld [vmem:[%s7 + $0x1d8] sm:$0xff]
  %v3952 = vld [vmem:[%s7 + $0x1e0] sm:$0xff]
  %v3953 = vld [vmem:[%s7 + $0x1e8] sm:$0xff]
  %v3954 = vld [vmem:[%s7 + $0x1f0] sm:$0xff]
  %v3955 = vld [vmem:[%s7 + $0x1f8] sm:$0xff]
  %v3956 = vld [vmem:[%s7 + $0x200] sm:$0xff]
  %v3957 = vld [vmem:[%s7 + $0x208] sm:$0xff]
  %v3958 = vld [vmem:[%s7 + $0x210] sm:$0xff]
  %v3959 = vld [vmem:[%s7 + $0x218] sm:$0xff]
  %v3960 = vld [vmem:[%s7 + $0x220] sm:$0xff]
  %v3961 = vld [vmem:[%s7 + $0x228] sm:$0xff]
  %v3962 = vld [vmem:[%s7 + $0x230] sm:$0xff]
  %v3963 = vld [vmem:[%s7 + $0x238] sm:$0xff]
  %v3964 = vld [vmem:[%s7 + $0x240] sm:$0xff]
  %v3965 = vld [vmem:[%s7 + $0x248] sm:$0xff]
  %v3966 = vld [vmem:[%s7 + $0x250] sm:$0xff]
  %v3967 = vld [vmem:[%s7 + $0x258] sm:$0xff]
  %v3968 = vld [vmem:[%s7 + $0x260] sm:$0xff]
  %v3969 = vld [vmem:[%s7 + $0x268] sm:$0xff]
  %v3970 = vld [vmem:[%s7 + $0x270] sm:$0xff]
  %v3971 = vld [vmem:[%s7 + $0x278] sm:$0xff]
  %v3972 = vld [vmem:[%s7 + $0x280] sm:$0xff]
  %v3973 = vld [vmem:[%s7 + $0x288] sm:$0xff]
  %v3974 = vld [vmem:[%s7 + $0x290] sm:$0xff]
  %v3975 = vld [vmem:[%s7 + $0x298] sm:$0xff]
  %v3976 = vld [vmem:[%s7 + $0x2a0] sm:$0xff]
  %v3977 = vld [vmem:[%s7 + $0x2a8] sm:$0xff]
  %v3978 = vld [vmem:[%s7 + $0x2b0] sm:$0xff]
  %v3979 = vld [vmem:[%s7 + $0x2b8] sm:$0xff]
  %v3980 = vld [vmem:[%s7 + $0x2c0] sm:$0xff]
  %v3981 = vld [vmem:[%s7 + $0x2c8] sm:$0xff]
  %v3982 = vld [vmem:[%s7 + $0x2d0] sm:$0xff]
  %v3983 = vld [vmem:[%s7 + $0x2d8] sm:$0xff]
  %v3984 = vld [vmem:[%s7 + $0x2e0] sm:$0xff]
  %v3985 = vld [vmem:[%s7 + $0x2e8] sm:$0xff]
  %v3986 = vld [vmem:[%s7 + $0x2f0] sm:$0xff]
  %v3987 = vld [vmem:[%s7 + $0x2f8] sm:$0xff]
  %v3988 = vld [vmem:[%s7 + $0x300] sm:$0xff]
  %v3989 = vld [vmem:[%s7 + $0x308] sm:$0xff]
  %v3990 = vld [vmem:[%s7 + $0x310] sm:$0xff]
  %v3991 = vld [vmem:[%s7 + $0x318] sm:$0xff]
  %v3992 = vld [vmem:[%s7 + $0x320] sm:$0xff]
  %v3993 = vld [vmem:[%s7 + $0x328] sm:$0xff]
  %v3994 = vld [vmem:[%s7 + $0x330] sm:$0xff]
  %v3995 = vld [vmem:[%s7 + $0x338] sm:$0xff]
  %v3996 = vld [vmem:[%s7 + $0x340] sm:$0xff]
  %v3997 = vld [vmem:[%s7 + $0x348] sm:$0xff]
  %v3998 = vld [vmem:[%s7 + $0x350] sm:$0xff]
  %v3999 = vld [vmem:[%s7 + $0x358] sm:$0xff]
  %v4000 = vld [vmem:[%s7 + $0x360] sm:$0xff]
  %v4001 = vld [vmem:[%s7 + $0x368] sm:$0xff]
  %v4002 = vld [vmem:[%s7 + $0x370] sm:$0xff]
  %v4003 = vld [vmem:[%s7 + $0x378] sm:$0xff]
  %v4004 = vld [vmem:[%s7 + $0x380] sm:$0xff]
  %v4005 = vld [vmem:[%s7 + $0x388] sm:$0xff]
  %v4006 = vld [vmem:[%s7 + $0x390] sm:$0xff]
  %v4007 = vld [vmem:[%s7 + $0x398] sm:$0xff]
  %v4008 = vld [vmem:[%s7 + $0x3a0] sm:$0xff]
  %v4009 = vld [vmem:[%s7 + $0x3a8] sm:$0xff]
  %v4010 = vld [vmem:[%s7 + $0x3b0] sm:$0xff]
  %v4011 = vld [vmem:[%s7 + $0x3b8] sm:$0xff]
  %v4012 = vld [vmem:[%s7 + $0x3c0] sm:$0xff]
  %v4013 = vld [vmem:[%s7 + $0x3c8] sm:$0xff]
  %v4014 = vld [vmem:[%s7 + $0x3d0] sm:$0xff]
  %v4015 = vld [vmem:[%s7 + $0x3d8] sm:$0xff]
  %v4016 = vld [vmem:[%s7 + $0x3e0] sm:$0x33]
  %v4017 = vld [vmem:[%s7 + $0x3e8] sm:$0x33]
  %v4018 = vld [vmem:[%s8] sm:$0xf]
  %v4020 = vlaneseq
  %v4021 = vshrl.u32 %v4020, 7
  %v4022 = vsub.s32 0, %v4021
  %v4023 = vrot.slane %v4018, %v4022
  %v4024 = vlaneseq
  %v4025 = vshrl.u32 %v4024, 7
  %v4026 = vsub.s32 1, %v4025
  %v4027 = vrot.slane %v4018, %v4026
  %v4028 = vlaneseq
  %v4029 = vshrl.u32 %v4028, 7
  %v4030 = vsub.s32 2, %v4029
  %v4031 = vrot.slane %v4018, %v4030
  %v4032 = vlaneseq
  %v4033 = vshrl.u32 %v4032, 7
  %v4034 = vsub.s32 3, %v4033
  %v4035 = vrot.slane %v4018, %v4034
  %v4166 = vunpack.c.l.b16 %v3892
  %v4167 = vunpack.c.h.b16 %v3892
  %v4168 = vunpack.c.l.b16 %v3893
  %v4169 = vunpack.c.h.b16 %v3893
  %v4170 = vunpack.c.l.b16 %v3894
  %v4171 = vunpack.c.h.b16 %v3894
  %v4172 = vunpack.c.l.b16 %v3895
  %v4173 = vunpack.c.h.b16 %v3895
  %v4174 = vunpack.c.l.b16 %v3896
  %v4175 = vunpack.c.h.b16 %v3896
  %v4176 = vunpack.c.l.b16 %v3897
  %v4177 = vunpack.c.h.b16 %v3897
  %v4178 = vunpack.c.l.b16 %v3898
  %v4179 = vunpack.c.h.b16 %v3898
  %v4180 = vunpack.c.l.b16 %v3899
  %v4181 = vunpack.c.h.b16 %v3899
  %v4182 = vunpack.c.l.b16 %v3900
  %v4183 = vunpack.c.h.b16 %v3900
  %v4184 = vunpack.c.l.b16 %v3901
  %v4185 = vunpack.c.h.b16 %v3901
  %v4186 = vunpack.c.l.b16 %v3902
  %v4187 = vunpack.c.h.b16 %v3902
  %v4188 = vunpack.c.l.b16 %v3903
  %v4189 = vunpack.c.h.b16 %v3903
  %v4190 = vunpack.c.l.b16 %v3904
  %v4191 = vunpack.c.h.b16 %v3904
  %v4192 = vunpack.c.l.b16 %v3905
  %v4193 = vunpack.c.h.b16 %v3905
  %v4194 = vunpack.c.l.b16 %v3906
  %v4195 = vunpack.c.h.b16 %v3906
  %v4196 = vunpack.c.l.b16 %v3907
  %v4197 = vunpack.c.h.b16 %v3907
  %v4198 = vunpack.c.l.b16 %v3908
  %v4199 = vunpack.c.h.b16 %v3908
  %v4200 = vunpack.c.l.b16 %v3909
  %v4201 = vunpack.c.h.b16 %v3909
  %v4202 = vunpack.c.l.b16 %v3910
  %v4203 = vunpack.c.h.b16 %v3910
  %v4204 = vunpack.c.l.b16 %v3911
  %v4205 = vunpack.c.h.b16 %v3911
  %v4206 = vunpack.c.l.b16 %v3912
  %v4207 = vunpack.c.h.b16 %v3912
  %v4208 = vunpack.c.l.b16 %v3913
  %v4209 = vunpack.c.h.b16 %v3913
  %v4210 = vunpack.c.l.b16 %v3914
  %v4211 = vunpack.c.h.b16 %v3914
  %v4212 = vunpack.c.l.b16 %v3915
  %v4213 = vunpack.c.h.b16 %v3915
  %v4214 = vunpack.c.l.b16 %v3916
  %v4215 = vunpack.c.h.b16 %v3916
  %v4216 = vunpack.c.l.b16 %v3917
  %v4217 = vunpack.c.h.b16 %v3917
  %v4218 = vunpack.c.l.b16 %v3918
  %v4219 = vunpack.c.h.b16 %v3918
  %v4220 = vunpack.c.l.b16 %v3919
  %v4221 = vunpack.c.h.b16 %v3919
  %v4222 = vunpack.c.l.b16 %v3920
  %v4223 = vunpack.c.h.b16 %v3920
  %v4224 = vunpack.c.l.b16 %v3921
  %v4225 = vunpack.c.h.b16 %v3921
  %v4226 = vunpack.c.l.b16 %v3922
  %v4227 = vunpack.c.h.b16 %v3922
  %v4228 = vunpack.c.l.b16 %v3923
  %v4229 = vunpack.c.h.b16 %v3923
  %v4230 = vunpack.c.l.b16 %v3924
  %v4231 = vunpack.c.h.b16 %v3924
  %v4232 = vunpack.c.l.b16 %v3925
  %v4233 = vunpack.c.h.b16 %v3925
  %v4234 = vunpack.c.l.b16 %v3926
  %v4235 = vunpack.c.h.b16 %v3926
  %v4236 = vunpack.c.l.b16 %v3927
  %v4237 = vunpack.c.h.b16 %v3927
  %v4238 = vunpack.c.l.b16 %v3928
  %v4239 = vunpack.c.h.b16 %v3928
  %v4240 = vunpack.c.l.b16 %v3929
  %v4241 = vunpack.c.h.b16 %v3929
  %v4242 = vunpack.c.l.b16 %v3930
  %v4243 = vunpack.c.h.b16 %v3930
  %v4244 = vunpack.c.l.b16 %v3931
  %v4245 = vunpack.c.h.b16 %v3931
  %v4246 = vunpack.c.l.b16 %v3932
  %v4247 = vunpack.c.h.b16 %v3932
  %v4248 = vunpack.c.l.b16 %v3933
  %v4249 = vunpack.c.h.b16 %v3933
  %v4250 = vunpack.c.l.b16 %v3934
  %v4251 = vunpack.c.h.b16 %v3934
  %v4252 = vunpack.c.l.b16 %v3935
  %v4253 = vunpack.c.h.b16 %v3935
  %v4254 = vunpack.c.l.b16 %v3936
  %v4255 = vunpack.c.h.b16 %v3936
  %v4256 = vunpack.c.l.b16 %v3937
  %v4257 = vunpack.c.h.b16 %v3937
  %v4258 = vunpack.c.l.b16 %v3938
  %v4259 = vunpack.c.h.b16 %v3938
  %v4260 = vunpack.c.l.b16 %v3939
  %v4261 = vunpack.c.h.b16 %v3939
  %v4262 = vunpack.c.l.b16 %v3940
  %v4263 = vunpack.c.h.b16 %v3940
  %v4264 = vunpack.c.l.b16 %v3941
  %v4265 = vunpack.c.h.b16 %v3941
  %v4266 = vunpack.c.l.b16 %v3942
  %v4267 = vunpack.c.h.b16 %v3942
  %v4268 = vunpack.c.l.b16 %v3943
  %v4269 = vunpack.c.h.b16 %v3943
  %v4270 = vunpack.c.l.b16 %v3944
  %v4271 = vunpack.c.h.b16 %v3944
  %v4272 = vunpack.c.l.b16 %v3945
  %v4273 = vunpack.c.h.b16 %v3945
  %v4274 = vunpack.c.l.b16 %v3946
  %v4275 = vunpack.c.h.b16 %v3946
  %v4276 = vunpack.c.l.b16 %v3947
  %v4277 = vunpack.c.h.b16 %v3947
  %v4278 = vunpack.c.l.b16 %v3948
  %v4279 = vunpack.c.h.b16 %v3948
  %v4280 = vunpack.c.l.b16 %v3949
  %v4281 = vunpack.c.h.b16 %v3949
  %v4282 = vunpack.c.l.b16 %v3950
  %v4283 = vunpack.c.h.b16 %v3950
  %v4284 = vunpack.c.l.b16 %v3951
  %v4285 = vunpack.c.h.b16 %v3951
  %v4286 = vunpack.c.l.b16 %v3952
  %v4287 = vunpack.c.h.b16 %v3952
  %v4288 = vunpack.c.l.b16 %v3953
  %v4289 = vunpack.c.h.b16 %v3953
  %v4290 = vunpack.c.l.b16 %v3954
  %v4291 = vunpack.c.h.b16 %v3954
  %v4292 = vunpack.c.l.b16 %v3955
  %v4293 = vunpack.c.h.b16 %v3955
  %v4294 = vunpack.c.l.b16 %v3956
  %v4295 = vunpack.c.h.b16 %v3956
  %v4296 = vunpack.c.l.b16 %v3957
  %v4297 = vunpack.c.h.b16 %v3957
  %v4298 = vunpack.c.l.b16 %v3958
  %v4299 = vunpack.c.h.b16 %v3958
  %v4300 = vunpack.c.l.b16 %v3959
  %v4301 = vunpack.c.h.b16 %v3959
  %v4302 = vunpack.c.l.b16 %v3960
  %v4303 = vunpack.c.h.b16 %v3960
  %v4304 = vunpack.c.l.b16 %v3961
  %v4305 = vunpack.c.h.b16 %v3961
  %v4306 = vunpack.c.l.b16 %v3962
  %v4307 = vunpack.c.h.b16 %v3962
  %v4308 = vunpack.c.l.b16 %v3963
  %v4309 = vunpack.c.h.b16 %v3963
  %v4310 = vunpack.c.l.b16 %v3964
  %v4311 = vunpack.c.h.b16 %v3964
  %v4312 = vunpack.c.l.b16 %v3965
  %v4313 = vunpack.c.h.b16 %v3965
  %v4314 = vunpack.c.l.b16 %v3966
  %v4315 = vunpack.c.h.b16 %v3966
  %v4316 = vunpack.c.l.b16 %v3967
  %v4317 = vunpack.c.h.b16 %v3967
  %v4318 = vunpack.c.l.b16 %v3968
  %v4319 = vunpack.c.h.b16 %v3968
  %v4320 = vunpack.c.l.b16 %v3969
  %v4321 = vunpack.c.h.b16 %v3969
  %v4322 = vunpack.c.l.b16 %v3970
  %v4323 = vunpack.c.h.b16 %v3970
  %v4324 = vunpack.c.l.b16 %v3971
  %v4325 = vunpack.c.h.b16 %v3971
  %v4326 = vunpack.c.l.b16 %v3972
  %v4327 = vunpack.c.h.b16 %v3972
  %v4328 = vunpack.c.l.b16 %v3973
  %v4329 = vunpack.c.h.b16 %v3973
  %v4330 = vunpack.c.l.b16 %v3974
  %v4331 = vunpack.c.h.b16 %v3974
  %v4332 = vunpack.c.l.b16 %v3975
  %v4333 = vunpack.c.h.b16 %v3975
  %v4334 = vunpack.c.l.b16 %v3976
  %v4335 = vunpack.c.h.b16 %v3976
  %v4336 = vunpack.c.l.b16 %v3977
  %v4337 = vunpack.c.h.b16 %v3977
  %v4338 = vunpack.c.l.b16 %v3978
  %v4339 = vunpack.c.h.b16 %v3978
  %v4340 = vunpack.c.l.b16 %v3979
  %v4341 = vunpack.c.h.b16 %v3979
  %v4342 = vunpack.c.l.b16 %v3980
  %v4343 = vunpack.c.h.b16 %v3980
  %v4344 = vunpack.c.l.b16 %v3981
  %v4345 = vunpack.c.h.b16 %v3981
  %v4346 = vunpack.c.l.b16 %v3982
  %v4347 = vunpack.c.h.b16 %v3982
  %v4348 = vunpack.c.l.b16 %v3983
  %v4349 = vunpack.c.h.b16 %v3983
  %v4350 = vunpack.c.l.b16 %v3984
  %v4351 = vunpack.c.h.b16 %v3984
  %v4352 = vunpack.c.l.b16 %v3985
  %v4353 = vunpack.c.h.b16 %v3985
  %v4354 = vunpack.c.l.b16 %v3986
  %v4355 = vunpack.c.h.b16 %v3986
  %v4356 = vunpack.c.l.b16 %v3987
  %v4357 = vunpack.c.h.b16 %v3987
  %v4358 = vunpack.c.l.b16 %v3988
  %v4359 = vunpack.c.h.b16 %v3988
  %v4360 = vunpack.c.l.b16 %v3989
  %v4361 = vunpack.c.h.b16 %v3989
  %v4362 = vunpack.c.l.b16 %v3990
  %v4363 = vunpack.c.h.b16 %v3990
  %v4364 = vunpack.c.l.b16 %v3991
  %v4365 = vunpack.c.h.b16 %v3991
  %v4366 = vunpack.c.l.b16 %v3992
  %v4367 = vunpack.c.h.b16 %v3992
  %v4368 = vunpack.c.l.b16 %v3993
  %v4369 = vunpack.c.h.b16 %v3993
  %v4370 = vunpack.c.l.b16 %v3994
  %v4371 = vunpack.c.h.b16 %v3994
  %v4372 = vunpack.c.l.b16 %v3995
  %v4373 = vunpack.c.h.b16 %v3995
  %v4374 = vunpack.c.l.b16 %v3996
  %v4375 = vunpack.c.h.b16 %v3996
  %v4376 = vunpack.c.l.b16 %v3997
  %v4377 = vunpack.c.h.b16 %v3997
  %v4378 = vunpack.c.l.b16 %v3998
  %v4379 = vunpack.c.h.b16 %v3998
  %v4380 = vunpack.c.l.b16 %v3999
  %v4381 = vunpack.c.h.b16 %v3999
  %v4382 = vunpack.c.l.b16 %v4000
  %v4383 = vunpack.c.h.b16 %v4000
  %v4384 = vunpack.c.l.b16 %v4001
  %v4385 = vunpack.c.h.b16 %v4001
  %v4386 = vunpack.c.l.b16 %v4002
  %v4387 = vunpack.c.h.b16 %v4002
  %v4388 = vunpack.c.l.b16 %v4003
  %v4389 = vunpack.c.h.b16 %v4003
  %v4390 = vunpack.c.l.b16 %v4004
  %v4391 = vunpack.c.h.b16 %v4004
  %v4392 = vunpack.c.l.b16 %v4005
  %v4393 = vunpack.c.h.b16 %v4005
  %v4394 = vunpack.c.l.b16 %v4006
  %v4395 = vunpack.c.h.b16 %v4006
  %v4396 = vunpack.c.l.b16 %v4007
  %v4397 = vunpack.c.h.b16 %v4007
  %v4398 = vunpack.c.l.b16 %v4008
  %v4399 = vunpack.c.h.b16 %v4008
  %v4400 = vunpack.c.l.b16 %v4009
  %v4401 = vunpack.c.h.b16 %v4009
  %v4402 = vunpack.c.l.b16 %v4010
  %v4403 = vunpack.c.h.b16 %v4010
  %v4404 = vunpack.c.l.b16 %v4011
  %v4405 = vunpack.c.h.b16 %v4011
  %v4406 = vunpack.c.l.b16 %v4012
  %v4407 = vunpack.c.h.b16 %v4012
  %v4408 = vunpack.c.l.b16 %v4013
  %v4409 = vunpack.c.h.b16 %v4013
  %v4410 = vunpack.c.l.b16 %v4014
  %v4411 = vunpack.c.h.b16 %v4014
  %v4412 = vunpack.c.l.b16 %v4015
  %v4413 = vunpack.c.h.b16 %v4015
  %v4414 = vunpack.c.l.b16 %v4016
  %v4415 = vunpack.c.h.b16 %v4016
  %v4416 = vunpack.c.l.b16 %v4017
  %v4417 = vunpack.c.h.b16 %v4017
  %v4418 = vpack.c.b16 %v4170, %v4166
  %v4419 = vpack.c.b16 %v4171, %v4167
  %v4420 = vpack.c.b16 %v4172, %v4168
  %v4421 = vpack.c.b16 %v4173, %v4169
  %v4422 = vpack.c.b16 %v4178, %v4174
  %v4423 = vpack.c.b16 %v4179, %v4175
  %v4424 = vpack.c.b16 %v4180, %v4176
  %v4425 = vpack.c.b16 %v4181, %v4177
  %v4426 = vpack.c.b16 %v4186, %v4182
  %v4427 = vpack.c.b16 %v4187, %v4183
  %v4428 = vpack.c.b16 %v4188, %v4184
  %v4429 = vpack.c.b16 %v4189, %v4185
  %v4430 = vpack.c.b16 %v4194, %v4190
  %v4431 = vpack.c.b16 %v4195, %v4191
  %v4432 = vpack.c.b16 %v4196, %v4192
  %v4433 = vpack.c.b16 %v4197, %v4193
  %v4434 = vpack.c.b16 %v4202, %v4198
  %v4435 = vpack.c.b16 %v4203, %v4199
  %v4436 = vpack.c.b16 %v4204, %v4200
  %v4437 = vpack.c.b16 %v4205, %v4201
  %v4438 = vpack.c.b16 %v4210, %v4206
  %v4439 = vpack.c.b16 %v4211, %v4207
  %v4440 = vpack.c.b16 %v4212, %v4208
  %v4441 = vpack.c.b16 %v4213, %v4209
  %v4442 = vpack.c.b16 %v4218, %v4214
  %v4443 = vpack.c.b16 %v4219, %v4215
  %v4444 = vpack.c.b16 %v4220, %v4216
  %v4445 = vpack.c.b16 %v4221, %v4217
  %v4446 = vpack.c.b16 %v4226, %v4222
  %v4447 = vpack.c.b16 %v4227, %v4223
  %v4448 = vpack.c.b16 %v4228, %v4224
  %v4449 = vpack.c.b16 %v4229, %v4225
  %v4450 = vpack.c.b16 %v4234, %v4230
  %v4451 = vpack.c.b16 %v4235, %v4231
  %v4452 = vpack.c.b16 %v4236, %v4232
  %v4453 = vpack.c.b16 %v4237, %v4233
  %v4454 = vpack.c.b16 %v4242, %v4238
  %v4455 = vpack.c.b16 %v4243, %v4239
  %v4456 = vpack.c.b16 %v4244, %v4240
  %v4457 = vpack.c.b16 %v4245, %v4241
  %v4458 = vpack.c.b16 %v4250, %v4246
  %v4459 = vpack.c.b16 %v4251, %v4247
  %v4460 = vpack.c.b16 %v4252, %v4248
  %v4461 = vpack.c.b16 %v4253, %v4249
  %v4462 = vpack.c.b16 %v4258, %v4254
  %v4463 = vpack.c.b16 %v4259, %v4255
  %v4464 = vpack.c.b16 %v4260, %v4256
  %v4465 = vpack.c.b16 %v4261, %v4257
  %v4466 = vpack.c.b16 %v4266, %v4262
  %v4467 = vpack.c.b16 %v4267, %v4263
  %v4468 = vpack.c.b16 %v4268, %v4264
  %v4469 = vpack.c.b16 %v4269, %v4265
  %v4470 = vpack.c.b16 %v4274, %v4270
  %v4471 = vpack.c.b16 %v4275, %v4271
  %v4472 = vpack.c.b16 %v4276, %v4272
  %v4473 = vpack.c.b16 %v4277, %v4273
  %v4474 = vpack.c.b16 %v4282, %v4278
  %v4475 = vpack.c.b16 %v4283, %v4279
  %v4476 = vpack.c.b16 %v4284, %v4280
  %v4477 = vpack.c.b16 %v4285, %v4281
  %v4478 = vpack.c.b16 %v4290, %v4286
  %v4479 = vpack.c.b16 %v4291, %v4287
  %v4480 = vpack.c.b16 %v4292, %v4288
  %v4481 = vpack.c.b16 %v4293, %v4289
  %v4482 = vpack.c.b16 %v4298, %v4294
  %v4483 = vpack.c.b16 %v4299, %v4295
  %v4484 = vpack.c.b16 %v4300, %v4296
  %v4485 = vpack.c.b16 %v4301, %v4297
  %v4486 = vpack.c.b16 %v4306, %v4302
  %v4487 = vpack.c.b16 %v4307, %v4303
  %v4488 = vpack.c.b16 %v4308, %v4304
  %v4489 = vpack.c.b16 %v4309, %v4305
  %v4490 = vpack.c.b16 %v4314, %v4310
  %v4491 = vpack.c.b16 %v4315, %v4311
  %v4492 = vpack.c.b16 %v4316, %v4312
  %v4493 = vpack.c.b16 %v4317, %v4313
  %v4494 = vpack.c.b16 %v4322, %v4318
  %v4495 = vpack.c.b16 %v4323, %v4319
  %v4496 = vpack.c.b16 %v4324, %v4320
  %v4497 = vpack.c.b16 %v4325, %v4321
  %v4498 = vpack.c.b16 %v4330, %v4326
  %v4499 = vpack.c.b16 %v4331, %v4327
  %v4500 = vpack.c.b16 %v4332, %v4328
  %v4501 = vpack.c.b16 %v4333, %v4329
  %v4502 = vpack.c.b16 %v4338, %v4334
  %v4503 = vpack.c.b16 %v4339, %v4335
  %v4504 = vpack.c.b16 %v4340, %v4336
  %v4505 = vpack.c.b16 %v4341, %v4337
  %v4506 = vpack.c.b16 %v4346, %v4342
  %v4507 = vpack.c.b16 %v4347, %v4343
  %v4508 = vpack.c.b16 %v4348, %v4344
  %v4509 = vpack.c.b16 %v4349, %v4345
  %v4510 = vpack.c.b16 %v4354, %v4350
  %v4511 = vpack.c.b16 %v4355, %v4351
  %v4512 = vpack.c.b16 %v4356, %v4352
  %v4513 = vpack.c.b16 %v4357, %v4353
  %v4514 = vpack.c.b16 %v4362, %v4358
  %v4515 = vpack.c.b16 %v4363, %v4359
  %v4516 = vpack.c.b16 %v4364, %v4360
  %v4517 = vpack.c.b16 %v4365, %v4361
  %v4518 = vpack.c.b16 %v4370, %v4366
  %v4519 = vpack.c.b16 %v4371, %v4367
  %v4520 = vpack.c.b16 %v4372, %v4368
  %v4521 = vpack.c.b16 %v4373, %v4369
  %v4522 = vpack.c.b16 %v4378, %v4374
  %v4523 = vpack.c.b16 %v4379, %v4375
  %v4524 = vpack.c.b16 %v4380, %v4376
  %v4525 = vpack.c.b16 %v4381, %v4377
  %v4526 = vpack.c.b16 %v4386, %v4382
  %v4527 = vpack.c.b16 %v4387, %v4383
  %v4528 = vpack.c.b16 %v4388, %v4384
  %v4529 = vpack.c.b16 %v4389, %v4385
  %v4530 = vpack.c.b16 %v4394, %v4390
  %v4531 = vpack.c.b16 %v4395, %v4391
  %v4532 = vpack.c.b16 %v4396, %v4392
  %v4533 = vpack.c.b16 %v4397, %v4393
  %v4534 = vpack.c.b16 %v4402, %v4398
  %v4535 = vpack.c.b16 %v4403, %v4399
  %v4536 = vpack.c.b16 %v4404, %v4400
  %v4537 = vpack.c.b16 %v4405, %v4401
  %v4538 = vpack.c.b16 %v4410, %v4406
  %v4539 = vpack.c.b16 %v4411, %v4407
  %v4540 = vpack.c.b16 %v4412, %v4408
  %v4541 = vpack.c.b16 %v4413, %v4409
  %v4542 = vpack.c.b16 %v4414, %v4414
  %v4543 = vpack.c.b16 %v4415, %v4415
  %v4544 = vpack.c.b16 %v4416, %v4416
  %v4545 = vpack.c.b16 %v4417, %v4417
  %vm4670 = vcmask 949248
  %v4672 = vsel %vm4670, %v3831, 0
  %v4675 = vsel %vm4670, %v3835, 0
  %v4678 = vsel %vm4670, %v3839, 0
  %v4681 = vsel %vm4670, %v3843, 0
  %v4684 = vsel %vm4670, %v3847, 0
  %v4687 = vsel %vm4670, %v3851, 0
  %v4690 = vsel %vm4670, %v3855, 0
  %v4693 = vsel %vm4670, %v3859, 0
  %v4696 = vsel %vm4670, %v3863, 0
  %v4699 = vsel %vm4670, %v3867, 0
  %v4702 = vsel %vm4670, %v3871, 0
  %v4705 = vsel %vm4670, %v3875, 0
  %v4708 = vsel %vm4670, %v3879, 0
  %v4711 = vsel %vm4670, %v3883, 0
  %v4714 = vsel %vm4670, %v3887, 0
  %v4717 = vsel %vm4670, %v3891, 0
  %vm4719 = vcmask 1041408
  %v4721 = vsel %vm4719, %v4542, 0
  %v4724 = vsel %vm4719, %v4543, 0
  %v4727 = vsel %vm4719, %v4544, 0
  %v4730 = vsel %vm4719, %v4545, 0
  %4732 = vmatprep.subr.bf16.mxu0 %v4419
  %4733 = vmatpush1.bf16.msra.mxu0 %v4418
  %4734 = vmatprep.subr.bf16.mxu0 %v4423
  %4735 = vmatpush1.bf16.msra.mxu0 %v4422
  %4736 = vmatprep.subr.bf16.mxu0 %v4427
  %4737 = vmatpush1.bf16.msra.mxu0 %v4426
  %4738 = vmatprep.subr.bf16.mxu0 %v4431
  %4739 = vmatpush1.bf16.msra.mxu0 %v4430
  %4740 = vmatprep.subr.bf16.mxu0 %v4435
  %4741 = vmatpush1.bf16.msra.mxu0 %v4434
  %4742 = vmatprep.subr.bf16.mxu0 %v4439
  %4743 = vmatpush1.bf16.msra.mxu0 %v4438
  %4744 = vmatprep.subr.bf16.mxu0 %v4443
  %4745 = vmatpush1.bf16.msra.mxu0 %v4442
  %4746 = vmatprep.subr.bf16.mxu0 %v4447
  %4747 = vmatpush1.bf16.msra.mxu0 %v4446
  %4748 = vmatprep.subr.bf16.mxu0 %v4451
  %4749 = vmatpush1.bf16.msra.mxu0 %v4450
  %4750 = vmatprep.subr.bf16.mxu0 %v4455
  %4751 = vmatpush1.bf16.msra.mxu0 %v4454
  %4752 = vmatprep.subr.bf16.mxu0 %v4459
  %4753 = vmatpush1.bf16.msra.mxu0 %v4458
  %4754 = vmatprep.subr.bf16.mxu0 %v4463
  %4755 = vmatpush1.bf16.msra.mxu0 %v4462
  %4756 = vmatprep.subr.bf16.mxu0 %v4467
  %4757 = vmatpush1.bf16.msra.mxu0 %v4466
  %4758 = vmatprep.subr.bf16.mxu0 %v4471
  %4759 = vmatpush1.bf16.msra.mxu0 %v4470
  %4760 = vmatprep.subr.bf16.mxu0 %v4475
  %4761 = vmatpush1.bf16.msra.mxu0 %v4474
  %4762 = vmatprep.subr.bf16.mxu0 %v4479
  %4763 = vmatpush1.bf16.msra.mxu0 %v4478
  %4764 = vmatprep.mubr.bf16.mxu0 %v3829
  %4765 = vmatmul.mubr.bf16.gmra.mrb[0].mxu0 %v3828
  %v4766 = vpop.f32.mrb[0].mxu0
  %v4767 = vadd.f32 %v4023, %v4766
  %v4768 = vpop.f32.mrb[0].mxu0
  %v4769 = vadd.f32 %v4027, %v4768
  %v4770 = vpop.f32.mrb[0].mxu0
  %v4771 = vadd.f32 %v4023, %v4770
  %v4772 = vpop.f32.mrb[0].mxu0
  %v4773 = vadd.f32 %v4027, %v4772
  %4774 = vmatprep.mubr.bf16.mxu0 %v3833
  %4775 = vmatmul.mubr.bf16.gmra.mrb[0].mxu0 %v3832
  %v4776 = vpop.f32.mrb[0].mxu0
  %v4777 = vadd.f32 %v4023, %v4776
  %v4778 = vpop.f32.mrb[0].mxu0
  %v4779 = vadd.f32 %v4027, %v4778
  %v4780 = vpop.f32.mrb[0].mxu0
  %v4781 = vadd.f32 %v4023, %v4780
  %v4782 = vpop.f32.mrb[0].mxu0
  %v4783 = vadd.f32 %v4027, %v4782
  %4784 = vmatprep.mubr.bf16.mxu0 %v3837
  %4785 = vmatmul.mubr.bf16.gmra.mrb[0].mxu0 %v3836
  %v4786 = vpop.f32.mrb[0].mxu0
  %v4787 = vadd.f32 %v4023, %v4786
  %v4788 = vpop.f32.mrb[0].mxu0
  %v4789 = vadd.f32 %v4027, %v4788
  %v4790 = vpop.f32.mrb[0].mxu0
  %v4791 = vadd.f32 %v4023, %v4790
  %v4792 = vpop.f32.mrb[0].mxu0
  %v4793 = vadd.f32 %v4027, %v4792
  %4794 = vmatprep.mubr.bf16.mxu0 %v3841
  %4795 = vmatmul.mubr.bf16.gmra.mrb[0].mxu0 %v3840
  %v4796 = vpop.f32.mrb[0].mxu0
  %v4797 = vadd.f32 %v4023, %v4796
  %v4798 = vpop.f32.mrb[0].mxu0
  %v4799 = vadd.f32 %v4027, %v4798
  %v4800 = vpop.f32.mrb[0].mxu0
  %v4801 = vadd.f32 %v4023, %v4800
  %v4802 = vpop.f32.mrb[0].mxu0
  %v4803 = vadd.f32 %v4027, %v4802
  %4804 = vmatprep.mubr.bf16.mxu0 %v3845
  %4805 = vmatmul.mubr.bf16.gmra.mrb[0].mxu0 %v3844
  %v4806 = vpop.f32.mrb[0].mxu0
  %v4807 = vadd.f32 %v4023, %v4806
  %v4808 = vpop.f32.mrb[0].mxu0
  %v4809 = vadd.f32 %v4027, %v4808
  %v4810 = vpop.f32.mrb[0].mxu0
  %v4811 = vadd.f32 %v4023, %v4810
  %v4812 = vpop.f32.mrb[0].mxu0
  %v4813 = vadd.f32 %v4027, %v4812
  %4814 = vmatprep.mubr.bf16.mxu0 %v3849
  %4815 = vmatmul.mubr.bf16.gmra.mrb[0].mxu0 %v3848
  %v4816 = vpop.f32.mrb[0].mxu0
  %v4817 = vadd.f32 %v4023, %v4816
  %v4818 = vpop.f32.mrb[0].mxu0
  %v4819 = vadd.f32 %v4027, %v4818
  %v4820 = vpop.f32.mrb[0].mxu0
  %v4821 = vadd.f32 %v4023, %v4820
  %v4822 = vpop.f32.mrb[0].mxu0
  %v4823 = vadd.f32 %v4027, %v4822
  %4824 = vmatprep.mubr.bf16.mxu0 %v3853
  %4825 = vmatmul.mubr.bf16.gmra.mrb[0].mxu0 %v3852
  %v4826 = vpop.f32.mrb[0].mxu0
  %v4827 = vadd.f32 %v4023, %v4826
  %v4828 = vpop.f32.mrb[0].mxu0
  %v4829 = vadd.f32 %v4027, %v4828
  %v4830 = vpop.f32.mrb[0].mxu0
  %v4831 = vadd.f32 %v4023, %v4830
  %v4832 = vpop.f32.mrb[0].mxu0
  %v4833 = vadd.f32 %v4027, %v4832
  %4834 = vmatprep.mubr.bf16.mxu0 %v3857
  %4835 = vmatmul.mubr.bf16.gmra.mrb[0].mxu0 %v3856
  %v4836 = vpop.f32.mrb[0].mxu0
  %v4837 = vadd.f32 %v4023, %v4836
  %v4838 = vpop.f32.mrb[0].mxu0
  %v4839 = vadd.f32 %v4027, %v4838
  %v4840 = vpop.f32.mrb[0].mxu0
  %v4841 = vadd.f32 %v4023, %v4840
  %v4842 = vpop.f32.mrb[0].mxu0
  %v4843 = vadd.f32 %v4027, %v4842
  %4844 = vmatprep.mubr.bf16.mxu0 %v3861
  %4845 = vmatmul.mubr.bf16.gmra.mrb[0].mxu0 %v3860
  %v4846 = vpop.f32.mrb[0].mxu0
  %v4847 = vadd.f32 %v4023, %v4846
  %v4848 = vpop.f32.mrb[0].mxu0
  %v4849 = vadd.f32 %v4027, %v4848
  %v4850 = vpop.f32.mrb[0].mxu0
  %v4851 = vadd.f32 %v4023, %v4850
  %v4852 = vpop.f32.mrb[0].mxu0
  %v4853 = vadd.f32 %v4027, %v4852
  %4854 = vmatprep.mubr.bf16.mxu0 %v3865
  %4855 = vmatmul.mubr.bf16.gmra.mrb[0].mxu0 %v3864
  %v4856 = vpop.f32.mrb[0].mxu0
  %v4857 = vadd.f32 %v4023, %v4856
  %v4858 = vpop.f32.mrb[0].mxu0
  %v4859 = vadd.f32 %v4027, %v4858
  %v4860 = vpop.f32.mrb[0].mxu0
  %v4861 = vadd.f32 %v4023, %v4860
  %v4862 = vpop.f32.mrb[0].mxu0
  %v4863 = vadd.f32 %v4027, %v4862
  %4864 = vmatprep.mubr.bf16.mxu0 %v3869
  %4865 = vmatmul.mubr.bf16.gmra.mrb[0].mxu0 %v3868
  %v4866 = vpop.f32.mrb[0].mxu0
  %v4867 = vadd.f32 %v4023, %v4866
  %v4868 = vpop.f32.mrb[0].mxu0
  %v4869 = vadd.f32 %v4027, %v4868
  %v4870 = vpop.f32.mrb[0].mxu0
  %v4871 = vadd.f32 %v4023, %v4870
  %v4872 = vpop.f32.mrb[0].mxu0
  %v4873 = vadd.f32 %v4027, %v4872
  %4874 = vmatprep.mubr.bf16.mxu0 %v3873
  %4875 = vmatmul.mubr.bf16.gmra.mrb[0].mxu0 %v3872
  %v4876 = vpop.f32.mrb[0].mxu0
  %v4877 = vadd.f32 %v4023, %v4876
  %v4878 = vpop.f32.mrb[0].mxu0
  %v4879 = vadd.f32 %v4027, %v4878
  %v4880 = vpop.f32.mrb[0].mxu0
  %v4881 = vadd.f32 %v4023, %v4880
  %v4882 = vpop.f32.mrb[0].mxu0
  %v4883 = vadd.f32 %v4027, %v4882
  %4884 = vmatprep.mubr.bf16.mxu0 %v3877
  %4885 = vmatmul.mubr.bf16.gmra.mrb[0].mxu0 %v3876
  %v4886 = vpop.f32.mrb[0].mxu0
  %v4887 = vadd.f32 %v4023, %v4886
  %v4888 = vpop.f32.mrb[0].mxu0
  %v4889 = vadd.f32 %v4027, %v4888
  %v4890 = vpop.f32.mrb[0].mxu0
  %v4891 = vadd.f32 %v4023, %v4890
  %v4892 = vpop.f32.mrb[0].mxu0
  %v4893 = vadd.f32 %v4027, %v4892
  %4894 = vmatprep.mubr.bf16.mxu0 %v3881
  %4895 = vmatmul.mubr.bf16.gmra.mrb[0].mxu0 %v3880
  %v4896 = vpop.f32.mrb[0].mxu0
  %v4897 = vadd.f32 %v4023, %v4896
  %v4898 = vpop.f32.mrb[0].mxu0
  %v4899 = vadd.f32 %v4027, %v4898
  %v4900 = vpop.f32.mrb[0].mxu0
  %v4901 = vadd.f32 %v4023, %v4900
  %v4902 = vpop.f32.mrb[0].mxu0
  %v4903 = vadd.f32 %v4027, %v4902
  %4904 = vmatprep.mubr.bf16.mxu0 %v3885
  %4905 = vmatmul.mubr.bf16.gmra.mrb[0].mxu0 %v3884
  %v4906 = vpop.f32.mrb[0].mxu0
  %v4907 = vadd.f32 %v4023, %v4906
  %v4908 = vpop.f32.mrb[0].mxu0
  %v4909 = vadd.f32 %v4027, %v4908
  %v4910 = vpop.f32.mrb[0].mxu0
  %v4911 = vadd.f32 %v4023, %v4910
  %v4912 = vpop.f32.mrb[0].mxu0
  %v4913 = vadd.f32 %v4027, %v4912
  %4914 = vmatprep.mubr.bf16.mxu0 %v3889
  %4915 = vmatmul.mubr.bf16.gmra.mrb[0].mxu0 %v3888
  %v4916 = vpop.f32.mrb[0].mxu0
  %v4917 = vadd.f32 %v4023, %v4916
  %v4918 = vpop.f32.mrb[0].mxu0
  %v4919 = vadd.f32 %v4027, %v4918
  %v4920 = vpop.f32.mrb[0].mxu0
  %v4921 = vadd.f32 %v4023, %v4920
  %v4922 = vpop.f32.mrb[0].mxu0
  %v4923 = vadd.f32 %v4027, %v4922
  %4924 = vdwg.mxu0
  %4925 = vmatprep.subr.bf16.mxu0 %v4483
  %4926 = vmatpush1.bf16.msra.mxu0 %v4482
  %4927 = vmatprep.subr.bf16.mxu0 %v4487
  %4928 = vmatpush1.bf16.msra.mxu0 %v4486
  %4929 = vmatprep.subr.bf16.mxu0 %v4491
  %4930 = vmatpush1.bf16.msra.mxu0 %v4490
  %4931 = vmatprep.subr.bf16.mxu0 %v4495
  %4932 = vmatpush1.bf16.msra.mxu0 %v4494
  %4933 = vmatprep.subr.bf16.mxu0 %v4499
  %4934 = vmatpush1.bf16.msra.mxu0 %v4498
  %4935 = vmatprep.subr.bf16.mxu0 %v4503
  %4936 = vmatpush1.bf16.msra.mxu0 %v4502
  %4937 = vmatprep.subr.bf16.mxu0 %v4507
  %4938 = vmatpush1.bf16.msra.mxu0 %v4506
  %4939 = vmatprep.subr.bf16.mxu0 %v4511
  %4940 = vmatpush1.bf16.msra.mxu0 %v4510
  %4941 = vmatprep.subr.bf16.mxu0 %v4515
  %4942 = vmatpush1.bf16.msra.mxu0 %v4514
  %4943 = vmatprep.subr.bf16.mxu0 %v4519
  %4944 = vmatpush1.bf16.msra.mxu0 %v4518
  %4945 = vmatprep.subr.bf16.mxu0 %v4523
  %4946 = vmatpush1.bf16.msra.mxu0 %v4522
  %4947 = vmatprep.subr.bf16.mxu0 %v4527
  %4948 = vmatpush1.bf16.msra.mxu0 %v4526
  %4949 = vmatprep.subr.bf16.mxu0 %v4531
  %4950 = vmatpush1.bf16.msra.mxu0 %v4530
  %4951 = vmatprep.subr.bf16.mxu0 %v4535
  %4952 = vmatpush1.bf16.msra.mxu0 %v4534
  %4953 = vmatprep.subr.bf16.mxu0 %v4539
  %4954 = vmatpush1.bf16.msra.mxu0 %v4538
  %4955 = vmatprep.subr.bf16.mxu0 %v4724
  %4956 = vmatpush1.bf16.msra.mxu0 %v4721
  %4957 = vmatprep.mubr.bf16.mxu0 %v4672
  %4958 = vmatmul.mubr.bf16.gmra.mrb[0].mxu0 %v3830
  %v4959 = vpop.f32.mrb[0].mxu0
  %v4960 = vadd.f32 %v4767, %v4959
  %v4961 = vpop.f32.mrb[0].mxu0
  %v4962 = vadd.f32 %v4769, %v4961
  %v4963 = vpop.f32.mrb[0].mxu0
  %v4964 = vadd.f32 %v4771, %v4963
  %v4965 = vpop.f32.mrb[0].mxu0
  %v4966 = vadd.f32 %v4773, %v4965
  %4967 = vmatprep.mubr.bf16.mxu0 %v4675
  %4968 = vmatmul.mubr.bf16.gmra.mrb[0].mxu0 %v3834
  %v4969 = vpop.f32.mrb[0].mxu0
  %v4970 = vadd.f32 %v4777, %v4969
  %v4971 = vpop.f32.mrb[0].mxu0
  %v4972 = vadd.f32 %v4779, %v4971
  %v4973 = vpop.f32.mrb[0].mxu0
  %v4974 = vadd.f32 %v4781, %v4973
  %v4975 = vpop.f32.mrb[0].mxu0
  %v4976 = vadd.f32 %v4783, %v4975
  %4977 = vmatprep.mubr.bf16.mxu0 %v4678
  %4978 = vmatmul.mubr.bf16.gmra.mrb[0].mxu0 %v3838
  %v4979 = vpop.f32.mrb[0].mxu0
  %v4980 = vadd.f32 %v4787, %v4979
  %v4981 = vpop.f32.mrb[0].mxu0
  %v4982 = vadd.f32 %v4789, %v4981
  %v4983 = vpop.f32.mrb[0].mxu0
  %v4984 = vadd.f32 %v4791, %v4983
  %v4985 = vpop.f32.mrb[0].mxu0
  %v4986 = vadd.f32 %v4793, %v4985
  %4987 = vmatprep.mubr.bf16.mxu0 %v4681
  %4988 = vmatmul.mubr.bf16.gmra.mrb[0].mxu0 %v3842
  %v4989 = vpop.f32.mrb[0].mxu0
  %v4990 = vadd.f32 %v4797, %v4989
  %v4991 = vpop.f32.mrb[0].mxu0
  %v4992 = vadd.f32 %v4799, %v4991
  %v4993 = vpop.f32.mrb[0].mxu0
  %v4994 = vadd.f32 %v4801, %v4993
  %v4995 = vpop.f32.mrb[0].mxu0
  %v4996 = vadd.f32 %v4803, %v4995
  %4997 = vmatprep.mubr.bf16.mxu0 %v4684
  %4998 = vmatmul.mubr.bf16.gmra.mrb[0].mxu0 %v3846
  %v4999 = vpop.f32.mrb[0].mxu0
  %v5000 = vadd.f32 %v4807, %v4999
  %v5001 = vpop.f32.mrb[0].mxu0
  %v5002 = vadd.f32 %v4809, %v5001
  %v5003 = vpop.f32.mrb[0].mxu0
  %v5004 = vadd.f32 %v4811, %v5003
  %v5005 = vpop.f32.mrb[0].mxu0
  %v5006 = vadd.f32 %v4813, %v5005
  %5007 = vmatprep.mubr.bf16.mxu0 %v4687
  %5008 = vmatmul.mubr.bf16.gmra.mrb[0].mxu0 %v3850
  %v5009 = vpop.f32.mrb[0].mxu0
  %v5010 = vadd.f32 %v4817, %v5009
  %v5011 = vpop.f32.mrb[0].mxu0
  %v5012 = vadd.f32 %v4819, %v5011
  %v5013 = vpop.f32.mrb[0].mxu0
  %v5014 = vadd.f32 %v4821, %v5013
  %v5015 = vpop.f32.mrb[0].mxu0
  %v5016 = vadd.f32 %v4823, %v5015
  %5017 = vmatprep.mubr.bf16.mxu0 %v4690
  %5018 = vmatmul.mubr.bf16.gmra.mrb[0].mxu0 %v3854
  %v5019 = vpop.f32.mrb[0].mxu0
  %v5020 = vadd.f32 %v4827, %v5019
  %v5021 = vpop.f32.mrb[0].mxu0
  %v5022 = vadd.f32 %v4829, %v5021
  %v5023 = vpop.f32.mrb[0].mxu0
  %v5024 = vadd.f32 %v4831, %v5023
  %v5025 = vpop.f32.mrb[0].mxu0
  %v5026 = vadd.f32 %v4833, %v5025
  %5027 = vmatprep.mubr.bf16.mxu0 %v4693
  %5028 = vmatmul.mubr.bf16.gmra.mrb[0].mxu0 %v3858
  %v5029 = vpop.f32.mrb[0].mxu0
  %v5030 = vadd.f32 %v4837, %v5029
  %v5031 = vpop.f32.mrb[0].mxu0
  %v5032 = vadd.f32 %v4839, %v5031
  %v5033 = vpop.f32.mrb[0].mxu0
  %v5034 = vadd.f32 %v4841, %v5033
  %v5035 = vpop.f32.mrb[0].mxu0
  %v5036 = vadd.f32 %v4843, %v5035
  %5037 = vmatprep.mubr.bf16.mxu0 %v4696
  %5038 = vmatmul.mubr.bf16.gmra.mrb[0].mxu0 %v3862
  %v5039 = vpop.f32.mrb[0].mxu0
  %v5040 = vadd.f32 %v4847, %v5039
  %v5041 = vpop.f32.mrb[0].mxu0
  %v5042 = vadd.f32 %v4849, %v5041
  %v5043 = vpop.f32.mrb[0].mxu0
  %v5044 = vadd.f32 %v4851, %v5043
  %v5045 = vpop.f32.mrb[0].mxu0
  %v5046 = vadd.f32 %v4853, %v5045
  %5047 = vmatprep.mubr.bf16.mxu0 %v4699
  %5048 = vmatmul.mubr.bf16.gmra.mrb[0].mxu0 %v3866
  %v5049 = vpop.f32.mrb[0].mxu0
  %v5050 = vadd.f32 %v4857, %v5049
  %v5051 = vpop.f32.mrb[0].mxu0
  %v5052 = vadd.f32 %v4859, %v5051
  %v5053 = vpop.f32.mrb[0].mxu0
  %v5054 = vadd.f32 %v4861, %v5053
  %v5055 = vpop.f32.mrb[0].mxu0
  %v5056 = vadd.f32 %v4863, %v5055
  %5057 = vmatprep.mubr.bf16.mxu0 %v4702
  %5058 = vmatmul.mubr.bf16.gmra.mrb[0].mxu0 %v3870
  %v5059 = vpop.f32.mrb[0].mxu0
  %v5060 = vadd.f32 %v4867, %v5059
  %v5061 = vpop.f32.mrb[0].mxu0
  %v5062 = vadd.f32 %v4869, %v5061
  %v5063 = vpop.f32.mrb[0].mxu0
  %v5064 = vadd.f32 %v4871, %v5063
  %v5065 = vpop.f32.mrb[0].mxu0
  %v5066 = vadd.f32 %v4873, %v5065
  %5067 = vmatprep.mubr.bf16.mxu0 %v4705
  %5068 = vmatmul.mubr.bf16.gmra.mrb[0].mxu0 %v3874
  %v5069 = vpop.f32.mrb[0].mxu0
  %v5070 = vadd.f32 %v4877, %v5069
  %v5071 = vpop.f32.mrb[0].mxu0
  %v5072 = vadd.f32 %v4879, %v5071
  %v5073 = vpop.f32.mrb[0].mxu0
  %v5074 = vadd.f32 %v4881, %v5073
  %v5075 = vpop.f32.mrb[0].mxu0
  %v5076 = vadd.f32 %v4883, %v5075
  %5077 = vmatprep.mubr.bf16.mxu0 %v4708
  %5078 = vmatmul.mubr.bf16.gmra.mrb[0].mxu0 %v3878
  %v5079 = vpop.f32.mrb[0].mxu0
  %v5080 = vadd.f32 %v4887, %v5079
  %v5081 = vpop.f32.mrb[0].mxu0
  %v5082 = vadd.f32 %v4889, %v5081
  %v5083 = vpop.f32.mrb[0].mxu0
  %v5084 = vadd.f32 %v4891, %v5083
  %v5085 = vpop.f32.mrb[0].mxu0
  %v5086 = vadd.f32 %v4893, %v5085
  %5087 = vmatprep.mubr.bf16.mxu0 %v4711
  %5088 = vmatmul.mubr.bf16.gmra.mrb[0].mxu0 %v3882
  %v5089 = vpop.f32.mrb[0].mxu0
  %v5090 = vadd.f32 %v4897, %v5089
  %v5091 = vpop.f32.mrb[0].mxu0
  %v5092 = vadd.f32 %v4899, %v5091
  %v5093 = vpop.f32.mrb[0].mxu0
  %v5094 = vadd.f32 %v4901, %v5093
  %v5095 = vpop.f32.mrb[0].mxu0
  %v5096 = vadd.f32 %v4903, %v5095
  %5097 = vmatprep.mubr.bf16.mxu0 %v4714
  %5098 = vmatmul.mubr.bf16.gmra.mrb[0].mxu0 %v3886
  %v5099 = vpop.f32.mrb[0].mxu0
  %v5100 = vadd.f32 %v4907, %v5099
  %v5101 = vpop.f32.mrb[0].mxu0
  %v5102 = vadd.f32 %v4909, %v5101
  %v5103 = vpop.f32.mrb[0].mxu0
  %v5104 = vadd.f32 %v4911, %v5103
  %v5105 = vpop.f32.mrb[0].mxu0
  %v5106 = vadd.f32 %v4913, %v5105
  %5107 = vmatprep.mubr.bf16.mxu0 %v4717
  %5108 = vmatmul.mubr.bf16.gmra.mrb[0].mxu0 %v3890
  %v5109 = vpop.f32.mrb[0].mxu0
  %v5110 = vadd.f32 %v4917, %v5109
  %v5111 = vpop.f32.mrb[0].mxu0
  %v5112 = vadd.f32 %v4919, %v5111
  %v5113 = vpop.f32.mrb[0].mxu0
  %v5114 = vadd.f32 %v4921, %v5113
  %v5115 = vpop.f32.mrb[0].mxu0
  %v5116 = vadd.f32 %v4923, %v5115
  %5117 = vdwg.mxu0
  %5118 = vmatprep.subr.bf16.mxu0 %v4421
  %5119 = vmatpush1.bf16.msra.mxu0 %v4420
  %5120 = vmatprep.subr.bf16.mxu0 %v4425
  %5121 = vmatpush1.bf16.msra.mxu0 %v4424
  %5122 = vmatprep.subr.bf16.mxu0 %v4429
  %5123 = vmatpush1.bf16.msra.mxu0 %v4428
  %5124 = vmatprep.subr.bf16.mxu0 %v4433
  %5125 = vmatpush1.bf16.msra.mxu0 %v4432
  %5126 = vmatprep.subr.bf16.mxu0 %v4437
  %5127 = vmatpush1.bf16.msra.mxu0 %v4436
  %5128 = vmatprep.subr.bf16.mxu0 %v4441
  %5129 = vmatpush1.bf16.msra.mxu0 %v4440
  %5130 = vmatprep.subr.bf16.mxu0 %v4445
  %5131 = vmatpush1.bf16.msra.mxu0 %v4444
  %5132 = vmatprep.subr.bf16.mxu0 %v4449
  %5133 = vmatpush1.bf16.msra.mxu0 %v4448
  %5134 = vmatprep.subr.bf16.mxu0 %v4453
  %5135 = vmatpush1.bf16.msra.mxu0 %v4452
  %5136 = vmatprep.subr.bf16.mxu0 %v4457
  %5137 = vmatpush1.bf16.msra.mxu0 %v4456
  %5138 = vmatprep.subr.bf16.mxu0 %v4461
  %5139 = vmatpush1.bf16.msra.mxu0 %v4460
  %5140 = vmatprep.subr.bf16.mxu0 %v4465
  %5141 = vmatpush1.bf16.msra.mxu0 %v4464
  %5142 = vmatprep.subr.bf16.mxu0 %v4469
  %5143 = vmatpush1.bf16.msra.mxu0 %v4468
  %5144 = vmatprep.subr.bf16.mxu0 %v4473
  %5145 = vmatpush1.bf16.msra.mxu0 %v4472
  %5146 = vmatprep.subr.bf16.mxu0 %v4477
  %5147 = vmatpush1.bf16.msra.mxu0 %v4476
  %5148 = vmatprep.subr.bf16.mxu0 %v4481
  %5149 = vmatpush1.bf16.msra.mxu0 %v4480
  %5150 = vmatprep.mubr.bf16.mxu0 %v3829
  %5151 = vmatmul.mubr.bf16.gmra.mrb[0].mxu0 %v3828
  %v5152 = vpop.f32.mrb[0].mxu0
  %v5153 = vadd.f32 %v4031, %v5152
  %v5154 = vpop.f32.mrb[0].mxu0
  %v5155 = vadd.f32 %v4035, %v5154
  %v5156 = vpop.f32.mrb[0].mxu0
  %v5157 = vadd.f32 %v4031, %v5156
  %v5158 = vpop.f32.mrb[0].mxu0
  %v5159 = vadd.f32 %v4035, %v5158
  %5160 = vmatprep.mubr.bf16.mxu0 %v3833
  %5161 = vmatmul.mubr.bf16.gmra.mrb[0].mxu0 %v3832
  %v5162 = vpop.f32.mrb[0].mxu0
  %v5163 = vadd.f32 %v4031, %v5162
  %v5164 = vpop.f32.mrb[0].mxu0
  %v5165 = vadd.f32 %v4035, %v5164
  %v5166 = vpop.f32.mrb[0].mxu0
  %v5167 = vadd.f32 %v4031, %v5166
  %v5168 = vpop.f32.mrb[0].mxu0
  %v5169 = vadd.f32 %v4035, %v5168
  %5170 = vmatprep.mubr.bf16.mxu0 %v3837
  %5171 = vmatmul.mubr.bf16.gmra.mrb[0].mxu0 %v3836
  %v5172 = vpop.f32.mrb[0].mxu0
  %v5173 = vadd.f32 %v4031, %v5172
  %v5174 = vpop.f32.mrb[0].mxu0
  %v5175 = vadd.f32 %v4035, %v5174
  %v5176 = vpop.f32.mrb[0].mxu0
  %v5177 = vadd.f32 %v4031, %v5176
  %v5178 = vpop.f32.mrb[0].mxu0
  %v5179 = vadd.f32 %v4035, %v5178
  %5180 = vmatprep.mubr.bf16.mxu0 %v3841
  %5181 = vmatmul.mubr.bf16.gmra.mrb[0].mxu0 %v3840
  %v5182 = vpop.f32.mrb[0].mxu0
  %v5183 = vadd.f32 %v4031, %v5182
  %v5184 = vpop.f32.mrb[0].mxu0
  %v5185 = vadd.f32 %v4035, %v5184
  %v5186 = vpop.f32.mrb[0].mxu0
  %v5187 = vadd.f32 %v4031, %v5186
  %v5188 = vpop.f32.mrb[0].mxu0
  %v5189 = vadd.f32 %v4035, %v5188
  %5190 = vmatprep.mubr.bf16.mxu0 %v3845
  %5191 = vmatmul.mubr.bf16.gmra.mrb[0].mxu0 %v3844
  %v5192 = vpop.f32.mrb[0].mxu0
  %v5193 = vadd.f32 %v4031, %v5192
  %v5194 = vpop.f32.mrb[0].mxu0
  %v5195 = vadd.f32 %v4035, %v5194
  %v5196 = vpop.f32.mrb[0].mxu0
  %v5197 = vadd.f32 %v4031, %v5196
  %v5198 = vpop.f32.mrb[0].mxu0
  %v5199 = vadd.f32 %v4035, %v5198
  %5200 = vmatprep.mubr.bf16.mxu0 %v3849
  %5201 = vmatmul.mubr.bf16.gmra.mrb[0].mxu0 %v3848
  %v5202 = vpop.f32.mrb[0].mxu0
  %v5203 = vadd.f32 %v4031, %v5202
  %v5204 = vpop.f32.mrb[0].mxu0
  %v5205 = vadd.f32 %v4035, %v5204
  %v5206 = vpop.f32.mrb[0].mxu0
  %v5207 = vadd.f32 %v4031, %v5206
  %v5208 = vpop.f32.mrb[0].mxu0
  %v5209 = vadd.f32 %v4035, %v5208
  %5210 = vmatprep.mubr.bf16.mxu0 %v3853
  %5211 = vmatmul.mubr.bf16.gmra.mrb[0].mxu0 %v3852
  %v5212 = vpop.f32.mrb[0].mxu0
  %v5213 = vadd.f32 %v4031, %v5212
  %v5214 = vpop.f32.mrb[0].mxu0
  %v5215 = vadd.f32 %v4035, %v5214
  %v5216 = vpop.f32.mrb[0].mxu0
  %v5217 = vadd.f32 %v4031, %v5216
  %v5218 = vpop.f32.mrb[0].mxu0
  %v5219 = vadd.f32 %v4035, %v5218
  %5220 = vmatprep.mubr.bf16.mxu0 %v3857
  %5221 = vmatmul.mubr.bf16.gmra.mrb[0].mxu0 %v3856
  %v5222 = vpop.f32.mrb[0].mxu0
  %v5223 = vadd.f32 %v4031, %v5222
  %v5224 = vpop.f32.mrb[0].mxu0
  %v5225 = vadd.f32 %v4035, %v5224
  %v5226 = vpop.f32.mrb[0].mxu0
  %v5227 = vadd.f32 %v4031, %v5226
  %v5228 = vpop.f32.mrb[0].mxu0
  %v5229 = vadd.f32 %v4035, %v5228
  %5230 = vmatprep.mubr.bf16.mxu0 %v3861
  %5231 = vmatmul.mubr.bf16.gmra.mrb[0].mxu0 %v3860
  %v5232 = vpop.f32.mrb[0].mxu0
  %v5233 = vadd.f32 %v4031, %v5232
  %v5234 = vpop.f32.mrb[0].mxu0
  %v5235 = vadd.f32 %v4035, %v5234
  %v5236 = vpop.f32.mrb[0].mxu0
  %v5237 = vadd.f32 %v4031, %v5236
  %v5238 = vpop.f32.mrb[0].mxu0
  %v5239 = vadd.f32 %v4035, %v5238
  %5240 = vmatprep.mubr.bf16.mxu0 %v3865
  %5241 = vmatmul.mubr.bf16.gmra.mrb[0].mxu0 %v3864
  %v5242 = vpop.f32.mrb[0].mxu0
  %v5243 = vadd.f32 %v4031, %v5242
  %v5244 = vpop.f32.mrb[0].mxu0
  %v5245 = vadd.f32 %v4035, %v5244
  %v5246 = vpop.f32.mrb[0].mxu0
  %v5247 = vadd.f32 %v4031, %v5246
  %v5248 = vpop.f32.mrb[0].mxu0
  %v5249 = vadd.f32 %v4035, %v5248
  %5250 = vmatprep.mubr.bf16.mxu0 %v3869
  %5251 = vmatmul.mubr.bf16.gmra.mrb[0].mxu0 %v3868
  %v5252 = vpop.f32.mrb[0].mxu0
  %v5253 = vadd.f32 %v4031, %v5252
  %v5254 = vpop.f32.mrb[0].mxu0
  %v5255 = vadd.f32 %v4035, %v5254
  %v5256 = vpop.f32.mrb[0].mxu0
  %v5257 = vadd.f32 %v4031, %v5256
  %v5258 = vpop.f32.mrb[0].mxu0
  %v5259 = vadd.f32 %v4035, %v5258
  %5260 = vmatprep.mubr.bf16.mxu0 %v3873
  %5261 = vmatmul.mubr.bf16.gmra.mrb[0].mxu0 %v3872
  %v5262 = vpop.f32.mrb[0].mxu0
  %v5263 = vadd.f32 %v4031, %v5262
  %v5264 = vpop.f32.mrb[0].mxu0
  %v5265 = vadd.f32 %v4035, %v5264
  %v5266 = vpop.f32.mrb[0].mxu0
  %v5267 = vadd.f32 %v4031, %v5266
  %v5268 = vpop.f32.mrb[0].mxu0
  %v5269 = vadd.f32 %v4035, %v5268
  %5270 = vmatprep.mubr.bf16.mxu0 %v3877
  %5271 = vmatmul.mubr.bf16.gmra.mrb[0].mxu0 %v3876
  %v5272 = vpop.f32.mrb[0].mxu0
  %v5273 = vadd.f32 %v4031, %v5272
  %v5274 = vpop.f32.mrb[0].mxu0
  %v5275 = vadd.f32 %v4035, %v5274
  %v5276 = vpop.f32.mrb[0].mxu0
  %v5277 = vadd.f32 %v4031, %v5276
  %v5278 = vpop.f32.mrb[0].mxu0
  %v5279 = vadd.f32 %v4035, %v5278
  %5280 = vmatprep.mubr.bf16.mxu0 %v3881
  %5281 = vmatmul.mubr.bf16.gmra.mrb[0].mxu0 %v3880
  %v5282 = vpop.f32.mrb[0].mxu0
  %v5283 = vadd.f32 %v4031, %v5282
  %v5284 = vpop.f32.mrb[0].mxu0
  %v5285 = vadd.f32 %v4035, %v5284
  %v5286 = vpop.f32.mrb[0].mxu0
  %v5287 = vadd.f32 %v4031, %v5286
  %v5288 = vpop.f32.mrb[0].mxu0
  %v5289 = vadd.f32 %v4035, %v5288
  %5290 = vmatprep.mubr.bf16.mxu0 %v3885
  %5291 = vmatmul.mubr.bf16.gmra.mrb[0].mxu0 %v3884
  %v5292 = vpop.f32.mrb[0].mxu0
  %v5293 = vadd.f32 %v4031, %v5292
  %v5294 = vpop.f32.mrb[0].mxu0
  %v5295 = vadd.f32 %v4035, %v5294
  %v5296 = vpop.f32.mrb[0].mxu0
  %v5297 = vadd.f32 %v4031, %v5296
  %v5298 = vpop.f32.mrb[0].mxu0
  %v5299 = vadd.f32 %v4035, %v5298
  %5300 = vmatprep.mubr.bf16.mxu0 %v3889
  %5301 = vmatmul.mubr.bf16.gmra.mrb[0].mxu0 %v3888
  %v5302 = vpop.f32.mrb[0].mxu0
  %v5303 = vadd.f32 %v4031, %v5302
  %v5304 = vpop.f32.mrb[0].mxu0
  %v5305 = vadd.f32 %v4035, %v5304
  %v5306 = vpop.f32.mrb[0].mxu0
  %v5307 = vadd.f32 %v4031, %v5306
  %v5308 = vpop.f32.mrb[0].mxu0
  %v5309 = vadd.f32 %v4035, %v5308
  %5310 = vdwg.mxu0
  %5311 = vmatprep.subr.bf16.mxu0 %v4485
  %5312 = vmatpush1.bf16.msra.mxu0 %v4484
  %5313 = vmatprep.subr.bf16.mxu0 %v4489
  %5314 = vmatpush1.bf16.msra.mxu0 %v4488
  %5315 = vmatprep.subr.bf16.mxu0 %v4493
  %5316 = vmatpush1.bf16.msra.mxu0 %v4492
  %5317 = vmatprep.subr.bf16.mxu0 %v4497
  %5318 = vmatpush1.bf16.msra.mxu0 %v4496
  %5319 = vmatprep.subr.bf16.mxu0 %v4501
  %5320 = vmatpush1.bf16.msra.mxu0 %v4500
  %5321 = vmatprep.subr.bf16.mxu0 %v4505
  %5322 = vmatpush1.bf16.msra.mxu0 %v4504
  %5323 = vmatprep.subr.bf16.mxu0 %v4509
  %5324 = vmatpush1.bf16.msra.mxu0 %v4508
  %5325 = vmatprep.subr.bf16.mxu0 %v4513
  %5326 = vmatpush1.bf16.msra.mxu0 %v4512
  %5327 = vmatprep.subr.bf16.mxu0 %v4517
  %5328 = vmatpush1.bf16.msra.mxu0 %v4516
  %5329 = vmatprep.subr.bf16.mxu0 %v4521
  %5330 = vmatpush1.bf16.msra.mxu0 %v4520
  %5331 = vmatprep.subr.bf16.mxu0 %v4525
  %5332 = vmatpush1.bf16.msra.mxu0 %v4524
  %5333 = vmatprep.subr.bf16.mxu0 %v4529
  %5334 = vmatpush1.bf16.msra.mxu0 %v4528
  %5335 = vmatprep.subr.bf16.mxu0 %v4533
  %5336 = vmatpush1.bf16.msra.mxu0 %v4532
  %5337 = vmatprep.subr.bf16.mxu0 %v4537
  %5338 = vmatpush1.bf16.msra.mxu0 %v4536
  %5339 = vmatprep.subr.bf16.mxu0 %v4541
  %5340 = vmatpush1.bf16.msra.mxu0 %v4540
  %5341 = vmatprep.subr.bf16.mxu0 %v4730
  %5342 = vmatpush1.bf16.msra.mxu0 %v4727
  %5343 = vmatprep.mubr.bf16.mxu0 %v4672
  %5344 = vmatmul.mubr.bf16.gmra.mrb[0].mxu0 %v3830
  %v5345 = vpop.f32.mrb[0].mxu0
  %v5346 = vadd.f32 %v5153, %v5345
  %v5347 = vpop.f32.mrb[0].mxu0
  %v5348 = vadd.f32 %v5155, %v5347
  %v5349 = vpop.f32.mrb[0].mxu0
  %v5350 = vadd.f32 %v5157, %v5349
  %v5351 = vpop.f32.mrb[0].mxu0
  %v5352 = vadd.f32 %v5159, %v5351
  %5353 = vmatprep.mubr.bf16.mxu0 %v4675
  %5354 = vmatmul.mubr.bf16.gmra.mrb[0].mxu0 %v3834
  %v5355 = vpop.f32.mrb[0].mxu0
  %v5356 = vadd.f32 %v5163, %v5355
  %v5357 = vpop.f32.mrb[0].mxu0
  %v5358 = vadd.f32 %v5165, %v5357
  %v5359 = vpop.f32.mrb[0].mxu0
  %v5360 = vadd.f32 %v5167, %v5359
  %v5361 = vpop.f32.mrb[0].mxu0
  %v5362 = vadd.f32 %v5169, %v5361
  %5363 = vmatprep.mubr.bf16.mxu0 %v4678
  %5364 = vmatmul.mubr.bf16.gmra.mrb[0].mxu0 %v3838
  %v5365 = vpop.f32.mrb[0].mxu0
  %v5366 = vadd.f32 %v5173, %v5365
  %v5367 = vpop.f32.mrb[0].mxu0
  %v5368 = vadd.f32 %v5175, %v5367
  %v5369 = vpop.f32.mrb[0].mxu0
  %v5370 = vadd.f32 %v5177, %v5369
  %v5371 = vpop.f32.mrb[0].mxu0
  %v5372 = vadd.f32 %v5179, %v5371
  %5373 = vmatprep.mubr.bf16.mxu0 %v4681
  %5374 = vmatmul.mubr.bf16.gmra.mrb[0].mxu0 %v3842
  %v5375 = vpop.f32.mrb[0].mxu0
  %v5376 = vadd.f32 %v5183, %v5375
  %v5377 = vpop.f32.mrb[0].mxu0
  %v5378 = vadd.f32 %v5185, %v5377
  %v5379 = vpop.f32.mrb[0].mxu0
  %v5380 = vadd.f32 %v5187, %v5379
  %v5381 = vpop.f32.mrb[0].mxu0
  %v5382 = vadd.f32 %v5189, %v5381
  %5383 = vmatprep.mubr.bf16.mxu0 %v4684
  %5384 = vmatmul.mubr.bf16.gmra.mrb[0].mxu0 %v3846
  %v5385 = vpop.f32.mrb[0].mxu0
  %v5386 = vadd.f32 %v5193, %v5385
  %v5387 = vpop.f32.mrb[0].mxu0
  %v5388 = vadd.f32 %v5195, %v5387
  %v5389 = vpop.f32.mrb[0].mxu0
  %v5390 = vadd.f32 %v5197, %v5389
  %v5391 = vpop.f32.mrb[0].mxu0
  %v5392 = vadd.f32 %v5199, %v5391
  %5393 = vmatprep.mubr.bf16.mxu0 %v4687
  %5394 = vmatmul.mubr.bf16.gmra.mrb[0].mxu0 %v3850
  %v5395 = vpop.f32.mrb[0].mxu0
  %v5396 = vadd.f32 %v5203, %v5395
  %v5397 = vpop.f32.mrb[0].mxu0
  %v5398 = vadd.f32 %v5205, %v5397
  %v5399 = vpop.f32.mrb[0].mxu0
  %v5400 = vadd.f32 %v5207, %v5399
  %v5401 = vpop.f32.mrb[0].mxu0
  %v5402 = vadd.f32 %v5209, %v5401
  %5403 = vmatprep.mubr.bf16.mxu0 %v4690
  %5404 = vmatmul.mubr.bf16.gmra.mrb[0].mxu0 %v3854
  %v5405 = vpop.f32.mrb[0].mxu0
  %v5406 = vadd.f32 %v5213, %v5405
  %v5407 = vpop.f32.mrb[0].mxu0
  %v5408 = vadd.f32 %v5215, %v5407
  %v5409 = vpop.f32.mrb[0].mxu0
  %v5410 = vadd.f32 %v5217, %v5409
  %v5411 = vpop.f32.mrb[0].mxu0
  %v5412 = vadd.f32 %v5219, %v5411
  %5413 = vmatprep.mubr.bf16.mxu0 %v4693
  %5414 = vmatmul.mubr.bf16.gmra.mrb[0].mxu0 %v3858
  %v5415 = vpop.f32.mrb[0].mxu0
  %v5416 = vadd.f32 %v5223, %v5415
  %v5417 = vpop.f32.mrb[0].mxu0
  %v5418 = vadd.f32 %v5225, %v5417
  %v5419 = vpop.f32.mrb[0].mxu0
  %v5420 = vadd.f32 %v5227, %v5419
  %v5421 = vpop.f32.mrb[0].mxu0
  %v5422 = vadd.f32 %v5229, %v5421
  %5423 = vmatprep.mubr.bf16.mxu0 %v4696
  %5424 = vmatmul.mubr.bf16.gmra.mrb[0].mxu0 %v3862
  %v5425 = vpop.f32.mrb[0].mxu0
  %v5426 = vadd.f32 %v5233, %v5425
  %v5427 = vpop.f32.mrb[0].mxu0
  %v5428 = vadd.f32 %v5235, %v5427
  %v5429 = vpop.f32.mrb[0].mxu0
  %v5430 = vadd.f32 %v5237, %v5429
  %v5431 = vpop.f32.mrb[0].mxu0
  %v5432 = vadd.f32 %v5239, %v5431
  %5433 = vmatprep.mubr.bf16.mxu0 %v4699
  %5434 = vmatmul.mubr.bf16.gmra.mrb[0].mxu0 %v3866
  %v5435 = vpop.f32.mrb[0].mxu0
  %v5436 = vadd.f32 %v5243, %v5435
  %v5437 = vpop.f32.mrb[0].mxu0
  %v5438 = vadd.f32 %v5245, %v5437
  %v5439 = vpop.f32.mrb[0].mxu0
  %v5440 = vadd.f32 %v5247, %v5439
  %v5441 = vpop.f32.mrb[0].mxu0
  %v5442 = vadd.f32 %v5249, %v5441
  %5443 = vmatprep.mubr.bf16.mxu0 %v4702
  %5444 = vmatmul.mubr.bf16.gmra.mrb[0].mxu0 %v3870
  %v5445 = vpop.f32.mrb[0].mxu0
  %v5446 = vadd.f32 %v5253, %v5445
  %v5447 = vpop.f32.mrb[0].mxu0
  %v5448 = vadd.f32 %v5255, %v5447
  %v5449 = vpop.f32.mrb[0].mxu0
  %v5450 = vadd.f32 %v5257, %v5449
  %v5451 = vpop.f32.mrb[0].mxu0
  %v5452 = vadd.f32 %v5259, %v5451
  %5453 = vmatprep.mubr.bf16.mxu0 %v4705
  %5454 = vmatmul.mubr.bf16.gmra.mrb[0].mxu0 %v3874
  %v5455 = vpop.f32.mrb[0].mxu0
  %v5456 = vadd.f32 %v5263, %v5455
  %v5457 = vpop.f32.mrb[0].mxu0
  %v5458 = vadd.f32 %v5265, %v5457
  %v5459 = vpop.f32.mrb[0].mxu0
  %v5460 = vadd.f32 %v5267, %v5459
  %v5461 = vpop.f32.mrb[0].mxu0
  %v5462 = vadd.f32 %v5269, %v5461
  %5463 = vmatprep.mubr.bf16.mxu0 %v4708
  %5464 = vmatmul.mubr.bf16.gmra.mrb[0].mxu0 %v3878
  %v5465 = vpop.f32.mrb[0].mxu0
  %v5466 = vadd.f32 %v5273, %v5465
  %v5467 = vpop.f32.mrb[0].mxu0
  %v5468 = vadd.f32 %v5275, %v5467
  %v5469 = vpop.f32.mrb[0].mxu0
  %v5470 = vadd.f32 %v5277, %v5469
  %v5471 = vpop.f32.mrb[0].mxu0
  %v5472 = vadd.f32 %v5279, %v5471
  %5473 = vmatprep.mubr.bf16.mxu0 %v4711
  %5474 = vmatmul.mubr.bf16.gmra.mrb[0].mxu0 %v3882
  %v5475 = vpop.f32.mrb[0].mxu0
  %v5476 = vadd.f32 %v5283, %v5475
  %v5477 = vpop.f32.mrb[0].mxu0
  %v5478 = vadd.f32 %v5285, %v5477
  %v5479 = vpop.f32.mrb[0].mxu0
  %v5480 = vadd.f32 %v5287, %v5479
  %v5481 = vpop.f32.mrb[0].mxu0
  %v5482 = vadd.f32 %v5289, %v5481
  %5483 = vmatprep.mubr.bf16.mxu0 %v4714
  %5484 = vmatmul.mubr.bf16.gmra.mrb[0].mxu0 %v3886
  %v5485 = vpop.f32.mrb[0].mxu0
  %v5486 = vadd.f32 %v5293, %v5485
  %v5487 = vpop.f32.mrb[0].mxu0
  %v5488 = vadd.f32 %v5295, %v5487
  %v5489 = vpop.f32.mrb[0].mxu0
  %v5490 = vadd.f32 %v5297, %v5489
  %v5491 = vpop.f32.mrb[0].mxu0
  %v5492 = vadd.f32 %v5299, %v5491
  %5493 = vmatprep.mubr.bf16.mxu0 %v4717
  %5494 = vmatmul.mubr.bf16.gmra.mrb[0].mxu0 %v3890
  %v5495 = vpop.f32.mrb[0].mxu0
  %v5496 = vadd.f32 %v5303, %v5495
  %v5497 = vpop.f32.mrb[0].mxu0
  %v5498 = vadd.f32 %v5305, %v5497
  %v5499 = vpop.f32.mrb[0].mxu0
  %v5500 = vadd.f32 %v5307, %v5499
  %v5501 = vpop.f32.mrb[0].mxu0
  %v5502 = vadd.f32 %v5309, %v5501
  %5503 = vdwg.mxu0
  %v5504 = vmax.f32 %v4960, 0.0
  %v5505 = vmax.f32 %v4962, 0.0
  %v5506 = vmax.f32 %v5346, 0.0
  %v5507 = vmax.f32 %v5348, 0.0
  %v5508 = vmax.f32 %v4964, 0.0
  %v5509 = vmax.f32 %v4966, 0.0
  %v5510 = vmax.f32 %v5350, 0.0
  %v5511 = vmax.f32 %v5352, 0.0
  %v5512 = vmax.f32 %v4970, 0.0
  %v5513 = vmax.f32 %v4972, 0.0
  %v5514 = vmax.f32 %v5356, 0.0
  %v5515 = vmax.f32 %v5358, 0.0
  %v5516 = vmax.f32 %v4974, 0.0
  %v5517 = vmax.f32 %v4976, 0.0
  %v5518 = vmax.f32 %v5360, 0.0
  %v5519 = vmax.f32 %v5362, 0.0
  %v5520 = vmax.f32 %v4980, 0.0
  %v5521 = vmax.f32 %v4982, 0.0
  %v5522 = vmax.f32 %v5366, 0.0
  %v5523 = vmax.f32 %v5368, 0.0
  %v5524 = vmax.f32 %v4984, 0.0
  %v5525 = vmax.f32 %v4986, 0.0
  %v5526 = vmax.f32 %v5370, 0.0
  %v5527 = vmax.f32 %v5372, 0.0
  %v5528 = vmax.f32 %v4990, 0.0
  %v5529 = vmax.f32 %v4992, 0.0
  %v5530 = vmax.f32 %v5376, 0.0
  %v5531 = vmax.f32 %v5378, 0.0
  %v5532 = vmax.f32 %v4994, 0.0
  %v5533 = vmax.f32 %v4996, 0.0
  %v5534 = vmax.f32 %v5380, 0.0
  %v5535 = vmax.f32 %v5382, 0.0
  %v5536 = vmax.f32 %v5000, 0.0
  %v5537 = vmax.f32 %v5002, 0.0
  %v5538 = vmax.f32 %v5386, 0.0
  %v5539 = vmax.f32 %v5388, 0.0
  %v5540 = vmax.f32 %v5004, 0.0
  %v5541 = vmax.f32 %v5006, 0.0
  %v5542 = vmax.f32 %v5390, 0.0
  %v5543 = vmax.f32 %v5392, 0.0
  %v5544 = vmax.f32 %v5010, 0.0
  %v5545 = vmax.f32 %v5012, 0.0
  %v5546 = vmax.f32 %v5396, 0.0
  %v5547 = vmax.f32 %v5398, 0.0
  %v5548 = vmax.f32 %v5014, 0.0
  %v5549 = vmax.f32 %v5016, 0.0
  %v5550 = vmax.f32 %v5400, 0.0
  %v5551 = vmax.f32 %v5402, 0.0
  %v5552 = vmax.f32 %v5020, 0.0
  %v5553 = vmax.f32 %v5022, 0.0
  %v5554 = vmax.f32 %v5406, 0.0
  %v5555 = vmax.f32 %v5408, 0.0
  %v5556 = vmax.f32 %v5024, 0.0
  %v5557 = vmax.f32 %v5026, 0.0
  %v5558 = vmax.f32 %v5410, 0.0
  %v5559 = vmax.f32 %v5412, 0.0
  %v5560 = vmax.f32 %v5030, 0.0
  %v5561 = vmax.f32 %v5032, 0.0
  %v5562 = vmax.f32 %v5416, 0.0
  %v5563 = vmax.f32 %v5418, 0.0
  %v5564 = vmax.f32 %v5034, 0.0
  %v5565 = vmax.f32 %v5036, 0.0
  %v5566 = vmax.f32 %v5420, 0.0
  %v5567 = vmax.f32 %v5422, 0.0
  %v5568 = vmax.f32 %v5040, 0.0
  %v5569 = vmax.f32 %v5042, 0.0
  %v5570 = vmax.f32 %v5426, 0.0
  %v5571 = vmax.f32 %v5428, 0.0
  %v5572 = vmax.f32 %v5044, 0.0
  %v5573 = vmax.f32 %v5046, 0.0
  %v5574 = vmax.f32 %v5430, 0.0
  %v5575 = vmax.f32 %v5432, 0.0
  %v5576 = vmax.f32 %v5050, 0.0
  %v5577 = vmax.f32 %v5052, 0.0
  %v5578 = vmax.f32 %v5436, 0.0
  %v5579 = vmax.f32 %v5438, 0.0
  %v5580 = vmax.f32 %v5054, 0.0
  %v5581 = vmax.f32 %v5056, 0.0
  %v5582 = vmax.f32 %v5440, 0.0
  %v5583 = vmax.f32 %v5442, 0.0
  %v5584 = vmax.f32 %v5060, 0.0
  %v5585 = vmax.f32 %v5062, 0.0
  %v5586 = vmax.f32 %v5446, 0.0
  %v5587 = vmax.f32 %v5448, 0.0
  %v5588 = vmax.f32 %v5064, 0.0
  %v5589 = vmax.f32 %v5066, 0.0
  %v5590 = vmax.f32 %v5450, 0.0
  %v5591 = vmax.f32 %v5452, 0.0
  %v5592 = vmax.f32 %v5070, 0.0
  %v5593 = vmax.f32 %v5072, 0.0
  %v5594 = vmax.f32 %v5456, 0.0
  %v5595 = vmax.f32 %v5458, 0.0
  %v5596 = vmax.f32 %v5074, 0.0
  %v5597 = vmax.f32 %v5076, 0.0
  %v5598 = vmax.f32 %v5460, 0.0
  %v5599 = vmax.f32 %v5462, 0.0
  %v5600 = vmax.f32 %v5080, 0.0
  %v5601 = vmax.f32 %v5082, 0.0
  %v5602 = vmax.f32 %v5466, 0.0
  %v5603 = vmax.f32 %v5468, 0.0
  %v5604 = vmax.f32 %v5084, 0.0
  %v5605 = vmax.f32 %v5086, 0.0
  %v5606 = vmax.f32 %v5470, 0.0
  %v5607 = vmax.f32 %v5472, 0.0
  %v5608 = vmax.f32 %v5090, 0.0
  %v5609 = vmax.f32 %v5092, 0.0
  %v5610 = vmax.f32 %v5476, 0.0
  %v5611 = vmax.f32 %v5478, 0.0
  %v5612 = vmax.f32 %v5094, 0.0
  %v5613 = vmax.f32 %v5096, 0.0
  %v5614 = vmax.f32 %v5480, 0.0
  %v5615 = vmax.f32 %v5482, 0.0
  %v5616 = vmax.f32 %v5100, 0.0
  %v5617 = vmax.f32 %v5102, 0.0
  %v5618 = vmax.f32 %v5486, 0.0
  %v5619 = vmax.f32 %v5488, 0.0
  %v5620 = vmax.f32 %v5104, 0.0
  %v5621 = vmax.f32 %v5106, 0.0
  %v5622 = vmax.f32 %v5490, 0.0
  %v5623 = vmax.f32 %v5492, 0.0
  %v5624 = vmax.f32 %v5110, 0.0
  %v5625 = vmax.f32 %v5112, 0.0
  %v5626 = vmax.f32 %v5496, 0.0
  %v5627 = vmax.f32 %v5498, 0.0
  %v5628 = vmax.f32 %v5114, 0.0
  %v5629 = vmax.f32 %v5116, 0.0
  %v5630 = vmax.f32 %v5500, 0.0
  %v5631 = vmax.f32 %v5502, 0.0
  %v5632 = vpack.c.bf16 %v5508, %v5504
  %v5633 = vpack.c.bf16 %v5509, %v5505
  %v5634 = vpack.c.bf16 %v5510, %v5506
  %v5635 = vpack.c.bf16 %v5511, %v5507
  %v5636 = vpack.c.bf16 %v5516, %v5512
  %v5637 = vpack.c.bf16 %v5517, %v5513
  %v5638 = vpack.c.bf16 %v5518, %v5514
  %v5639 = vpack.c.bf16 %v5519, %v5515
  %v5640 = vpack.c.bf16 %v5524, %v5520
  %v5641 = vpack.c.bf16 %v5525, %v5521
  %v5642 = vpack.c.bf16 %v5526, %v5522
  %v5643 = vpack.c.bf16 %v5527, %v5523
  %v5644 = vpack.c.bf16 %v5532, %v5528
  %v5645 = vpack.c.bf16 %v5533, %v5529
  %v5646 = vpack.c.bf16 %v5534, %v5530
  %v5647 = vpack.c.bf16 %v5535, %v5531
  %v5648 = vpack.c.bf16 %v5540, %v5536
  %v5649 = vpack.c.bf16 %v5541, %v5537
  %v5650 = vpack.c.bf16 %v5542, %v5538
  %v5651 = vpack.c.bf16 %v5543, %v5539
  %v5652 = vpack.c.bf16 %v5548, %v5544
  %v5653 = vpack.c.bf16 %v5549, %v5545
  %v5654 = vpack.c.bf16 %v5550, %v5546
  %v5655 = vpack.c.bf16 %v5551, %v5547
  %v5656 = vpack.c.bf16 %v5556, %v5552
  %v5657 = vpack.c.bf16 %v5557, %v5553
  %v5658 = vpack.c.bf16 %v5558, %v5554
  %v5659 = vpack.c.bf16 %v5559, %v5555
  %v5660 = vpack.c.bf16 %v5564, %v5560
  %v5661 = vpack.c.bf16 %v5565, %v5561
  %v5662 = vpack.c.bf16 %v5566, %v5562
  %v5663 = vpack.c.bf16 %v5567, %v5563
  %v5664 = vpack.c.bf16 %v5572, %v5568
  %v5665 = vpack.c.bf16 %v5573, %v5569
  %v5666 = vpack.c.bf16 %v5574, %v5570
  %v5667 = vpack.c.bf16 %v5575, %v5571
  %v5668 = vpack.c.bf16 %v5580, %v5576
  %v5669 = vpack.c.bf16 %v5581, %v5577
  %v5670 = vpack.c.bf16 %v5582, %v5578
  %v5671 = vpack.c.bf16 %v5583, %v5579
  %v5672 = vpack.c.bf16 %v5588, %v5584
  %v5673 = vpack.c.bf16 %v5589, %v5585
  %v5674 = vpack.c.bf16 %v5590, %v5586
  %v5675 = vpack.c.bf16 %v5591, %v5587
  %v5676 = vpack.c.bf16 %v5596, %v5592
  %v5677 = vpack.c.bf16 %v5597, %v5593
  %v5678 = vpack.c.bf16 %v5598, %v5594
  %v5679 = vpack.c.bf16 %v5599, %v5595
  %v5680 = vpack.c.bf16 %v5604, %v5600
  %v5681 = vpack.c.bf16 %v5605, %v5601
  %v5682 = vpack.c.bf16 %v5606, %v5602
  %v5683 = vpack.c.bf16 %v5607, %v5603
  %v5684 = vpack.c.bf16 %v5612, %v5608
  %v5685 = vpack.c.bf16 %v5613, %v5609
  %v5686 = vpack.c.bf16 %v5614, %v5610
  %v5687 = vpack.c.bf16 %v5615, %v5611
  %v5688 = vpack.c.bf16 %v5620, %v5616
  %v5689 = vpack.c.bf16 %v5621, %v5617
  %v5690 = vpack.c.bf16 %v5622, %v5618
  %v5691 = vpack.c.bf16 %v5623, %v5619
  %v5692 = vpack.c.bf16 %v5628, %v5624
  %v5693 = vpack.c.bf16 %v5629, %v5625
  %v5694 = vpack.c.bf16 %v5630, %v5626
  %v5695 = vpack.c.bf16 %v5631, %v5627
  %v5696 = vld [vmem:[%s9] sm:$0xf]
  %v5697 = vld [vmem:[%s9 + $0x4] sm:$0xf]
  %v5698 = vld [vmem:[%s9 + $0x8] sm:$0xf]
  %v5699 = vld [vmem:[%s9 + $0xc] sm:$0xf]
  %v5700 = vld [vmem:[%s9 + $0x10] sm:$0xf]
  %v5701 = vld [vmem:[%s9 + $0x14] sm:$0xf]
  %v5702 = vld [vmem:[%s9 + $0x18] sm:$0xf]
  %v5703 = vld [vmem:[%s9 + $0x1c] sm:$0xf]
  %v5704 = vld [vmem:[%s9 + $0x20] sm:$0xf]
  %v5705 = vld [vmem:[%s9 + $0x24] sm:$0xf]
  %v5706 = vld [vmem:[%s9 + $0x28] sm:$0xf]
  %v5707 = vld [vmem:[%s9 + $0x2c] sm:$0xf]
  %v5708 = vld [vmem:[%s9 + $0x30] sm:$0xf]
  %v5709 = vld [vmem:[%s9 + $0x34] sm:$0xf]
  %v5710 = vld [vmem:[%s9 + $0x38] sm:$0xf]
  %v5711 = vld [vmem:[%s9 + $0x3c] sm:$0xf]
  %v5712 = vld [vmem:[%s9 + $0x40] sm:$0xf]
  %v5713 = vld [vmem:[%s9 + $0x44] sm:$0xf]
  %v5714 = vld [vmem:[%s9 + $0x48] sm:$0xf]
  %v5715 = vld [vmem:[%s9 + $0x4c] sm:$0xf]
  %v5716 = vld [vmem:[%s9 + $0x50] sm:$0xf]
  %v5717 = vld [vmem:[%s9 + $0x54] sm:$0xf]
  %v5718 = vld [vmem:[%s9 + $0x58] sm:$0xf]
  %v5719 = vld [vmem:[%s9 + $0x5c] sm:$0xf]
  %v5720 = vld [vmem:[%s9 + $0x60] sm:$0xf]
  %v5721 = vld [vmem:[%s9 + $0x64] sm:$0xf]
  %v5722 = vld [vmem:[%s9 + $0x68] sm:$0xf]
  %v5723 = vld [vmem:[%s9 + $0x6c] sm:$0xf]
  %v5724 = vld [vmem:[%s9 + $0x70] sm:$0xf]
  %v5725 = vld [vmem:[%s9 + $0x74] sm:$0xf]
  %v5726 = vld [vmem:[%s9 + $0x78] sm:$0xf]
  %v5727 = vld [vmem:[%s9 + $0x7c] sm:$0xf]
  %v5728 = vld [vmem:[%s9 + $0x80] sm:$0xf]
  %v5729 = vld [vmem:[%s9 + $0x84] sm:$0xf]
  %v5730 = vld [vmem:[%s9 + $0x88] sm:$0xf]
  %v5731 = vld [vmem:[%s9 + $0x8c] sm:$0xf]
  %v5732 = vld [vmem:[%s9 + $0x90] sm:$0xf]
  %v5733 = vld [vmem:[%s9 + $0x94] sm:$0xf]
  %v5734 = vld [vmem:[%s9 + $0x98] sm:$0xf]
  %v5735 = vld [vmem:[%s9 + $0x9c] sm:$0xf]
  %v5736 = vld [vmem:[%s9 + $0xa0] sm:$0xf]
  %v5737 = vld [vmem:[%s9 + $0xa4] sm:$0xf]
  %v5738 = vld [vmem:[%s9 + $0xa8] sm:$0xf]
  %v5739 = vld [vmem:[%s9 + $0xac] sm:$0xf]
  %v5740 = vld [vmem:[%s9 + $0xb0] sm:$0xf]
  %v5741 = vld [vmem:[%s9 + $0xb4] sm:$0xf]
  %v5742 = vld [vmem:[%s9 + $0xb8] sm:$0xf]
  %v5743 = vld [vmem:[%s9 + $0xbc] sm:$0xf]
  %v5744 = vld [vmem:[%s9 + $0xc0] sm:$0xf]
  %v5745 = vld [vmem:[%s9 + $0xc4] sm:$0xf]
  %v5746 = vld [vmem:[#allocation2] sm:$0x1]
  %v5748 = vlaneseq
  %v5749 = vshrl.u32 %v5748, 7
  %v5750 = vsub.s32 0, %v5749
  %v5751 = vrot.slane %v5746, %v5750
  %v5803 = vunpack.c.l.b16 %v5696
  %v5804 = vunpack.c.l.b16 %v5697
  %v5805 = vunpack.c.l.b16 %v5698
  %v5806 = vunpack.c.l.b16 %v5699
  %v5807 = vunpack.c.l.b16 %v5700
  %v5808 = vunpack.c.l.b16 %v5701
  %v5809 = vunpack.c.l.b16 %v5702
  %v5810 = vunpack.c.l.b16 %v5703
  %v5811 = vunpack.c.l.b16 %v5704
  %v5812 = vunpack.c.l.b16 %v5705
  %v5813 = vunpack.c.l.b16 %v5706
  %v5814 = vunpack.c.l.b16 %v5707
  %v5815 = vunpack.c.l.b16 %v5708
  %v5816 = vunpack.c.l.b16 %v5709
  %v5817 = vunpack.c.l.b16 %v5710
  %v5818 = vunpack.c.l.b16 %v5711
  %v5819 = vunpack.c.l.b16 %v5712
  %v5820 = vunpack.c.l.b16 %v5713
  %v5821 = vunpack.c.l.b16 %v5714
  %v5822 = vunpack.c.l.b16 %v5715
  %v5823 = vunpack.c.l.b16 %v5716
  %v5824 = vunpack.c.l.b16 %v5717
  %v5825 = vunpack.c.l.b16 %v5718
  %v5826 = vunpack.c.l.b16 %v5719
  %v5827 = vunpack.c.l.b16 %v5720
  %v5828 = vunpack.c.l.b16 %v5721
  %v5829 = vunpack.c.l.b16 %v5722
  %v5830 = vunpack.c.l.b16 %v5723
  %v5831 = vunpack.c.l.b16 %v5724
  %v5832 = vunpack.c.l.b16 %v5725
  %v5833 = vunpack.c.l.b16 %v5726
  %v5834 = vunpack.c.l.b16 %v5727
  %v5835 = vunpack.c.l.b16 %v5728
  %v5836 = vunpack.c.l.b16 %v5729
  %v5837 = vunpack.c.l.b16 %v5730
  %v5838 = vunpack.c.l.b16 %v5731
  %v5839 = vunpack.c.l.b16 %v5732
  %v5840 = vunpack.c.l.b16 %v5733
  %v5841 = vunpack.c.l.b16 %v5734
  %v5842 = vunpack.c.l.b16 %v5735
  %v5843 = vunpack.c.l.b16 %v5736
  %v5844 = vunpack.c.l.b16 %v5737
  %v5845 = vunpack.c.l.b16 %v5738
  %v5846 = vunpack.c.l.b16 %v5739
  %v5847 = vunpack.c.l.b16 %v5740
  %v5848 = vunpack.c.l.b16 %v5741
  %v5849 = vunpack.c.l.b16 %v5742
  %v5850 = vunpack.c.l.b16 %v5743
  %v5851 = vunpack.c.l.b16 %v5744
  %v5852 = vunpack.c.l.b16 %v5745
  %v5853 = vpack.c.b16 %v5804, %v5803
  %v5854 = vpack.c.b16 %v5806, %v5805
  %v5855 = vpack.c.b16 %v5808, %v5807
  %v5856 = vpack.c.b16 %v5810, %v5809
  %v5857 = vpack.c.b16 %v5812, %v5811
  %v5858 = vpack.c.b16 %v5814, %v5813
  %v5859 = vpack.c.b16 %v5816, %v5815
  %v5860 = vpack.c.b16 %v5818, %v5817
  %v5861 = vpack.c.b16 %v5820, %v5819
  %v5862 = vpack.c.b16 %v5822, %v5821
  %v5863 = vpack.c.b16 %v5824, %v5823
  %v5864 = vpack.c.b16 %v5826, %v5825
  %v5865 = vpack.c.b16 %v5828, %v5827
  %v5866 = vpack.c.b16 %v5830, %v5829
  %v5867 = vpack.c.b16 %v5832, %v5831
  %v5868 = vpack.c.b16 %v5834, %v5833
  %v5869 = vpack.c.b16 %v5836, %v5835
  %v5870 = vpack.c.b16 %v5838, %v5837
  %v5871 = vpack.c.b16 %v5840, %v5839
  %v5872 = vpack.c.b16 %v5842, %v5841
  %v5873 = vpack.c.b16 %v5844, %v5843
  %v5874 = vpack.c.b16 %v5846, %v5845
  %v5875 = vpack.c.b16 %v5848, %v5847
  %v5876 = vpack.c.b16 %v5850, %v5849
  %v5877 = vpack.c.b16 %v5852, %v5851
  %v5904 = vsel %vm2879, %v5635, 0
  %v5907 = vsel %vm2879, %v5639, 0
  %v5910 = vsel %vm2879, %v5643, 0
  %v5913 = vsel %vm2879, %v5647, 0
  %v5916 = vsel %vm2879, %v5651, 0
  %v5919 = vsel %vm2879, %v5655, 0
  %v5922 = vsel %vm2879, %v5659, 0
  %v5925 = vsel %vm2879, %v5663, 0
  %v5928 = vsel %vm2879, %v5667, 0
  %v5931 = vsel %vm2879, %v5671, 0
  %v5934 = vsel %vm2879, %v5675, 0
  %v5937 = vsel %vm2879, %v5679, 0
  %v5940 = vsel %vm2879, %v5683, 0
  %v5943 = vsel %vm2879, %v5687, 0
  %v5946 = vsel %vm2879, %v5691, 0
  %v5949 = vsel %vm2879, %v5695, 0
  %5951 = vmatprep.subr.bf16.mxu0 0
  %5952 = vmatpush1.bf16.msra.mxu0 %v5853
  %5953 = vmatprep.subr.bf16.mxu0 0
  %5954 = vmatpush1.bf16.msra.mxu0 %v5854
  %5955 = vmatprep.subr.bf16.mxu0 0
  %5956 = vmatpush1.bf16.msra.mxu0 %v5855
  %5957 = vmatprep.subr.bf16.mxu0 0
  %5958 = vmatpush1.bf16.msra.mxu0 %v5856
  %5959 = vmatprep.subr.bf16.mxu0 0
  %5960 = vmatpush1.bf16.msra.mxu0 %v5857
  %5961 = vmatprep.subr.bf16.mxu0 0
  %5962 = vmatpush1.bf16.msra.mxu0 %v5858
  %5963 = vmatprep.subr.bf16.mxu0 0
  %5964 = vmatpush1.bf16.msra.mxu0 %v5859
  %5965 = vmatprep.subr.bf16.mxu0 0
  %5966 = vmatpush1.bf16.msra.mxu0 %v5860
  %5967 = vmatprep.subr.bf16.mxu0 0
  %5968 = vmatpush1.bf16.msra.mxu0 %v5861
  %5969 = vmatprep.subr.bf16.mxu0 0
  %5970 = vmatpush1.bf16.msra.mxu0 %v5862
  %5971 = vmatprep.subr.bf16.mxu0 0
  %5972 = vmatpush1.bf16.msra.mxu0 %v5863
  %5973 = vmatprep.subr.bf16.mxu0 0
  %5974 = vmatpush1.bf16.msra.mxu0 %v5864
  %5975 = vmatprep.subr.bf16.mxu0 0
  %5976 = vmatpush1.bf16.msra.mxu0 %v5865
  %5977 = vmatprep.subr.bf16.mxu0 0
  %5978 = vmatpush1.bf16.msra.mxu0 %v5866
  %5979 = vmatprep.subr.bf16.mxu0 0
  %5980 = vmatpush1.bf16.msra.mxu0 %v5867
  %5981 = vmatprep.subr.bf16.mxu0 0
  %5982 = vmatpush1.bf16.msra.mxu0 %v5868
  %5983 = vmatprep.mubr.bf16.mxu0 %v5633
  %5984 = vmatmul.mubr.bf16.gmra.mrb[0].mxu0 %v5632
  %v5985 = vpop.f32.mrb[0].mxu0
  %v5986 = vadd.f32 %v5751, %v5985
  %v5987 = vpop.f32.mrb[0].mxu0
  %v5988 = vpop.f32.mrb[0].mxu0
  %v5989 = vadd.f32 %v5751, %v5988
  %v5990 = vpop.f32.mrb[0].mxu0
  %5991 = vmatprep.mubr.bf16.mxu0 %v5637
  %5992 = vmatmul.mubr.bf16.gmra.mrb[0].mxu0 %v5636
  %v5993 = vpop.f32.mrb[0].mxu0
  %v5994 = vadd.f32 %v5751, %v5993
  %v5995 = vpop.f32.mrb[0].mxu0
  %v5996 = vpop.f32.mrb[0].mxu0
  %v5997 = vadd.f32 %v5751, %v5996
  %v5998 = vpop.f32.mrb[0].mxu0
  %5999 = vmatprep.mubr.bf16.mxu0 %v5641
  %6000 = vmatmul.mubr.bf16.gmra.mrb[0].mxu0 %v5640
  %v6001 = vpop.f32.mrb[0].mxu0
  %v6002 = vadd.f32 %v5751, %v6001
  %v6003 = vpop.f32.mrb[0].mxu0
  %v6004 = vpop.f32.mrb[0].mxu0
  %v6005 = vadd.f32 %v5751, %v6004
  %v6006 = vpop.f32.mrb[0].mxu0
  %6007 = vmatprep.mubr.bf16.mxu0 %v5645
  %6008 = vmatmul.mubr.bf16.gmra.mrb[0].mxu0 %v5644
  %v6009 = vpop.f32.mrb[0].mxu0
  %v6010 = vadd.f32 %v5751, %v6009
  %v6011 = vpop.f32.mrb[0].mxu0
  %v6012 = vpop.f32.mrb[0].mxu0
  %v6013 = vadd.f32 %v5751, %v6012
  %v6014 = vpop.f32.mrb[0].mxu0
  %6015 = vmatprep.mubr.bf16.mxu0 %v5649
  %6016 = vmatmul.mubr.bf16.gmra.mrb[0].mxu0 %v5648
  %v6017 = vpop.f32.mrb[0].mxu0
  %v6018 = vadd.f32 %v5751, %v6017
  %v6019 = vpop.f32.mrb[0].mxu0
  %v6020 = vpop.f32.mrb[0].mxu0
  %v6021 = vadd.f32 %v5751, %v6020
  %v6022 = vpop.f32.mrb[0].mxu0
  %6023 = vmatprep.mubr.bf16.mxu0 %v5653
  %6024 = vmatmul.mubr.bf16.gmra.mrb[0].mxu0 %v5652
  %v6025 = vpop.f32.mrb[0].mxu0
  %v6026 = vadd.f32 %v5751, %v6025
  %v6027 = vpop.f32.mrb[0].mxu0
  %v6028 = vpop.f32.mrb[0].mxu0
  %v6029 = vadd.f32 %v5751, %v6028
  %v6030 = vpop.f32.mrb[0].mxu0
  %6031 = vmatprep.mubr.bf16.mxu0 %v5657
  %6032 = vmatmul.mubr.bf16.gmra.mrb[0].mxu0 %v5656
  %v6033 = vpop.f32.mrb[0].mxu0
  %v6034 = vadd.f32 %v5751, %v6033
  %v6035 = vpop.f32.mrb[0].mxu0
  %v6036 = vpop.f32.mrb[0].mxu0
  %v6037 = vadd.f32 %v5751, %v6036
  %v6038 = vpop.f32.mrb[0].mxu0
  %6039 = vmatprep.mubr.bf16.mxu0 %v5661
  %6040 = vmatmul.mubr.bf16.gmra.mrb[0].mxu0 %v5660
  %v6041 = vpop.f32.mrb[0].mxu0
  %v6042 = vadd.f32 %v5751, %v6041
  %v6043 = vpop.f32.mrb[0].mxu0
  %v6044 = vpop.f32.mrb[0].mxu0
  %v6045 = vadd.f32 %v5751, %v6044
  %v6046 = vpop.f32.mrb[0].mxu0
  %6047 = vmatprep.mubr.bf16.mxu0 %v5665
  %6048 = vmatmul.mubr.bf16.gmra.mrb[0].mxu0 %v5664
  %v6049 = vpop.f32.mrb[0].mxu0
  %v6050 = vadd.f32 %v5751, %v6049
  %v6051 = vpop.f32.mrb[0].mxu0
  %v6052 = vpop.f32.mrb[0].mxu0
  %v6053 = vadd.f32 %v5751, %v6052
  %v6054 = vpop.f32.mrb[0].mxu0
  %6055 = vmatprep.mubr.bf16.mxu0 %v5669
  %6056 = vmatmul.mubr.bf16.gmra.mrb[0].mxu0 %v5668
  %v6057 = vpop.f32.mrb[0].mxu0
  %v6058 = vadd.f32 %v5751, %v6057
  %v6059 = vpop.f32.mrb[0].mxu0
  %v6060 = vpop.f32.mrb[0].mxu0
  %v6061 = vadd.f32 %v5751, %v6060
  %v6062 = vpop.f32.mrb[0].mxu0
  %6063 = vmatprep.mubr.bf16.mxu0 %v5673
  %6064 = vmatmul.mubr.bf16.gmra.mrb[0].mxu0 %v5672
  %v6065 = vpop.f32.mrb[0].mxu0
  %v6066 = vadd.f32 %v5751, %v6065
  %v6067 = vpop.f32.mrb[0].mxu0
  %v6068 = vpop.f32.mrb[0].mxu0
  %v6069 = vadd.f32 %v5751, %v6068
  %v6070 = vpop.f32.mrb[0].mxu0
  %6071 = vmatprep.mubr.bf16.mxu0 %v5677
  %6072 = vmatmul.mubr.bf16.gmra.mrb[0].mxu0 %v5676
  %v6073 = vpop.f32.mrb[0].mxu0
  %v6074 = vadd.f32 %v5751, %v6073
  %v6075 = vpop.f32.mrb[0].mxu0
  %v6076 = vpop.f32.mrb[0].mxu0
  %v6077 = vadd.f32 %v5751, %v6076
  %v6078 = vpop.f32.mrb[0].mxu0
  %6079 = vmatprep.mubr.bf16.mxu0 %v5681
  %6080 = vmatmul.mubr.bf16.gmra.mrb[0].mxu0 %v5680
  %v6081 = vpop.f32.mrb[0].mxu0
  %v6082 = vadd.f32 %v5751, %v6081
  %v6083 = vpop.f32.mrb[0].mxu0
  %v6084 = vpop.f32.mrb[0].mxu0
  %v6085 = vadd.f32 %v5751, %v6084
  %v6086 = vpop.f32.mrb[0].mxu0
  %6087 = vmatprep.mubr.bf16.mxu0 %v5685
  %6088 = vmatmul.mubr.bf16.gmra.mrb[0].mxu0 %v5684
  %v6089 = vpop.f32.mrb[0].mxu0
  %v6090 = vadd.f32 %v5751, %v6089
  %v6091 = vpop.f32.mrb[0].mxu0
  %v6092 = vpop.f32.mrb[0].mxu0
  %v6093 = vadd.f32 %v5751, %v6092
  %v6094 = vpop.f32.mrb[0].mxu0
  %6095 = vmatprep.mubr.bf16.mxu0 %v5689
  %6096 = vmatmul.mubr.bf16.gmra.mrb[0].mxu0 %v5688
  %v6097 = vpop.f32.mrb[0].mxu0
  %v6098 = vadd.f32 %v5751, %v6097
  %v6099 = vpop.f32.mrb[0].mxu0
  %v6100 = vpop.f32.mrb[0].mxu0
  %v6101 = vadd.f32 %v5751, %v6100
  %v6102 = vpop.f32.mrb[0].mxu0
  %6103 = vmatprep.mubr.bf16.mxu0 %v5693
  %6104 = vmatmul.mubr.bf16.gmra.mrb[0].mxu0 %v5692
  %v6105 = vpop.f32.mrb[0].mxu0
  %v6106 = vadd.f32 %v5751, %v6105
  %v6107 = vpop.f32.mrb[0].mxu0
  %v6108 = vpop.f32.mrb[0].mxu0
  %v6109 = vadd.f32 %v5751, %v6108
  %v6110 = vpop.f32.mrb[0].mxu0
  %6111 = vdwg.mxu0
  %6112 = vmatprep.subr.bf16.mxu0 0
  %6113 = vmatpush1.bf16.msra.mxu0 %v5869
  %6114 = vmatprep.subr.bf16.mxu0 0
  %6115 = vmatpush1.bf16.msra.mxu0 %v5870
  %6116 = vmatprep.subr.bf16.mxu0 0
  %6117 = vmatpush1.bf16.msra.mxu0 %v5871
  %6118 = vmatprep.subr.bf16.mxu0 0
  %6119 = vmatpush1.bf16.msra.mxu0 %v5872
  %6120 = vmatprep.subr.bf16.mxu0 0
  %6121 = vmatpush1.bf16.msra.mxu0 %v5873
  %6122 = vmatprep.subr.bf16.mxu0 0
  %6123 = vmatpush1.bf16.msra.mxu0 %v5874
  %6124 = vmatprep.subr.bf16.mxu0 0
  %6125 = vmatpush1.bf16.msra.mxu0 %v5875
  %6126 = vmatprep.subr.bf16.mxu0 0
  %6127 = vmatpush1.bf16.msra.mxu0 %v5876
  %6128 = vmatprep.subr.bf16.mxu0 0
  %6129 = vmatpush1.bf16.msra.mxu0 %v5877
  %6130 = vmatprep.subr.bf16.mxu0 0
  %6131 = vmatpush1.bf16.msra.mxu0 0
  %6132 = vmatprep.subr.bf16.mxu0 0
  %6133 = vmatpush1.bf16.msra.mxu0 0
  %6134 = vmatprep.subr.bf16.mxu0 0
  %6135 = vmatpush1.bf16.msra.mxu0 0
  %6136 = vmatprep.subr.bf16.mxu0 0
  %6137 = vmatpush1.bf16.msra.mxu0 0
  %6138 = vmatprep.subr.bf16.mxu0 0
  %6139 = vmatpush1.bf16.msra.mxu0 0
  %6140 = vmatprep.subr.bf16.mxu0 0
  %6141 = vmatpush1.bf16.msra.mxu0 0
  %6142 = vmatprep.subr.bf16.mxu0 0
  %6143 = vmatpush1.bf16.msra.mxu0 0
  %6144 = vmatprep.mubr.bf16.mxu0 %v5904
  %6145 = vmatmul.mubr.bf16.gmra.mrb[0].mxu0 %v5634
  %v6146 = vpop.f32.mrb[0].mxu0
  %v6147 = vadd.f32 %v5986, %v6146
  %v6148 = vpop.f32.mrb[0].mxu0
  %v6149 = vpop.f32.mrb[0].mxu0
  %v6150 = vadd.f32 %v5989, %v6149
  %v6151 = vpop.f32.mrb[0].mxu0
  %6152 = vmatprep.mubr.bf16.mxu0 %v5907
  %6153 = vmatmul.mubr.bf16.gmra.mrb[0].mxu0 %v5638
  %v6154 = vpop.f32.mrb[0].mxu0
  %v6155 = vadd.f32 %v5994, %v6154
  %v6156 = vpop.f32.mrb[0].mxu0
  %v6157 = vpop.f32.mrb[0].mxu0
  %v6158 = vadd.f32 %v5997, %v6157
  %v6159 = vpop.f32.mrb[0].mxu0
  %6160 = vmatprep.mubr.bf16.mxu0 %v5910
  %6161 = vmatmul.mubr.bf16.gmra.mrb[0].mxu0 %v5642
  %v6162 = vpop.f32.mrb[0].mxu0
  %v6163 = vadd.f32 %v6002, %v6162
  %v6164 = vpop.f32.mrb[0].mxu0
  %v6165 = vpop.f32.mrb[0].mxu0
  %v6166 = vadd.f32 %v6005, %v6165
  %v6167 = vpop.f32.mrb[0].mxu0
  %6168 = vmatprep.mubr.bf16.mxu0 %v5913
  %6169 = vmatmul.mubr.bf16.gmra.mrb[0].mxu0 %v5646
  %v6170 = vpop.f32.mrb[0].mxu0
  %v6171 = vadd.f32 %v6010, %v6170
  %v6172 = vpop.f32.mrb[0].mxu0
  %v6173 = vpop.f32.mrb[0].mxu0
  %v6174 = vadd.f32 %v6013, %v6173
  %v6175 = vpop.f32.mrb[0].mxu0
  %6176 = vmatprep.mubr.bf16.mxu0 %v5916
  %6177 = vmatmul.mubr.bf16.gmra.mrb[0].mxu0 %v5650
  %v6178 = vpop.f32.mrb[0].mxu0
  %v6179 = vadd.f32 %v6018, %v6178
  %v6180 = vpop.f32.mrb[0].mxu0
  %v6181 = vpop.f32.mrb[0].mxu0
  %v6182 = vadd.f32 %v6021, %v6181
  %v6183 = vpop.f32.mrb[0].mxu0
  %6184 = vmatprep.mubr.bf16.mxu0 %v5919
  %6185 = vmatmul.mubr.bf16.gmra.mrb[0].mxu0 %v5654
  %v6186 = vpop.f32.mrb[0].mxu0
  %v6187 = vadd.f32 %v6026, %v6186
  %v6188 = vpop.f32.mrb[0].mxu0
  %v6189 = vpop.f32.mrb[0].mxu0
  %v6190 = vadd.f32 %v6029, %v6189
  %v6191 = vpop.f32.mrb[0].mxu0
  %6192 = vmatprep.mubr.bf16.mxu0 %v5922
  %6193 = vmatmul.mubr.bf16.gmra.mrb[0].mxu0 %v5658
  %v6194 = vpop.f32.mrb[0].mxu0
  %v6195 = vadd.f32 %v6034, %v6194
  %v6196 = vpop.f32.mrb[0].mxu0
  %v6197 = vpop.f32.mrb[0].mxu0
  %v6198 = vadd.f32 %v6037, %v6197
  %v6199 = vpop.f32.mrb[0].mxu0
  %6200 = vmatprep.mubr.bf16.mxu0 %v5925
  %6201 = vmatmul.mubr.bf16.gmra.mrb[0].mxu0 %v5662
  %v6202 = vpop.f32.mrb[0].mxu0
  %v6203 = vadd.f32 %v6042, %v6202
  %v6204 = vpop.f32.mrb[0].mxu0
  %v6205 = vpop.f32.mrb[0].mxu0
  %v6206 = vadd.f32 %v6045, %v6205
  %v6207 = vpop.f32.mrb[0].mxu0
  %6208 = vmatprep.mubr.bf16.mxu0 %v5928
  %6209 = vmatmul.mubr.bf16.gmra.mrb[0].mxu0 %v5666
  %v6210 = vpop.f32.mrb[0].mxu0
  %v6211 = vadd.f32 %v6050, %v6210
  %v6212 = vpop.f32.mrb[0].mxu0
  %v6213 = vpop.f32.mrb[0].mxu0
  %v6214 = vadd.f32 %v6053, %v6213
  %v6215 = vpop.f32.mrb[0].mxu0
  %6216 = vmatprep.mubr.bf16.mxu0 %v5931
  %6217 = vmatmul.mubr.bf16.gmra.mrb[0].mxu0 %v5670
  %v6218 = vpop.f32.mrb[0].mxu0
  %v6219 = vadd.f32 %v6058, %v6218
  %v6220 = vpop.f32.mrb[0].mxu0
  %v6221 = vpop.f32.mrb[0].mxu0
  %v6222 = vadd.f32 %v6061, %v6221
  %v6223 = vpop.f32.mrb[0].mxu0
  %6224 = vmatprep.mubr.bf16.mxu0 %v5934
  %6225 = vmatmul.mubr.bf16.gmra.mrb[0].mxu0 %v5674
  %v6226 = vpop.f32.mrb[0].mxu0
  %v6227 = vadd.f32 %v6066, %v6226
  %v6228 = vpop.f32.mrb[0].mxu0
  %v6229 = vpop.f32.mrb[0].mxu0
  %v6230 = vadd.f32 %v6069, %v6229
  %v6231 = vpop.f32.mrb[0].mxu0
  %6232 = vmatprep.mubr.bf16.mxu0 %v5937
  %6233 = vmatmul.mubr.bf16.gmra.mrb[0].mxu0 %v5678
  %v6234 = vpop.f32.mrb[0].mxu0
  %v6235 = vadd.f32 %v6074, %v6234
  %v6236 = vpop.f32.mrb[0].mxu0
  %v6237 = vpop.f32.mrb[0].mxu0
  %v6238 = vadd.f32 %v6077, %v6237
  %v6239 = vpop.f32.mrb[0].mxu0
  %6240 = vmatprep.mubr.bf16.mxu0 %v5940
  %6241 = vmatmul.mubr.bf16.gmra.mrb[0].mxu0 %v5682
  %v6242 = vpop.f32.mrb[0].mxu0
  %v6243 = vadd.f32 %v6082, %v6242
  %v6244 = vpop.f32.mrb[0].mxu0
  %v6245 = vpop.f32.mrb[0].mxu0
  %v6246 = vadd.f32 %v6085, %v6245
  %v6247 = vpop.f32.mrb[0].mxu0
  %6248 = vmatprep.mubr.bf16.mxu0 %v5943
  %6249 = vmatmul.mubr.bf16.gmra.mrb[0].mxu0 %v5686
  %v6250 = vpop.f32.mrb[0].mxu0
  %v6251 = vadd.f32 %v6090, %v6250
  %v6252 = vpop.f32.mrb[0].mxu0
  %v6253 = vpop.f32.mrb[0].mxu0
  %v6254 = vadd.f32 %v6093, %v6253
  %v6255 = vpop.f32.mrb[0].mxu0
  %6256 = vmatprep.mubr.bf16.mxu0 %v5946
  %6257 = vmatmul.mubr.bf16.gmra.mrb[0].mxu0 %v5690
  %v6258 = vpop.f32.mrb[0].mxu0
  %v6259 = vadd.f32 %v6098, %v6258
  %v6260 = vpop.f32.mrb[0].mxu0
  %v6261 = vpop.f32.mrb[0].mxu0
  %v6262 = vadd.f32 %v6101, %v6261
  %v6263 = vpop.f32.mrb[0].mxu0
  %6264 = vmatprep.mubr.bf16.mxu0 %v5949
  %6265 = vmatmul.mubr.bf16.gmra.mrb[0].mxu0 %v5694
  %v6266 = vpop.f32.mrb[0].mxu0
  %v6267 = vadd.f32 %v6106, %v6266
  %v6268 = vpop.f32.mrb[0].mxu0
  %v6269 = vpop.f32.mrb[0].mxu0
  %v6270 = vadd.f32 %v6109, %v6269
  %v6271 = vpop.f32.mrb[0].mxu0
  %6272 = vdwg.mxu0
  %vm6273 = vcmask 7168
  %6274 = vst.msk [vmem:[%s11] sm:$0xff] %vm6273, %v6147
  %6275 = vst.msk [vmem:[%s11 + $0x8] sm:$0xff] %vm6273, %v6150
  %6276 = vst.msk [vmem:[%s11 + $0x10] sm:$0xff] %vm6273, %v6155
  %6277 = vst.msk [vmem:[%s11 + $0x18] sm:$0xff] %vm6273, %v6158
  %6278 = vst.msk [vmem:[%s11 + $0x20] sm:$0xff] %vm6273, %v6163
  %6279 = vst.msk [vmem:[%s11 + $0x28] sm:$0xff] %vm6273, %v6166
  %6280 = vst.msk [vmem:[%s11 + $0x30] sm:$0xff] %vm6273, %v6171
  %6281 = vst.msk [vmem:[%s11 + $0x38] sm:$0xff] %vm6273, %v6174
  %6282 = vst.msk [vmem:[%s11 + $0x40] sm:$0xff] %vm6273, %v6179
  %6283 = vst.msk [vmem:[%s11 + $0x48] sm:$0xff] %vm6273, %v6182
  %6284 = vst.msk [vmem:[%s11 + $0x50] sm:$0xff] %vm6273, %v6187
  %6285 = vst.msk [vmem:[%s11 + $0x58] sm:$0xff] %vm6273, %v6190
  %6286 = vst.msk [vmem:[%s11 + $0x60] sm:$0xff] %vm6273, %v6195
  %6287 = vst.msk [vmem:[%s11 + $0x68] sm:$0xff] %vm6273, %v6198
  %6288 = vst.msk [vmem:[%s11 + $0x70] sm:$0xff] %vm6273, %v6203
  %6289 = vst.msk [vmem:[%s11 + $0x78] sm:$0xff] %vm6273, %v6206
  %6290 = vst.msk [vmem:[%s11 + $0x80] sm:$0xff] %vm6273, %v6211
  %6291 = vst.msk [vmem:[%s11 + $0x88] sm:$0xff] %vm6273, %v6214
  %6292 = vst.msk [vmem:[%s11 + $0x90] sm:$0xff] %vm6273, %v6219
  %6293 = vst.msk [vmem:[%s11 + $0x98] sm:$0xff] %vm6273, %v6222
  %6294 = vst.msk [vmem:[%s11 + $0xa0] sm:$0xff] %vm6273, %v6227
  %6295 = vst.msk [vmem:[%s11 + $0xa8] sm:$0xff] %vm6273, %v6230
  %6296 = vst.msk [vmem:[%s11 + $0xb0] sm:$0xff] %vm6273, %v6235
  %6297 = vst.msk [vmem:[%s11 + $0xb8] sm:$0xff] %vm6273, %v6238
  %6298 = vst.msk [vmem:[%s11 + $0xc0] sm:$0xff] %vm6273, %v6243
  %6299 = vst.msk [vmem:[%s11 + $0xc8] sm:$0xff] %vm6273, %v6246
  %6300 = vst.msk [vmem:[%s11 + $0xd0] sm:$0xff] %vm6273, %v6251
  %6301 = vst.msk [vmem:[%s11 + $0xd8] sm:$0xff] %vm6273, %v6254
  %6302 = vst.msk [vmem:[%s11 + $0xe0] sm:$0xff] %vm6273, %v6259
  %6303 = vst.msk [vmem:[%s11 + $0xe8] sm:$0xff] %vm6273, %v6262
  %6304 = vst.msk [vmem:[%s11 + $0xf0] sm:$0xff] %vm6273, %v6267
  %6305 = vst.msk [vmem:[%s11 + $0xf8] sm:$0xff] %vm6273, %v6270
  // Predicated region
  $region46: #{tpu_custom_call.1} parent=0 // pred_check
    _
  $region47: #{tpu_custom_call.1} parent=0 // pred_check_branch
    %6307 = sbr.rel (0) target = $region49
  $region48: #{tpu_custom_call.1} parent=0 // pred_region
    _
  $region49: #{tpu_custom_call.1} parent=0 // pred_fallthru
    _
  // Predicated region
  $region50: #{tpu_custom_call.1} parent=0 // pred_check
    _
  $region51: #{tpu_custom_call.1} parent=0 // pred_check_branch
    %6309 = sbr.rel (0) target = $region53
  $region52: #{tpu_custom_call.1} parent=0 // pred_region
    _
  $region53: #{tpu_custom_call.1} parent=0 // pred_fallthru
    _

</llo_original>
